<compile_context>
chip_gen: v7x
topology: tpu7x:2x2x1
jax: 0.10.0
libtpu: 0.0.40
codegen_flags: <defaults>
</compile_context>

<pallas_src>
import functools

import numpy as np
import jax
import jax.numpy as jnp
from jax import lax
from jax.experimental import pallas as pl
from jax.experimental.pallas import tpu as pltpu

EPS = 1e-5

_COMPILER_PARAMS = pltpu.CompilerParams(
    dimension_semantics=("parallel",),
    vmem_limit_bytes=48 * 1024 * 1024,   # v7x-safe cap (64 MiB physical VMEM)
)


# --------------------------------------------------------------------------
# Kernel 1/2: [optional per-channel affine + ReLU] -> 3x3 conv (+bias),
#             plus per-step BN statistics (sum, sum of squares), lane-dense.
# --------------------------------------------------------------------------
def _conv_kernel(act_ref, w_ref, b_ref, scale_ref, shift_ref,
                 y_ref, sum_ref, ssq_ref, padded_ref,
                 *, Bt, H, W, C, apply_bn_relu):
    WC = W * C
    a = act_ref[...]                                        # (Bt*H, W*C)
    if apply_bn_relu:
        a = jnp.maximum(a * scale_ref[...] + shift_ref[...], 0.0)

    # Vertical-halo scratch: rows 1..H hold the activation, rows 0 and H+1 are
    # zero.  Horizontal zero-padding is baked into the Toeplitz weights, so
    # all stores here are full-lane-width (no lane offsets, no masks).
    zrow = jnp.zeros((Bt, 1, WC), jnp.float32)
    padded_ref[:, 0:1, :] = zrow
    padded_ref[:, H + 1:H + 2, :] = zrow
    padded_ref[:, 1:H + 1, :] = a.reshape(Bt, H, WC)

    # 3x3 conv = 3 accumulated matmuls (one per kernel row dy) against
    # block-Toeplitz weight matrices (W*C, W*C).  M = Bt*H, K = N = W*C.
    acc = jnp.dot(padded_ref[:, 0:H, :].reshape(Bt * H, WC), w_ref[0],
                  preferred_element_type=jnp.float32)
    for dy in (1, 2):
        slab = padded_ref[:, dy:dy + H, :].reshape(Bt * H, WC)
        acc = acc + jnp.dot(slab, w_ref[dy],
                            preferred_element_type=jnp.float32)
    y = acc + b_ref[...]                                    # (Bt*H, W*C)

    y_ref[...] = y
    # single-pass BN statistics: per-step, per-(w,c) partial sums (lane-dense);
    # folded over steps and over w in the wrapper.
    sum_ref[0] = jnp.sum(y, axis=0, keepdims=True)          # (1, W*C)
    ssq_ref[0] = jnp.sum(y * y, axis=0, keepdims=True)      # (1, W*C)


# --------------------------------------------------------------------------
# Kernel 3: BN2 affine + residual add + ReLU (lane-dense elementwise).
# --------------------------------------------------------------------------
def _finalize_kernel(y_ref, x_ref, scale_ref, shift_ref, o_ref):
    o_ref[...] = jnp.maximum(
        y_ref[...] * scale_ref[...] + shift_ref[...] + x_ref[...], 0.0)


# --------------------------------------------------------------------------
# pallas_call wrappers
# --------------------------------------------------------------------------
def _pick_bt(B, H, W, C):
    """Largest Bt dividing B with >=2 grid steps (megacore) that fits VMEM."""
    budget = 40 * 1024 * 1024
    wbytes = 3 * (W * C) * (W * C) * 4
    best = 1
    for bt in range(1, B + 1):
        if B % bt:
            continue
        if B >= 2 and B // bt < 2:        # keep >=2 steps for v7x's 2 TCs
            continue
        if (bt * H) % 8 != 0 and bt * H != B * H:
            continue
        act = bt * H * W * C * 4
        need = 5 * act + bt * (H + 2) * W * C * 4 + wbytes
        if need <= budget:
            best = bt
    return best


def _conv_call(act, wt, bias_wc, scale_wc, shift_wc,
               *, B, C, H, W, Bt, apply_bn_relu):
    WC = W * C
    nsteps = B // Bt
    kern = functools.partial(_conv_kernel, Bt=Bt, H=H, W=W, C=C,
                             apply_bn_relu=apply_bn_relu)

    act_spec = pl.BlockSpec((Bt * H, WC), lambda i: (i, 0))
    vec_spec = pl.BlockSpec((1, WC), lambda i: (0, 0))       # VMEM-resident
    w_spec = pl.BlockSpec((3, WC, WC), lambda i: (0, 0, 0))  # VMEM-resident
    stat_spec = pl.BlockSpec((1, 1, WC), lambda i: (i, 0, 0))

    return pl.pallas_call(
        kern,
        grid=(nsteps,),
        in_specs=[act_spec, w_spec, vec_spec, vec_spec, vec_spec],
        out_specs=[act_spec, stat_spec, stat_spec],
        out_shape=[jax.ShapeDtypeStruct((B * H, WC), jnp.float32),
                   jax.ShapeDtypeStruct((nsteps, 1, WC), jnp.float32),
                   jax.ShapeDtypeStruct((nsteps, 1, WC), jnp.float32)],
        scratch_shapes=[pltpu.VMEM((Bt, H + 2, WC), jnp.float32)],
        compiler_params=_COMPILER_PARAMS,
    )(act, wt, bias_wc, scale_wc, shift_wc)


def _finalize_call(y2, x_l, scale_wc, shift_wc, *, B, H, W, C, Bt):
    WC = W * C
    nsteps = B // Bt
    blk = pl.BlockSpec((Bt * H, WC), lambda i: (i, 0))
    vec = pl.BlockSpec((1, WC), lambda i: (0, 0))
    return pl.pallas_call(
        _finalize_kernel,
        grid=(nsteps,),
        in_specs=[blk, blk, vec, vec],
        out_specs=blk,
        out_shape=jax.ShapeDtypeStruct((B * H, WC), jnp.float32),
        compiler_params=_COMPILER_PARAMS,
    )(y2, x_l, scale_wc, shift_wc)


def _bn_affine(sums, ssqs, gamma, beta, n, W, C):
    """Finalize batch statistics into a per-channel affine (scale, shift)."""
    s = jnp.sum(sums, axis=(0, 1)).reshape(W, C).sum(axis=0)        # (C,)
    q = jnp.sum(ssqs, axis=(0, 1)).reshape(W, C).sum(axis=0)        # (C,)
    mean = s / n
    var = jnp.maximum(q / n - mean * mean, 0.0)                     # biased
    scale = gamma * lax.rsqrt(var + EPS)
    shift = beta - mean * scale
    return scale.reshape(1, C), shift.reshape(1, C)


def _pack_toeplitz(w_oihw, W, C):
    """(O, I, 3, 3) -> (3, W*C, W*C) block-Toeplitz matrices, one per dy.

    mat[dy][u*C+ci, w*C+co] = w[co, ci, dy, u-w+1] when u-w+1 in {0,1,2},
    else 0 — i.e. horizontal taps AND horizontal zero-padding baked in.
    """
    wt = jnp.transpose(w_oihw, (2, 3, 1, 0))          # (dy, dx, ci, co)
    mats = []
    for dy in range(3):
        m = jnp.zeros((W * C, W * C), jnp.float32)
        for wpos in range(W):
            for dx in range(3):
                u = wpos + dx - 1
                if 0 <= u < W:
                    m = m.at[u * C:(u + 1) * C,
                             wpos * C:(wpos + 1) * C].set(wt[dy, dx])
        mats.append(m)
    return jnp.stack(mats)


def resblock_pallas(x_nchw, params):
    """Fused ResBlock forward (training-mode BN). x_nchw: (B, C, H, W) f32."""
    B, C, H, W = x_nchw.shape
    (w1, b1, g1, be1, w2, b2, g2, be2) = params
    n = B * H * W
    WC = W * C
    Bt = _pick_bt(B, H, W, C)

    # Layout plumbing: NCHW -> lane-dense (B*H, W*C).  In a full network this
    # conversion would be hoisted to the network boundary so consecutive
    # ResBlocks stay in the lane-dense layout (review item).
    x_l = jnp.transpose(x_nchw, (0, 2, 3, 1)).reshape(B * H, WC)

    w1t, w2t = _pack_toeplitz(w1, W, C), _pack_toeplitz(w2, W, C)
    b1_wc = jnp.tile(b1.reshape(1, C), (1, W))
    b2_wc = jnp.tile(b2.reshape(1, C), (1, W))
    ones_wc = jnp.ones((1, WC), jnp.float32)
    zeros_wc = jnp.zeros((1, WC), jnp.float32)

    # conv1 (+ BN1 statistics)
    y1, s1, q1 = _conv_call(x_l, w1t, b1_wc, ones_wc, zeros_wc,
                            B=B, C=C, H=H, W=W, Bt=Bt, apply_bn_relu=False)
    scale1, shift1 = _bn_affine(s1, q1, g1, be1, n, W, C)

    # BN1 + ReLU + conv2 (+ BN2 statistics), fused in one kernel
    y2, s2, q2 = _conv_call(y1, w2t, b2_wc,
                            jnp.tile(scale1, (1, W)), jnp.tile(shift1, (1, W)),
                            B=B, C=C, H=H, W=W, Bt=Bt, apply_bn_relu=True)
    scale2, shift2 = _bn_affine(s2, q2, g2, be2, n, W, C)

    # BN2 + residual + ReLU, lane-dense
    out_l = _finalize_call(y2, x_l,
                           jnp.tile(scale2, (1, W)), jnp.tile(shift2, (1, W)),
                           B=B, H=H, W=W, C=C, Bt=Bt)

    out = out_l.reshape(B, H, W, C)
    return jnp.transpose(out, (0, 3, 1, 2))
    # TODO(synk): BatchNorm running_mean/running_var buffer updates (training
    # side-effect on module state, not part of the returned tensor) omitted;
    # PyTorch would update running_var with the *unbiased* estimator.


# ---- pure-JAX reference (NCHW, mirrors the PyTorch module) ----------------
def resblock_ref(x, params):
    (w1, b1, g1, be1, w2, b2, g2, be2) = params

    def conv(x, w, b):
        y = lax.conv_general_dilated(
            x, w, window_strides=(1, 1), padding=((1, 1), (1, 1)),
            dimension_numbers=("NCHW", "OIHW", "NCHW"),
            precision=lax.Precision.HIGHEST)
        return y + b[None, :, None, None]

    def bn(y, g, be):
        mean = jnp.mean(y, axis=(0, 2, 3), keepdims=True)
        var = jnp.mean((y - mean) ** 2, axis=(0, 2, 3), keepdims=True)
        return ((y - mean) * lax.rsqrt(var + EPS)
                * g[None, :, None, None] + be[None, :, None, None])

    r = x
    y = jax.nn.relu(bn(conv(x, w1, b1), g1, be1))
    y = bn(conv(y, w2, b2), g2, be2)
    return jax.nn.relu(y + r)


if __name__ == "__main__":
    B, C, H, W = 16, 32, 8, 8   # chess-like 8x8 board, 32 channels
    key = jax.random.PRNGKey(0)
    kx, kw1, kb1, kw2, kb2 = jax.random.split(key, 5)

    x = jax.random.normal(kx, (B, C, H, W), jnp.float32)

    wscale = 1.0 / np.sqrt(C * 9)
    w1 = jax.random.normal(kw1, (C, C, 3, 3), jnp.float32) * wscale
    b1 = jax.random.normal(kb1, (C,), jnp.float32) * 0.1
    w2 = jax.random.normal(kw2, (C, C, 3, 3), jnp.float32) * wscale
    b2 = jax.random.normal(kb2, (C,), jnp.float32) * 0.1
    # BatchNorm affine params: PyTorch defaults (gamma=1, beta=0)
    g1 = jnp.ones((C,), jnp.float32)
    be1 = jnp.zeros((C,), jnp.float32)
    g2 = jnp.ones((C,), jnp.float32)
    be2 = jnp.zeros((C,), jnp.float32)

    params = (w1, b1, g1, be1, w2, b2, g2, be2)

    fwd = jax.jit(resblock_pallas)
    out = jax.block_until_ready(fwd(x, params))

    ref = jax.block_until_ready(resblock_ref(x, params))
    np.testing.assert_allclose(np.asarray(out), np.asarray(ref),
                               rtol=1e-3, atol=1e-3)

    print("KERNEL_OK")
</pallas_src>

<mosaic_0001>
module attributes {stable_mosaic.version = 11 : i64} {
  func.func @_conv_kernel(%arg0: i32, %arg1: memref<64x256xf32, #tpu.memory_space<vmem>>, %arg2: memref<3x256x256xf32, #tpu.memory_space<vmem>>, %arg3: memref<1x256xf32, #tpu.memory_space<vmem>>, %arg4: memref<1x256xf32, #tpu.memory_space<vmem>>, %arg5: memref<1x256xf32, #tpu.memory_space<vmem>>, %arg6: memref<64x256xf32, #tpu.memory_space<vmem>>, %arg7: memref<1x1x256xf32, #tpu.memory_space<vmem>>, %arg8: memref<1x1x256xf32, #tpu.memory_space<vmem>>, %arg9: memref<8x10x256xf32, #tpu.memory_space<vmem>>) attributes {dimension_semantics = [#tpu.dimension_semantics<parallel>], iteration_bounds = array<i64: 2>, scalar_prefetch = 0 : i64, scratch_operands = 1 : i64, tpu.core_type = #tpu.core_type<tc>, window_params = [{transform_indices = @transform_0, window_bounds = array<i64: 64, 256>}, {pipeline_mode = #tpu.pipeline_mode<synchronous>, transform_indices = @transform_1, window_bounds = array<i64: 3, 256, 256>}, {pipeline_mode = #tpu.pipeline_mode<synchronous>, transform_indices = @transform_2, window_bounds = array<i64: 1, 256>}, {pipeline_mode = #tpu.pipeline_mode<synchronous>, transform_indices = @transform_3, window_bounds = array<i64: 1, 256>}, {pipeline_mode = #tpu.pipeline_mode<synchronous>, transform_indices = @transform_4, window_bounds = array<i64: 1, 256>}, {transform_indices = @transform_5, window_bounds = array<i64: 64, 256>}, {transform_indices = @transform_6, window_bounds = array<i64: 1, 1, 256>}, {transform_indices = @transform_7, window_bounds = array<i64: 1, 1, 256>}]} {
    %c0 = arith.constant 0 : index
    %c0_0 = arith.constant 0 : index
    %0 = vector.load %arg1[%c0, %c0_0] : memref<64x256xf32, #tpu.memory_space<vmem>>, vector<64x256xf32>
    %cst = arith.constant 0.000000e+00 : f32
    %1 = vector.broadcast %cst : f32 to vector<8x1x256xf32>
    %c0_1 = arith.constant 0 : index
    %c0_2 = arith.constant 0 : index
    %c0_3 = arith.constant 0 : index
    %2 = vector.load %arg9[%c0_1, %c0_2, %c0_3] : memref<8x10x256xf32, #tpu.memory_space<vmem>>, vector<8x1x256xf32>
    tpu.vector_store %arg9[%c0_1, %c0_2, %c0_3], %1 {strides = array<i32>} : memref<8x10x256xf32, #tpu.memory_space<vmem>>, vector<8x1x256xf32>,
    %c0_4 = arith.constant 0 : index
    %c9 = arith.constant 9 : index
    %c0_5 = arith.constant 0 : index
    %3 = vector.load %arg9[%c0_4, %c9, %c0_5] : memref<8x10x256xf32, #tpu.memory_space<vmem>>, vector<8x1x256xf32>
    tpu.vector_store %arg9[%c0_4, %c9, %c0_5], %1 {strides = array<i32>} : memref<8x10x256xf32, #tpu.memory_space<vmem>>, vector<8x1x256xf32>,
    %4 = vector.shape_cast %0 : vector<64x256xf32> to vector<8x8x256xf32>
    %c0_6 = arith.constant 0 : index
    %c1 = arith.constant 1 : index
    %c0_7 = arith.constant 0 : index
    %5 = vector.load %arg9[%c0_6, %c1, %c0_7] : memref<8x10x256xf32, #tpu.memory_space<vmem>>, vector<8x8x256xf32>
    tpu.vector_store %arg9[%c0_6, %c1, %c0_7], %4 {strides = array<i32>} : memref<8x10x256xf32, #tpu.memory_space<vmem>>, vector<8x8x256xf32>,
    %c0_8 = arith.constant 0 : index
    %c0_9 = arith.constant 0 : index
    %c0_10 = arith.constant 0 : index
    %6 = vector.load %arg9[%c0_8, %c0_9, %c0_10] : memref<8x10x256xf32, #tpu.memory_space<vmem>>, vector<8x8x256xf32>
    %7 = vector.shape_cast %6 : vector<8x8x256xf32> to vector<64x256xf32>
    %c0_11 = arith.constant 0 : index
    %c0_12 = arith.constant 0 : index
    %c0_13 = arith.constant 0 : index
    %8 = vector.load %arg2[%c0_11, %c0_12, %c0_13] : memref<3x256x256xf32, #tpu.memory_space<vmem>>, vector<1x256x256xf32>
    %9 = vector.shape_cast %8 : vector<1x256x256xf32> to vector<256x256xf32>
    %cst_14 = arith.constant dense<0.000000e+00> : vector<64x256xf32>
    %10 = tpu.matmul %7, %9, %cst_14 {dimension_numbers = #tpu.dot_dimension_numbers<[1], [0], [0], [1], [0, 0, 1, 1], [], []>} : vector<64x256xf32>, vector<256x256xf32>, vector<64x256xf32> -> vector<64x256xf32>
    %c0_15 = arith.constant 0 : index
    %c1_16 = arith.constant 1 : index
    %c0_17 = arith.constant 0 : index
    %11 = vector.load %arg9[%c0_15, %c1_16, %c0_17] : memref<8x10x256xf32, #tpu.memory_space<vmem>>, vector<8x8x256xf32>
    %12 = vector.shape_cast %11 : vector<8x8x256xf32> to vector<64x256xf32>
    %c1_18 = arith.constant 1 : index
    %c0_19 = arith.constant 0 : index
    %c0_20 = arith.constant 0 : index
    %13 = vector.load %arg2[%c1_18, %c0_19, %c0_20] : memref<3x256x256xf32, #tpu.memory_space<vmem>>, vector<1x256x256xf32>
    %14 = vector.shape_cast %13 : vector<1x256x256xf32> to vector<256x256xf32>
    %cst_21 = arith.constant dense<0.000000e+00> : vector<64x256xf32>
    %15 = tpu.matmul %12, %14, %cst_21 {dimension_numbers = #tpu.dot_dimension_numbers<[1], [0], [0], [1], [0, 0, 1, 1], [], []>} : vector<64x256xf32>, vector<256x256xf32>, vector<64x256xf32> -> vector<64x256xf32>
    %16 = arith.addf %10, %15 : vector<64x256xf32>
    %c0_22 = arith.constant 0 : index
    %c2 = arith.constant 2 : index
    %c0_23 = arith.constant 0 : index
    %17 = vector.load %arg9[%c0_22, %c2, %c0_23] : memref<8x10x256xf32, #tpu.memory_space<vmem>>, vector<8x8x256xf32>
    %18 = vector.shape_cast %17 : vector<8x8x256xf32> to vector<64x256xf32>
    %c2_24 = arith.constant 2 : index
    %c0_25 = arith.constant 0 : index
    %c0_26 = arith.constant 0 : index
    %19 = vector.load %arg2[%c2_24, %c0_25, %c0_26] : memref<3x256x256xf32, #tpu.memory_space<vmem>>, vector<1x256x256xf32>
    %20 = vector.shape_cast %19 : vector<1x256x256xf32> to vector<256x256xf32>
    %cst_27 = arith.constant dense<0.000000e+00> : vector<64x256xf32>
    %21 = tpu.matmul %18, %20, %cst_27 {dimension_numbers = #tpu.dot_dimension_numbers<[1], [0], [0], [1], [0, 0, 1, 1], [], []>} : vector<64x256xf32>, vector<256x256xf32>, vector<64x256xf32> -> vector<64x256xf32>
    %22 = arith.addf %16, %21 : vector<64x256xf32>
    %c0_28 = arith.constant 0 : index
    %c0_29 = arith.constant 0 : index
    %23 = vector.load %arg3[%c0_28, %c0_29] : memref<1x256xf32, #tpu.memory_space<vmem>>, vector<1x256xf32>
    %24 = vector.broadcast %23 : vector<1x256xf32> to vector<64x256xf32>
    %25 = arith.addf %22, %24 : vector<64x256xf32>
    %c0_30 = arith.constant 0 : index
    %c0_31 = arith.constant 0 : index
    %26 = vector.load %arg6[%c0_30, %c0_31] : memref<64x256xf32, #tpu.memory_space<vmem>>, vector<64x256xf32>
    tpu.vector_store %arg6[%c0_30, %c0_31], %25 {strides = array<i32>} : memref<64x256xf32, #tpu.memory_space<vmem>>, vector<64x256xf32>,
    %cst_32 = arith.constant dense<0.000000e+00> : vector<256xf32>
    %27 = vector.multi_reduction <add>, %25, %cst_32 [0] : vector<64x256xf32> to vector<256xf32>
    %28 = vector.shape_cast %27 : vector<256xf32> to vector<1x256xf32>
    %c0_33 = arith.constant 0 : index
    %c0_34 = arith.constant 0 : index
    %c0_35 = arith.constant 0 : index
    %29 = vector.load %arg7[%c0_33, %c0_34, %c0_35] : memref<1x1x256xf32, #tpu.memory_space<vmem>>, vector<1x1x256xf32>
    %30 = vector.shape_cast %29 : vector<1x1x256xf32> to vector<1x256xf32>
    %31 = vector.shape_cast %28 : vector<1x256xf32> to vector<1x1x256xf32>
    tpu.vector_store %arg7[%c0_33, %c0_34, %c0_35], %31 {strides = array<i32>} : memref<1x1x256xf32, #tpu.memory_space<vmem>>, vector<1x1x256xf32>,
    %32 = arith.mulf %25, %25 : vector<64x256xf32>
    %cst_36 = arith.constant dense<0.000000e+00> : vector<256xf32>
    %33 = vector.multi_reduction <add>, %32, %cst_36 [0] : vector<64x256xf32> to vector<256xf32>
    %34 = vector.shape_cast %33 : vector<256xf32> to vector<1x256xf32>
    %c0_37 = arith.constant 0 : index
    %c0_38 = arith.constant 0 : index
    %c0_39 = arith.constant 0 : index
    %35 = vector.load %arg8[%c0_37, %c0_38, %c0_39] : memref<1x1x256xf32, #tpu.memory_space<vmem>>, vector<1x1x256xf32>
    %36 = vector.shape_cast %35 : vector<1x1x256xf32> to vector<1x256xf32>
    %37 = vector.shape_cast %34 : vector<1x256xf32> to vector<1x1x256xf32>
    tpu.vector_store %arg8[%c0_37, %c0_38, %c0_39], %37 {strides = array<i32>} : memref<1x1x256xf32, #tpu.memory_space<vmem>>, vector<1x1x256xf32>,
    return
  }
  func.func @transform_0(%arg0: i32) -> (i32, i32) {
    %c0_i32 = arith.constant 0 : i32
    %c0_i32_0 = arith.constant 0 : i32
    return %arg0, %c0_i32 : i32, i32
  }
  func.func @transform_1(%arg0: i32) -> (i32, i32, i32) {
    %c0_i32 = arith.constant 0 : i32
    %c0_i32_0 = arith.constant 0 : i32
    %c0_i32_1 = arith.constant 0 : i32
    %c0_i32_2 = arith.constant 0 : i32
    return %c0_i32, %c0_i32_0, %c0_i32_1 : i32, i32, i32
  }
  func.func @transform_2(%arg0: i32) -> (i32, i32) {
    %c0_i32 = arith.constant 0 : i32
    %c0_i32_0 = arith.constant 0 : i32
    %c0_i32_1 = arith.constant 0 : i32
    return %c0_i32, %c0_i32_0 : i32, i32
  }
  func.func @transform_3(%arg0: i32) -> (i32, i32) {
    %c0_i32 = arith.constant 0 : i32
    %c0_i32_0 = arith.constant 0 : i32
    %c0_i32_1 = arith.constant 0 : i32
    return %c0_i32, %c0_i32_0 : i32, i32
  }
  func.func @transform_4(%arg0: i32) -> (i32, i32) {
    %c0_i32 = arith.constant 0 : i32
    %c0_i32_0 = arith.constant 0 : i32
    %c0_i32_1 = arith.constant 0 : i32
    return %c0_i32, %c0_i32_0 : i32, i32
  }
  func.func @transform_5(%arg0: i32) -> (i32, i32) {
    %c0_i32 = arith.constant 0 : i32
    %c0_i32_0 = arith.constant 0 : i32
    return %arg0, %c0_i32 : i32, i32
  }
  func.func @transform_6(%arg0: i32) -> (i32, i32, i32) {
    %c0_i32 = arith.constant 0 : i32
    %c0_i32_0 = arith.constant 0 : i32
    %c0_i32_1 = arith.constant 0 : i32
    return %arg0, %c0_i32, %c0_i32_0 : i32, i32, i32
  }
  func.func @transform_7(%arg0: i32) -> (i32, i32, i32) {
    %c0_i32 = arith.constant 0 : i32
    %c0_i32_0 = arith.constant 0 : i32
    %c0_i32_1 = arith.constant 0 : i32
    return %arg0, %c0_i32, %c0_i32_0 : i32, i32, i32
  }
}

module attributes {stable_mosaic.version = 11 : i64} {
  func.func @_conv_kernel(%arg0: i32, %arg1: memref<64x256xf32, #tpu.memory_space<vmem>>, %arg2: memref<3x256x256xf32, #tpu.memory_space<vmem>>, %arg3: memref<1x256xf32, #tpu.memory_space<vmem>>, %arg4: memref<1x256xf32, #tpu.memory_space<vmem>>, %arg5: memref<1x256xf32, #tpu.memory_space<vmem>>, %arg6: memref<64x256xf32, #tpu.memory_space<vmem>>, %arg7: memref<1x1x256xf32, #tpu.memory_space<vmem>>, %arg8: memref<1x1x256xf32, #tpu.memory_space<vmem>>, %arg9: memref<8x10x256xf32, #tpu.memory_space<vmem>>) attributes {dimension_semantics = [#tpu.dimension_semantics<parallel>], iteration_bounds = array<i64: 2>, scalar_prefetch = 0 : i64, scratch_operands = 1 : i64, tpu.core_type = #tpu.core_type<tc>, window_params = [{transform_indices = @transform_0, window_bounds = array<i64: 64, 256>}, {pipeline_mode = #tpu.pipeline_mode<synchronous>, transform_indices = @transform_1, window_bounds = array<i64: 3, 256, 256>}, {pipeline_mode = #tpu.pipeline_mode<synchronous>, transform_indices = @transform_2, window_bounds = array<i64: 1, 256>}, {pipeline_mode = #tpu.pipeline_mode<synchronous>, transform_indices = @transform_3, window_bounds = array<i64: 1, 256>}, {pipeline_mode = #tpu.pipeline_mode<synchronous>, transform_indices = @transform_4, window_bounds = array<i64: 1, 256>}, {transform_indices = @transform_5, window_bounds = array<i64: 64, 256>}, {transform_indices = @transform_6, window_bounds = array<i64: 1, 1, 256>}, {transform_indices = @transform_7, window_bounds = array<i64: 1, 1, 256>}]} {
    %c0 = arith.constant 0 : index
    %c0_0 = arith.constant 0 : index
    %0 = vector.load %arg1[%c0, %c0_0] : memref<64x256xf32, #tpu.memory_space<vmem>>, vector<64x256xf32>
    %c0_1 = arith.constant 0 : index
    %c0_2 = arith.constant 0 : index
    %1 = vector.load %arg4[%c0_1, %c0_2] : memref<1x256xf32, #tpu.memory_space<vmem>>, vector<1x256xf32>
    %2 = vector.broadcast %1 : vector<1x256xf32> to vector<64x256xf32>
    %3 = arith.mulf %0, %2 : vector<64x256xf32>
    %c0_3 = arith.constant 0 : index
    %c0_4 = arith.constant 0 : index
    %4 = vector.load %arg5[%c0_3, %c0_4] : memref<1x256xf32, #tpu.memory_space<vmem>>, vector<1x256xf32>
    %5 = vector.broadcast %4 : vector<1x256xf32> to vector<64x256xf32>
    %6 = arith.addf %3, %5 : vector<64x256xf32>
    %cst = arith.constant 0.000000e+00 : f32
    %7 = vector.broadcast %cst : f32 to vector<64x256xf32>
    %8 = arith.maximumf %6, %7 : vector<64x256xf32>
    %cst_5 = arith.constant 0.000000e+00 : f32
    %9 = vector.broadcast %cst_5 : f32 to vector<8x1x256xf32>
    %c0_6 = arith.constant 0 : index
    %c0_7 = arith.constant 0 : index
    %c0_8 = arith.constant 0 : index
    %10 = vector.load %arg9[%c0_6, %c0_7, %c0_8] : memref<8x10x256xf32, #tpu.memory_space<vmem>>, vector<8x1x256xf32>
    tpu.vector_store %arg9[%c0_6, %c0_7, %c0_8], %9 {strides = array<i32>} : memref<8x10x256xf32, #tpu.memory_space<vmem>>, vector<8x1x256xf32>,
    %c0_9 = arith.constant 0 : index
    %c9 = arith.constant 9 : index
    %c0_10 = arith.constant 0 : index
    %11 = vector.load %arg9[%c0_9, %c9, %c0_10] : memref<8x10x256xf32, #tpu.memory_space<vmem>>, vector<8x1x256xf32>
    tpu.vector_store %arg9[%c0_9, %c9, %c0_10], %9 {strides = array<i32>} : memref<8x10x256xf32, #tpu.memory_space<vmem>>, vector<8x1x256xf32>,
    %12 = vector.shape_cast %8 : vector<64x256xf32> to vector<8x8x256xf32>
    %c0_11 = arith.constant 0 : index
    %c1 = arith.constant 1 : index
    %c0_12 = arith.constant 0 : index
    %13 = vector.load %arg9[%c0_11, %c1, %c0_12] : memref<8x10x256xf32, #tpu.memory_space<vmem>>, vector<8x8x256xf32>
    tpu.vector_store %arg9[%c0_11, %c1, %c0_12], %12 {strides = array<i32>} : memref<8x10x256xf32, #tpu.memory_space<vmem>>, vector<8x8x256xf32>,
    %c0_13 = arith.constant 0 : index
    %c0_14 = arith.constant 0 : index
    %c0_15 = arith.constant 0 : index
    %14 = vector.load %arg9[%c0_13, %c0_14, %c0_15] : memref<8x10x256xf32, #tpu.memory_space<vmem>>, vector<8x8x256xf32>
    %15 = vector.shape_cast %14 : vector<8x8x256xf32> to vector<64x256xf32>
    %c0_16 = arith.constant 0 : index
    %c0_17 = arith.constant 0 : index
    %c0_18 = arith.constant 0 : index
    %16 = vector.load %arg2[%c0_16, %c0_17, %c0_18] : memref<3x256x256xf32, #tpu.memory_space<vmem>>, vector<1x256x256xf32>
    %17 = vector.shape_cast %16 : vector<1x256x256xf32> to vector<256x256xf32>
    %cst_19 = arith.constant dense<0.000000e+00> : vector<64x256xf32>
    %18 = tpu.matmul %15, %17, %cst_19 {dimension_numbers = #tpu.dot_dimension_numbers<[1], [0], [0], [1], [0, 0, 1, 1], [], []>} : vector<64x256xf32>, vector<256x256xf32>, vector<64x256xf32> -> vector<64x256xf32>
    %c0_20 = arith.constant 0 : index
    %c1_21 = arith.constant 1 : index
    %c0_22 = arith.constant 0 : index
    %19 = vector.load %arg9[%c0_20, %c1_21, %c0_22] : memref<8x10x256xf32, #tpu.memory_space<vmem>>, vector<8x8x256xf32>
    %20 = vector.shape_cast %19 : vector<8x8x256xf32> to vector<64x256xf32>
    %c1_23 = arith.constant 1 : index
    %c0_24 = arith.constant 0 : index
    %c0_25 = arith.constant 0 : index
    %21 = vector.load %arg2[%c1_23, %c0_24, %c0_25] : memref<3x256x256xf32, #tpu.memory_space<vmem>>, vector<1x256x256xf32>
    %22 = vector.shape_cast %21 : vector<1x256x256xf32> to vector<256x256xf32>
    %cst_26 = arith.constant dense<0.000000e+00> : vector<64x256xf32>
    %23 = tpu.matmul %20, %22, %cst_26 {dimension_numbers = #tpu.dot_dimension_numbers<[1], [0], [0], [1], [0, 0, 1, 1], [], []>} : vector<64x256xf32>, vector<256x256xf32>, vector<64x256xf32> -> vector<64x256xf32>
    %24 = arith.addf %18, %23 : vector<64x256xf32>
    %c0_27 = arith.constant 0 : index
    %c2 = arith.constant 2 : index
    %c0_28 = arith.constant 0 : index
    %25 = vector.load %arg9[%c0_27, %c2, %c0_28] : memref<8x10x256xf32, #tpu.memory_space<vmem>>, vector<8x8x256xf32>
    %26 = vector.shape_cast %25 : vector<8x8x256xf32> to vector<64x256xf32>
    %c2_29 = arith.constant 2 : index
    %c0_30 = arith.constant 0 : index
    %c0_31 = arith.constant 0 : index
    %27 = vector.load %arg2[%c2_29, %c0_30, %c0_31] : memref<3x256x256xf32, #tpu.memory_space<vmem>>, vector<1x256x256xf32>
    %28 = vector.shape_cast %27 : vector<1x256x256xf32> to vector<256x256xf32>
    %cst_32 = arith.constant dense<0.000000e+00> : vector<64x256xf32>
    %29 = tpu.matmul %26, %28, %cst_32 {dimension_numbers = #tpu.dot_dimension_numbers<[1], [0], [0], [1], [0, 0, 1, 1], [], []>} : vector<64x256xf32>, vector<256x256xf32>, vector<64x256xf32> -> vector<64x256xf32>
    %30 = arith.addf %24, %29 : vector<64x256xf32>
    %c0_33 = arith.constant 0 : index
    %c0_34 = arith.constant 0 : index
    %31 = vector.load %arg3[%c0_33, %c0_34] : memref<1x256xf32, #tpu.memory_space<vmem>>, vector<1x256xf32>
    %32 = vector.broadcast %31 : vector<1x256xf32> to vector<64x256xf32>
    %33 = arith.addf %30, %32 : vector<64x256xf32>
    %c0_35 = arith.constant 0 : index
    %c0_36 = arith.constant 0 : index
    %34 = vector.load %arg6[%c0_35, %c0_36] : memref<64x256xf32, #tpu.memory_space<vmem>>, vector<64x256xf32>
    tpu.vector_store %arg6[%c0_35, %c0_36], %33 {strides = array<i32>} : memref<64x256xf32, #tpu.memory_space<vmem>>, vector<64x256xf32>,
    %cst_37 = arith.constant dense<0.000000e+00> : vector<256xf32>
    %35 = vector.multi_reduction <add>, %33, %cst_37 [0] : vector<64x256xf32> to vector<256xf32>
    %36 = vector.shape_cast %35 : vector<256xf32> to vector<1x256xf32>
    %c0_38 = arith.constant 0 : index
    %c0_39 = arith.constant 0 : index
    %c0_40 = arith.constant 0 : index
    %37 = vector.load %arg7[%c0_38, %c0_39, %c0_40] : memref<1x1x256xf32, #tpu.memory_space<vmem>>, vector<1x1x256xf32>
    %38 = vector.shape_cast %37 : vector<1x1x256xf32> to vector<1x256xf32>
    %39 = vector.shape_cast %36 : vector<1x256xf32> to vector<1x1x256xf32>
    tpu.vector_store %arg7[%c0_38, %c0_39, %c0_40], %39 {strides = array<i32>} : memref<1x1x256xf32, #tpu.memory_space<vmem>>, vector<1x1x256xf32>,
    %40 = arith.mulf %33, %33 : vector<64x256xf32>
    %cst_41 = arith.constant dense<0.000000e+00> : vector<256xf32>
    %41 = vector.multi_reduction <add>, %40, %cst_41 [0] : vector<64x256xf32> to vector<256xf32>
    %42 = vector.shape_cast %41 : vector<256xf32> to vector<1x256xf32>
    %c0_42 = arith.constant 0 : index
    %c0_43 = arith.constant 0 : index
    %c0_44 = arith.constant 0 : index
    %43 = vector.load %arg8[%c0_42, %c0_43, %c0_44] : memref<1x1x256xf32, #tpu.memory_space<vmem>>, vector<1x1x256xf32>
    %44 = vector.shape_cast %43 : vector<1x1x256xf32> to vector<1x256xf32>
    %45 = vector.shape_cast %42 : vector<1x256xf32> to vector<1x1x256xf32>
    tpu.vector_store %arg8[%c0_42, %c0_43, %c0_44], %45 {strides = array<i32>} : memref<1x1x256xf32, #tpu.memory_space<vmem>>, vector<1x1x256xf32>,
    return
  }
  func.func @transform_0(%arg0: i32) -> (i32, i32) {
    %c0_i32 = arith.constant 0 : i32
    %c0_i32_0 = arith.constant 0 : i32
    return %arg0, %c0_i32 : i32, i32
  }
  func.func @transform_1(%arg0: i32) -> (i32, i32, i32) {
    %c0_i32 = arith.constant 0 : i32
    %c0_i32_0 = arith.constant 0 : i32
    %c0_i32_1 = arith.constant 0 : i32
    %c0_i32_2 = arith.constant 0 : i32
    return %c0_i32, %c0_i32_0, %c0_i32_1 : i32, i32, i32
  }
  func.func @transform_2(%arg0: i32) -> (i32, i32) {
    %c0_i32 = arith.constant 0 : i32
    %c0_i32_0 = arith.constant 0 : i32
    %c0_i32_1 = arith.constant 0 : i32
    return %c0_i32, %c0_i32_0 : i32, i32
  }
  func.func @transform_3(%arg0: i32) -> (i32, i32) {
    %c0_i32 = arith.constant 0 : i32
    %c0_i32_0 = arith.constant 0 : i32
    %c0_i32_1 = arith.constant 0 : i32
    return %c0_i32, %c0_i32_0 : i32, i32
  }
  func.func @transform_4(%arg0: i32) -> (i32, i32) {
    %c0_i32 = arith.constant 0 : i32
    %c0_i32_0 = arith.constant 0 : i32
    %c0_i32_1 = arith.constant 0 : i32
    return %c0_i32, %c0_i32_0 : i32, i32
  }
  func.func @transform_5(%arg0: i32) -> (i32, i32) {
    %c0_i32 = arith.constant 0 : i32
    %c0_i32_0 = arith.constant 0 : i32
    return %arg0, %c0_i32 : i32, i32
  }
  func.func @transform_6(%arg0: i32) -> (i32, i32, i32) {
    %c0_i32 = arith.constant 0 : i32
    %c0_i32_0 = arith.constant 0 : i32
    %c0_i32_1 = arith.constant 0 : i32
    return %arg0, %c0_i32, %c0_i32_0 : i32, i32, i32
  }
  func.func @transform_7(%arg0: i32) -> (i32, i32, i32) {
    %c0_i32 = arith.constant 0 : i32
    %c0_i32_0 = arith.constant 0 : i32
    %c0_i32_1 = arith.constant 0 : i32
    return %arg0, %c0_i32, %c0_i32_0 : i32, i32, i32
  }
}

module attributes {stable_mosaic.version = 11 : i64} {
  func.func @_finalize_kernel(%arg0: i32, %arg1: memref<64x256xf32, #tpu.memory_space<vmem>>, %arg2: memref<64x256xf32, #tpu.memory_space<vmem>>, %arg3: memref<1x256xf32, #tpu.memory_space<vmem>>, %arg4: memref<1x256xf32, #tpu.memory_space<vmem>>, %arg5: memref<64x256xf32, #tpu.memory_space<vmem>>) attributes {dimension_semantics = [#tpu.dimension_semantics<parallel>], iteration_bounds = array<i64: 2>, scalar_prefetch = 0 : i64, scratch_operands = 0 : i64, tpu.core_type = #tpu.core_type<tc>, window_params = [{transform_indices = @transform_0, window_bounds = array<i64: 64, 256>}, {transform_indices = @transform_1, window_bounds = array<i64: 64, 256>}, {pipeline_mode = #tpu.pipeline_mode<synchronous>, transform_indices = @transform_2, window_bounds = array<i64: 1, 256>}, {pipeline_mode = #tpu.pipeline_mode<synchronous>, transform_indices = @transform_3, window_bounds = array<i64: 1, 256>}, {transform_indices = @transform_4, window_bounds = array<i64: 64, 256>}]} {
    %c0 = arith.constant 0 : index
    %c0_0 = arith.constant 0 : index
    %0 = vector.load %arg1[%c0, %c0_0] : memref<64x256xf32, #tpu.memory_space<vmem>>, vector<64x256xf32>
    %c0_1 = arith.constant 0 : index
    %c0_2 = arith.constant 0 : index
    %1 = vector.load %arg3[%c0_1, %c0_2] : memref<1x256xf32, #tpu.memory_space<vmem>>, vector<1x256xf32>
    %2 = vector.broadcast %1 : vector<1x256xf32> to vector<64x256xf32>
    %3 = arith.mulf %0, %2 : vector<64x256xf32>
    %c0_3 = arith.constant 0 : index
    %c0_4 = arith.constant 0 : index
    %4 = vector.load %arg4[%c0_3, %c0_4] : memref<1x256xf32, #tpu.memory_space<vmem>>, vector<1x256xf32>
    %5 = vector.broadcast %4 : vector<1x256xf32> to vector<64x256xf32>
    %6 = arith.addf %3, %5 : vector<64x256xf32>
    %c0_5 = arith.constant 0 : index
    %c0_6 = arith.constant 0 : index
    %7 = vector.load %arg2[%c0_5, %c0_6] : memref<64x256xf32, #tpu.memory_space<vmem>>, vector<64x256xf32>
    %8 = arith.addf %6, %7 : vector<64x256xf32>
    %cst = arith.constant 0.000000e+00 : f32
    %9 = vector.broadcast %cst : f32 to vector<64x256xf32>
    %10 = arith.maximumf %8, %9 : vector<64x256xf32>
    %c0_7 = arith.constant 0 : index
    %c0_8 = arith.constant 0 : index
    %11 = vector.load %arg5[%c0_7, %c0_8] : memref<64x256xf32, #tpu.memory_space<vmem>>, vector<64x256xf32>
    tpu.vector_store %arg5[%c0_7, %c0_8], %10 {strides = array<i32>} : memref<64x256xf32, #tpu.memory_space<vmem>>, vector<64x256xf32>,
    return
  }
  func.func @transform_0(%arg0: i32) -> (i32, i32) {
    %c0_i32 = arith.constant 0 : i32
    %c0_i32_0 = arith.constant 0 : i32
    return %arg0, %c0_i32 : i32, i32
  }
  func.func @transform_1(%arg0: i32) -> (i32, i32) {
    %c0_i32 = arith.constant 0 : i32
    %c0_i32_0 = arith.constant 0 : i32
    return %arg0, %c0_i32 : i32, i32
  }
  func.func @transform_2(%arg0: i32) -> (i32, i32) {
    %c0_i32 = arith.constant 0 : i32
    %c0_i32_0 = arith.constant 0 : i32
    %c0_i32_1 = arith.constant 0 : i32
    return %c0_i32, %c0_i32_0 : i32, i32
  }
  func.func @transform_3(%arg0: i32) -> (i32, i32) {
    %c0_i32 = arith.constant 0 : i32
    %c0_i32_0 = arith.constant 0 : i32
    %c0_i32_1 = arith.constant 0 : i32
    return %c0_i32, %c0_i32_0 : i32, i32
  }
  func.func @transform_4(%arg0: i32) -> (i32, i32) {
    %c0_i32 = arith.constant 0 : i32
    %c0_i32_0 = arith.constant 0 : i32
    return %arg0, %c0_i32 : i32, i32
  }
}

</mosaic_0001>

<llo_original>
// kernel: resblock_pallas.5
$region0: #{resblock_pallas.5}
  #allocation0 [shape = 'u32[]', space=smem, size = 0x4, offset = 0x4, fixed_abs, tag = 'smem constant byte address 0x4 - core index']
  #allocation1 [shape = 'u32[144,128]{1,0:T(1,128)}', space=vmem, size = 0x12000, scoped, tag = 'internal scratch']
  %s0 = inlined_call_operand.vmem [shape: f32[128,256], index: 0, kind: input, shape index: {}]
  %s1 = inlined_call_operand.vmem [shape: f32[128,256], index: 1, kind: input, shape index: {}]
  %s2 = inlined_call_operand.vmem [shape: f32[1,256], index: 2, kind: input, shape index: {}]
  %s3 = inlined_call_operand.vmem [shape: f32[1,256], index: 3, kind: input, shape index: {}]
  %s4 = inlined_call_operand.vmem [shape: f32[128,256], index: 4, kind: output, shape index: {}]
  %s5 = sld [smem:[#allocation0]]
  $region49: #{resblock_pallas.5} parent=0
    _
  %s7 = ssub.s32 1, %s5
  %s8 = scalar_select 0, %s7, %s5
  loop: start=0, step=1, limit=4
  $region2: #{resblock_pallas.5} parent=0 // loop_pre_header
    _
  $region3: #{resblock_pallas.5} parent=0 // loop_header
    %s10 = sphi 0, %s14
    %p11 = scmp.ge.s32.totalorder %s10, 4
    %s20 = sphi 0, %s22
    %s23 = sphi 0, %s20
    %s24 = sphi 0, %s23
    %s40 = sphi 0, %s24
    %s46 = sphi 0, %s48
    %s49 = sphi 0, %s46
    %s50 = sphi 0, %s49
    %s66 = sphi 0, %s50
    %s70 = sphi 0, %s70
    %s72 = sphi 0, %s70
    %s73 = sphi 0, %s72
    %s87 = sphi 0, %s73
    %s91 = sphi 0, %s91
    %s93 = sphi 0, %s91
    %s94 = sphi 0, %s93
    %s108 = sphi 0, %s94
    %s114 = sphi 0, %s116
    %s117 = sphi 0, %s114
    %s118 = sphi 0, %s117
    %s134 = sphi 0, %s118
  $region4: #{resblock_pallas.5} parent=0 // loop_header_branch
    %13 = sbr.rel (%p11) target = $region8
  $region5: #{resblock_pallas.5} parent=0 // loop_body
    %s15 = ssub.s32 %s10, 1
    %s16 = ssub.s32 %s10, 2
    %s17 = sadd.s32 %s10, 1
    %s18 = ssub.s32 %s10, %s17
    %p19 = scmp.eq.s32.totalorder %s18, 0
    %s21 = sadd.s32 %s20, 1
    %s22 = scalar_select %p19, %s20, %s21
    %p25 = pneg %p19
    %p26 = scmp.eq.s32.totalorder %s10, 1
    %p27 = por %p25, %p26
    %p28 = scmp.ne.s32.totalorder %s20, %s23
    %p29 = scmp.eq.s32.totalorder %s10, 0
    %p30 = por %p28, %p29
    %p31 = scmp.ne.s32.totalorder %s20, %s23
    %p32 = scmp.eq.s32.totalorder %s15, 1
    %p33 = por %p31, %p32
    %p34 = scmp.ne.s32.totalorder %s23, %s24
    %p35 = scmp.eq.s32.totalorder %s15, 0
    %p36 = por %p34, %p35
    %p37 = scmp.ne.s32.totalorder %s23, %s24
    %p38 = scmp.eq.s32.totalorder %s16, 1
    %p39 = por %p37, %p38
    %p41 = scmp.ne.s32.totalorder %s24, %s40
    %p42 = scmp.eq.s32.totalorder %s16, 0
    %p43 = por %p41, %p42
    %s44 = ssub.s32 %s10, %s17
    %p45 = scmp.eq.s32.totalorder %s44, 0
    %s47 = sadd.s32 %s46, 1
    %s48 = scalar_select %p45, %s46, %s47
    %p51 = pneg %p45
    %p52 = scmp.eq.s32.totalorder %s10, 1
    %p53 = por %p51, %p52
    %p54 = scmp.ne.s32.totalorder %s46, %s49
    %p55 = scmp.eq.s32.totalorder %s10, 0
    %p56 = por %p54, %p55
    %p57 = scmp.ne.s32.totalorder %s46, %s49
    %p58 = scmp.eq.s32.totalorder %s15, 1
    %p59 = por %p57, %p58
    %p60 = scmp.ne.s32.totalorder %s49, %s50
    %p61 = scmp.eq.s32.totalorder %s15, 0
    %p62 = por %p60, %p61
    %p63 = scmp.ne.s32.totalorder %s49, %s50
    %p64 = scmp.eq.s32.totalorder %s16, 1
    %p65 = por %p63, %p64
    %p67 = scmp.ne.s32.totalorder %s50, %s66
    %p68 = scmp.eq.s32.totalorder %s16, 0
    %p69 = por %p67, %p68
    %s71 = sadd.s32 %s70, 1
    %p74 = scmp.eq.s32.totalorder %s10, 1
    %p75 = scmp.ne.s32.totalorder %s70, %s72
    %p76 = scmp.eq.s32.totalorder %s10, 0
    %p77 = por %p75, %p76
    %p78 = scmp.ne.s32.totalorder %s70, %s72
    %p79 = scmp.eq.s32.totalorder %s15, 1
    %p80 = por %p78, %p79
    %p81 = scmp.ne.s32.totalorder %s72, %s73
    %p82 = scmp.eq.s32.totalorder %s15, 0
    %p83 = por %p81, %p82
    %p84 = scmp.ne.s32.totalorder %s72, %s73
    %p85 = scmp.eq.s32.totalorder %s16, 1
    %p86 = por %p84, %p85
    %p88 = scmp.ne.s32.totalorder %s73, %s87
    %p89 = scmp.eq.s32.totalorder %s16, 0
    %p90 = por %p88, %p89
    %s92 = sadd.s32 %s91, 1
    %p95 = scmp.eq.s32.totalorder %s10, 1
    %p96 = scmp.ne.s32.totalorder %s91, %s93
    %p97 = scmp.eq.s32.totalorder %s10, 0
    %p98 = por %p96, %p97
    %p99 = scmp.ne.s32.totalorder %s91, %s93
    %p100 = scmp.eq.s32.totalorder %s15, 1
    %p101 = por %p99, %p100
    %p102 = scmp.ne.s32.totalorder %s93, %s94
    %p103 = scmp.eq.s32.totalorder %s15, 0
    %p104 = por %p102, %p103
    %p105 = scmp.ne.s32.totalorder %s93, %s94
    %p106 = scmp.eq.s32.totalorder %s16, 1
    %p107 = por %p105, %p106
    %p109 = scmp.ne.s32.totalorder %s94, %s108
    %p110 = scmp.eq.s32.totalorder %s16, 0
    %p111 = por %p109, %p110
    %s112 = ssub.s32 %s10, %s17
    %p113 = scmp.eq.s32.totalorder %s112, 0
    %s115 = sadd.s32 %s114, 1
    %s116 = scalar_select %p113, %s114, %s115
    %p119 = pneg %p113
    %p120 = scmp.eq.s32.totalorder %s10, 1
    %p121 = por %p119, %p120
    %p122 = scmp.ne.s32.totalorder %s114, %s117
    %p123 = scmp.eq.s32.totalorder %s10, 0
    %p124 = por %p122, %p123
    %p125 = scmp.ne.s32.totalorder %s114, %s117
    %p126 = scmp.eq.s32.totalorder %s15, 1
    %p127 = por %p125, %p126
    %p128 = scmp.ne.s32.totalorder %s117, %s118
    %p129 = scmp.eq.s32.totalorder %s15, 0
    %p130 = por %p128, %p129
    %p131 = scmp.ne.s32.totalorder %s117, %s118
    %p132 = scmp.eq.s32.totalorder %s16, 1
    %p133 = por %p131, %p132
    %p135 = scmp.ne.s32.totalorder %s118, %s134
    %p136 = scmp.eq.s32.totalorder %s16, 0
    %p137 = por %p135, %p136
    %p138 = scmp.le.s32.totalorder 1, %s10
    %p139 = scmp.lt.s32.totalorder %s10, 3
    %p140 = pnand %p138, %p139
    %p141 = pneg %p140
    // Predicated region
    $region9: #{resblock_pallas.5} parent=5 // pred_check
      _
    $region10: #{resblock_pallas.5} parent=5 // pred_check_branch
      %143 = sbr.rel (%p140) target = $region12
    $region11: #{resblock_pallas.5} parent=5 // pred_region
      %s144 = ssub.s32 %s10, 1
      // Predicated region
      $region13: #{resblock_pallas.5} parent=11 // pred_check
        %p145 = pneg %p83
      $region14: #{resblock_pallas.5} parent=11 // pred_check_branch
        %147 = sbr.rel (%p145) target = $region16
      $region15: #{resblock_pallas.5} parent=11 // pred_region
        _
      $region16: #{resblock_pallas.5} parent=11 // pred_fallthru
        _
      // Predicated region
      $region17: #{resblock_pallas.5} parent=11 // pred_check
        %p148 = pneg %p104
      $region18: #{resblock_pallas.5} parent=11 // pred_check_branch
        %150 = sbr.rel (%p148) target = $region20
      $region19: #{resblock_pallas.5} parent=11 // pred_region
        _
      $region20: #{resblock_pallas.5} parent=11 // pred_fallthru
        _
    $region12: #{resblock_pallas.5} parent=5 // pred_fallthru
      _
    %p151 = scmp.lt.s32.totalorder %s10, 2
    // Predicated region
    $region21: #{resblock_pallas.5} parent=5 // pred_check
      %p152 = pneg %p151
    $region22: #{resblock_pallas.5} parent=5 // pred_check_branch
      %154 = sbr.rel (%p152) target = $region24
    $region23: #{resblock_pallas.5} parent=5 // pred_region
      // Predicated region
      $region25: #{resblock_pallas.5} parent=23 // pred_check
        %p155 = pneg %p30
      $region26: #{resblock_pallas.5} parent=23 // pred_check_branch
        %157 = sbr.rel (%p155) target = $region28
      $region27: #{resblock_pallas.5} parent=23 // pred_region
        %s158 = smul.u32 8, %s10
        %p159 = scmp.lt.s32.totalorder %s158, 15
        %s160 = scalar_select %p159, %s158, 15
        %s161 = smul.addr %s160, 2
        %s162 = smul.addr %s161, 8
        %s163 = scalar_lea.vmem %s0, %s162
        %s164 = smul.u32 8, %s10
      $region28: #{resblock_pallas.5} parent=23 // pred_fallthru
        _
      // Predicated region
      $region29: #{resblock_pallas.5} parent=23 // pred_check
        %p165 = pneg %p56
      $region30: #{resblock_pallas.5} parent=23 // pred_check_branch
        %167 = sbr.rel (%p165) target = $region32
      $region31: #{resblock_pallas.5} parent=23 // pred_region
        %s168 = smul.u32 8, %s10
        %p169 = scmp.lt.s32.totalorder %s168, 15
        %s170 = scalar_select %p169, %s168, 15
        %s171 = smul.addr %s170, 2
        %s172 = smul.addr %s171, 8
        %s173 = scalar_lea.vmem %s1, %s172
        %s174 = smul.u32 8, %s10
      $region32: #{resblock_pallas.5} parent=23 // pred_fallthru
        _
    $region24: #{resblock_pallas.5} parent=5 // pred_fallthru
      _
    %p175 = scmp.le.s32.totalorder 1, %s10
    %p176 = scmp.lt.s32.totalorder %s10, 3
    %p177 = pnand %p175, %p176
    %p178 = pneg %p177
    // Predicated region
    $region33: #{resblock_pallas.5} parent=5 // pred_check
      _
    $region34: #{resblock_pallas.5} parent=5 // pred_check_branch
      %180 = sbr.rel (%p177) target = $region36
    $region35: #{resblock_pallas.5} parent=5 // pred_region
      %s181 = ssub.s32 %s10, 1
      %s182 = smul.u32 8, %s15
      %p183 = scmp.lt.s32.totalorder %s182, 15
      %s184 = scalar_select %p183, %s182, 15
      %s185 = smul.addr %s184, 2
      %s186 = smul.addr %s185, 8
      %s187 = scalar_lea.vmem %s0, %s186
      %p188 = pneg %p36
      %p189 = pneg %p33
      %s190 = smul.u32 8, %s15
      %p191 = scmp.lt.s32.totalorder %s190, 15
      %s192 = scalar_select %p191, %s190, 15
      %s193 = smul.addr %s192, 2
      %s194 = smul.addr %s193, 8
      %s195 = scalar_lea.vmem %s1, %s194
      %p196 = pneg %p62
      %p197 = pneg %p59
      %p198 = pneg %p83
      %p199 = pneg %p80
      %p200 = pneg %p104
      %p201 = pneg %p101
      %p202 = pneg %p130
      %p203 = pneg %p127
      %s204 = smul.u32 8, %s15
      %p205 = scmp.lt.s32.totalorder %s204, 15
      %s206 = scalar_select %p205, %s204, 15
      %s207 = smul.addr %s206, 2
      %s208 = smul.addr %s207, 8
      %s209 = scalar_lea.vmem %s4, %s208
      %s210 = smul.u32 8, %s15
      %p211 = scmp.lt.s32.totalorder %s210, 15
      %s212 = scalar_select %p211, %s210, 15
      %s213 = smul.addr %s212, 2
      %s214 = smul.addr %s213, 8
      %s215 = scalar_lea.vmem %s0, %s214
      %s216 = smul.u32 8, %s15
      %s217 = smul.u32 8, %s15
      %p218 = scmp.lt.s32.totalorder %s217, 15
      %s219 = scalar_select %p218, %s217, 15
      %s220 = smul.addr %s219, 2
      %s221 = smul.addr %s220, 8
      %s222 = scalar_lea.vmem %s1, %s221
      %s223 = smul.u32 8, %s15
      %s224 = smul.u32 8, %s15
      %p225 = scmp.lt.s32.totalorder %s224, 15
      %s226 = scalar_select %p225, %s224, 15
      %s227 = smul.addr %s226, 2
      %s228 = smul.addr %s227, 8
      %s229 = scalar_lea.vmem %s4, %s228
      %s230 = smul.u32 8, %s15
      %v231 = vld [vmem:[%s215] sm:$0xff]
      %v232 = vld [vmem:[%s215 + $0x8] sm:$0xff]
      %v233 = vld [vmem:[%s215 + $0x10] sm:$0xff]
      %v234 = vld [vmem:[%s215 + $0x18] sm:$0xff]
      %v235 = vld [vmem:[%s215 + $0x20] sm:$0xff]
      %v236 = vld [vmem:[%s215 + $0x28] sm:$0xff]
      %v237 = vld [vmem:[%s215 + $0x30] sm:$0xff]
      %v238 = vld [vmem:[%s215 + $0x38] sm:$0xff]
      %v239 = vld [vmem:[%s215 + $0x40] sm:$0xff]
      %v240 = vld [vmem:[%s215 + $0x48] sm:$0xff]
      %v241 = vld [vmem:[%s215 + $0x50] sm:$0xff]
      %v242 = vld [vmem:[%s215 + $0x58] sm:$0xff]
      %v243 = vld [vmem:[%s215 + $0x60] sm:$0xff]
      %v244 = vld [vmem:[%s215 + $0x68] sm:$0xff]
      %v245 = vld [vmem:[%s215 + $0x70] sm:$0xff]
      %v246 = vld [vmem:[%s215 + $0x78] sm:$0xff]
      %v247 = vld [vmem:[%s2] sm:$0x3]
      %v249 = vlaneseq
      %v250 = vshrl.u32 %v249, 7
      %v251 = vsub.s32 0, %v250
      %v252 = vrot.slane %v247, %v251
      %v253 = vlaneseq
      %v254 = vshrl.u32 %v253, 7
      %v255 = vsub.s32 1, %v254
      %v256 = vrot.slane %v247, %v255
      %v259 = vmul.f32 %v231, %v252
      %v260 = vmul.f32 %v232, %v256
      %v261 = vmul.f32 %v233, %v252
      %v262 = vmul.f32 %v234, %v256
      %v263 = vmul.f32 %v235, %v252
      %v264 = vmul.f32 %v236, %v256
      %v265 = vmul.f32 %v237, %v252
      %v266 = vmul.f32 %v238, %v256
      %v267 = vmul.f32 %v239, %v252
      %v268 = vmul.f32 %v240, %v256
      %v269 = vmul.f32 %v241, %v252
      %v270 = vmul.f32 %v242, %v256
      %v271 = vmul.f32 %v243, %v252
      %v272 = vmul.f32 %v244, %v256
      %v273 = vmul.f32 %v245, %v252
      %v274 = vmul.f32 %v246, %v256
      %v275 = vld [vmem:[%s3] sm:$0x3]
      %v277 = vlaneseq
      %v278 = vshrl.u32 %v277, 7
      %v279 = vsub.s32 0, %v278
      %v280 = vrot.slane %v275, %v279
      %v281 = vlaneseq
      %v282 = vshrl.u32 %v281, 7
      %v283 = vsub.s32 1, %v282
      %v284 = vrot.slane %v275, %v283
      %v287 = vadd.f32 %v259, %v280
      %v288 = vadd.f32 %v260, %v284
      %v289 = vadd.f32 %v261, %v280
      %v290 = vadd.f32 %v262, %v284
      %v291 = vadd.f32 %v263, %v280
      %v292 = vadd.f32 %v264, %v284
      %v293 = vadd.f32 %v265, %v280
      %v294 = vadd.f32 %v266, %v284
      %v295 = vadd.f32 %v267, %v280
      %v296 = vadd.f32 %v268, %v284
      %v297 = vadd.f32 %v269, %v280
      %v298 = vadd.f32 %v270, %v284
      %v299 = vadd.f32 %v271, %v280
      %v300 = vadd.f32 %v272, %v284
      %v301 = vadd.f32 %v273, %v280
      %v302 = vadd.f32 %v274, %v284
      %v303 = vld [vmem:[%s222] sm:$0xff]
      %v304 = vld [vmem:[%s222 + $0x8] sm:$0xff]
      %v305 = vld [vmem:[%s222 + $0x10] sm:$0xff]
      %v306 = vld [vmem:[%s222 + $0x18] sm:$0xff]
      %v307 = vld [vmem:[%s222 + $0x20] sm:$0xff]
      %v308 = vld [vmem:[%s222 + $0x28] sm:$0xff]
      %v309 = vld [vmem:[%s222 + $0x30] sm:$0xff]
      %v310 = vld [vmem:[%s222 + $0x38] sm:$0xff]
      %v311 = vld [vmem:[%s222 + $0x40] sm:$0xff]
      %v312 = vld [vmem:[%s222 + $0x48] sm:$0xff]
      %v313 = vld [vmem:[%s222 + $0x50] sm:$0xff]
      %v314 = vld [vmem:[%s222 + $0x58] sm:$0xff]
      %v315 = vld [vmem:[%s222 + $0x60] sm:$0xff]
      %v316 = vld [vmem:[%s222 + $0x68] sm:$0xff]
      %v317 = vld [vmem:[%s222 + $0x70] sm:$0xff]
      %v318 = vld [vmem:[%s222 + $0x78] sm:$0xff]
      %v319 = vadd.f32 %v287, %v303
      %v320 = vadd.f32 %v288, %v304
      %v321 = vadd.f32 %v289, %v305
      %v322 = vadd.f32 %v290, %v306
      %v323 = vadd.f32 %v291, %v307
      %v324 = vadd.f32 %v292, %v308
      %v325 = vadd.f32 %v293, %v309
      %v326 = vadd.f32 %v294, %v310
      %v327 = vadd.f32 %v295, %v311
      %v328 = vadd.f32 %v296, %v312
      %v329 = vadd.f32 %v297, %v313
      %v330 = vadd.f32 %v298, %v314
      %v331 = vadd.f32 %v299, %v315
      %v332 = vadd.f32 %v300, %v316
      %v333 = vadd.f32 %v301, %v317
      %v334 = vadd.f32 %v302, %v318
      %v335 = vmax.f32 %v319, 0.0
      %v336 = vmax.f32 %v320, 0.0
      %v337 = vmax.f32 %v321, 0.0
      %v338 = vmax.f32 %v322, 0.0
      %v339 = vmax.f32 %v323, 0.0
      %v340 = vmax.f32 %v324, 0.0
      %v341 = vmax.f32 %v325, 0.0
      %v342 = vmax.f32 %v326, 0.0
      %v343 = vmax.f32 %v327, 0.0
      %v344 = vmax.f32 %v328, 0.0
      %v345 = vmax.f32 %v329, 0.0
      %v346 = vmax.f32 %v330, 0.0
      %v347 = vmax.f32 %v331, 0.0
      %v348 = vmax.f32 %v332, 0.0
      %v349 = vmax.f32 %v333, 0.0
      %v350 = vmax.f32 %v334, 0.0
      %351 = vst [vmem:[%s229] sm:$0xff] %v335
      %352 = vst [vmem:[%s229 + $0x8] sm:$0xff] %v336
      %353 = vst [vmem:[%s229 + $0x10] sm:$0xff] %v337
      %354 = vst [vmem:[%s229 + $0x18] sm:$0xff] %v338
      %355 = vst [vmem:[%s229 + $0x20] sm:$0xff] %v339
      %356 = vst [vmem:[%s229 + $0x28] sm:$0xff] %v340
      %357 = vst [vmem:[%s229 + $0x30] sm:$0xff] %v341
      %358 = vst [vmem:[%s229 + $0x38] sm:$0xff] %v342
      %359 = vst [vmem:[%s229 + $0x40] sm:$0xff] %v343
      %360 = vst [vmem:[%s229 + $0x48] sm:$0xff] %v344
      %361 = vst [vmem:[%s229 + $0x50] sm:$0xff] %v345
      %362 = vst [vmem:[%s229 + $0x58] sm:$0xff] %v346
      %363 = vst [vmem:[%s229 + $0x60] sm:$0xff] %v347
      %364 = vst [vmem:[%s229 + $0x68] sm:$0xff] %v348
      %365 = vst [vmem:[%s229 + $0x70] sm:$0xff] %v349
      %366 = vst [vmem:[%s229 + $0x78] sm:$0xff] %v350
      %s367 = smul.u32 8, %s15
      %p368 = scmp.lt.s32.totalorder %s367, 15
      %s369 = scalar_select %p368, %s367, 15
      %s370 = smul.addr %s369, 2
      %s371 = smul.addr %s370, 8
      %s372 = scalar_lea.vmem %s4, %s371
      // Predicated region
      $region37: #{resblock_pallas.5} parent=35 // pred_check
        %p373 = pneg %p127
      $region38: #{resblock_pallas.5} parent=35 // pred_check_branch
        %375 = sbr.rel (%p373) target = $region40
      $region39: #{resblock_pallas.5} parent=35 // pred_region
        %s376 = smul.u32 8, %s15
      $region40: #{resblock_pallas.5} parent=35 // pred_fallthru
        _
    $region36: #{resblock_pallas.5} parent=5 // pred_fallthru
      _
    %p377 = scmp.le.s32.totalorder 2, %s10
    // Predicated region
    $region41: #{resblock_pallas.5} parent=5 // pred_check
      %p378 = pneg %p377
    $region42: #{resblock_pallas.5} parent=5 // pred_check_branch
      %380 = sbr.rel (%p378) target = $region44
    $region43: #{resblock_pallas.5} parent=5 // pred_region
      %s381 = ssub.s32 %s10, 2
      // Predicated region
      $region45: #{resblock_pallas.5} parent=43 // pred_check
        %p382 = pneg %p133
      $region46: #{resblock_pallas.5} parent=43 // pred_check_branch
        %384 = sbr.rel (%p382) target = $region48
      $region47: #{resblock_pallas.5} parent=43 // pred_region
        %s385 = smul.u32 8, %s16
        %p386 = scmp.lt.s32.totalorder %s385, 15
        %s387 = scalar_select %p386, %s385, 15
        %s388 = smul.addr %s387, 2
        %s389 = smul.addr %s388, 8
        %s390 = scalar_lea.vmem %s4, %s389
      $region48: #{resblock_pallas.5} parent=43 // pred_fallthru
        _
    $region44: #{resblock_pallas.5} parent=5 // pred_fallthru
      _
  $region6: #{resblock_pallas.5} parent=0 // loop_footer
    %s14 = sadd.s32 1, %s10
  $region7: #{resblock_pallas.5} parent=0 // loop_footer_branch
    %9 = sbr.rel target = $region3
  $region8: #{resblock_pallas.5} parent=0 // loop_exit
    _

// kernel: resblock_pallas.3
$region0: #{resblock_pallas.3}
  #allocation0 [shape = 'u32[]', space=smem, size = 0x4, offset = 0x4, fixed_abs, tag = 'smem constant byte address 0x4 - core index']
  #allocation1 [shape = 'u32[144,128]{1,0:T(1,128)}', space=vmem, size = 0x12000, scoped, tag = 'internal scratch']
  #allocation2 [shape = 'f32[8,10,256]{2,1,0:T(8,128)}', space=vmem, size = 0x20000, scoped, tag = 'scratch operand']
  %s0 = inlined_call_operand.vmem [shape: f32[128,256], index: 0, kind: input, shape index: {}]
  %s1 = inlined_call_operand.vmem [shape: f32[3,256,256], index: 1, kind: input, shape index: {}]
  %s2 = inlined_call_operand.vmem [shape: f32[1,256], index: 2, kind: input, shape index: {}]
  %s3 = inlined_call_operand.vmem [shape: f32[1,256], index: 3, kind: input, shape index: {}]
  %s4 = inlined_call_operand.vmem [shape: f32[1,256], index: 4, kind: input, shape index: {}]
  %s5 = inlined_call_operand.vmem [shape: f32[128,256], index: 5, kind: output, shape index: {0}]
  %s6 = inlined_call_operand.vmem [shape: f32[2,1,256], index: 6, kind: output, shape index: {1}]
  %s7 = inlined_call_operand.vmem [shape: f32[2,1,256], index: 7, kind: output, shape index: {2}]
  %8 = xla_tuple %s5, %s6, %s7
  %s9 = sld [smem:[#allocation0]]
  $region69: #{resblock_pallas.3} parent=0
    _
  %s11 = ssub.s32 1, %s9
  %s12 = scalar_select 0, %s11, %s9
  loop: start=0, step=1, limit=4
  $region2: #{resblock_pallas.3} parent=0 // loop_pre_header
    _
  $region3: #{resblock_pallas.3} parent=0 // loop_header
    %s14 = sphi 0, %s18
    %p15 = scmp.ge.s32.totalorder %s14, 4
    %s24 = sphi 0, %s26
    %s27 = sphi 0, %s24
    %s28 = sphi 0, %s27
    %s44 = sphi 0, %s28
    %s48 = sphi 0, %s48
    %s50 = sphi 0, %s48
    %s51 = sphi 0, %s50
    %s65 = sphi 0, %s51
    %s69 = sphi 0, %s69
    %s71 = sphi 0, %s69
    %s72 = sphi 0, %s71
    %s86 = sphi 0, %s72
    %s90 = sphi 0, %s90
    %s92 = sphi 0, %s90
    %s93 = sphi 0, %s92
    %s107 = sphi 0, %s93
    %s111 = sphi 0, %s111
    %s113 = sphi 0, %s111
    %s114 = sphi 0, %s113
    %s128 = sphi 0, %s114
    %s134 = sphi 0, %s136
    %s137 = sphi 0, %s134
    %s138 = sphi 0, %s137
    %s154 = sphi 0, %s138
    %s160 = sphi 0, %s162
    %s163 = sphi 0, %s160
    %s164 = sphi 0, %s163
    %s180 = sphi 0, %s164
    %s186 = sphi 0, %s188
    %s189 = sphi 0, %s186
    %s190 = sphi 0, %s189
    %s206 = sphi 0, %s190
  $region4: #{resblock_pallas.3} parent=0 // loop_header_branch
    %17 = sbr.rel (%p15) target = $region8
  $region5: #{resblock_pallas.3} parent=0 // loop_body
    %s19 = ssub.s32 %s14, 1
    %s20 = ssub.s32 %s14, 2
    %s21 = sadd.s32 %s14, 1
    %s22 = ssub.s32 %s14, %s21
    %p23 = scmp.eq.s32.totalorder %s22, 0
    %s25 = sadd.s32 %s24, 1
    %s26 = scalar_select %p23, %s24, %s25
    %p29 = pneg %p23
    %p30 = scmp.eq.s32.totalorder %s14, 1
    %p31 = por %p29, %p30
    %p32 = scmp.ne.s32.totalorder %s24, %s27
    %p33 = scmp.eq.s32.totalorder %s14, 0
    %p34 = por %p32, %p33
    %p35 = scmp.ne.s32.totalorder %s24, %s27
    %p36 = scmp.eq.s32.totalorder %s19, 1
    %p37 = por %p35, %p36
    %p38 = scmp.ne.s32.totalorder %s27, %s28
    %p39 = scmp.eq.s32.totalorder %s19, 0
    %p40 = por %p38, %p39
    %p41 = scmp.ne.s32.totalorder %s27, %s28
    %p42 = scmp.eq.s32.totalorder %s20, 1
    %p43 = por %p41, %p42
    %p45 = scmp.ne.s32.totalorder %s28, %s44
    %p46 = scmp.eq.s32.totalorder %s20, 0
    %p47 = por %p45, %p46
    %s49 = sadd.s32 %s48, 1
    %p52 = scmp.eq.s32.totalorder %s14, 1
    %p53 = scmp.ne.s32.totalorder %s48, %s50
    %p54 = scmp.eq.s32.totalorder %s14, 0
    %p55 = por %p53, %p54
    %p56 = scmp.ne.s32.totalorder %s48, %s50
    %p57 = scmp.eq.s32.totalorder %s19, 1
    %p58 = por %p56, %p57
    %p59 = scmp.ne.s32.totalorder %s50, %s51
    %p60 = scmp.eq.s32.totalorder %s19, 0
    %p61 = por %p59, %p60
    %p62 = scmp.ne.s32.totalorder %s50, %s51
    %p63 = scmp.eq.s32.totalorder %s20, 1
    %p64 = por %p62, %p63
    %p66 = scmp.ne.s32.totalorder %s51, %s65
    %p67 = scmp.eq.s32.totalorder %s20, 0
    %p68 = por %p66, %p67
    %s70 = sadd.s32 %s69, 1
    %p73 = scmp.eq.s32.totalorder %s14, 1
    %p74 = scmp.ne.s32.totalorder %s69, %s71
    %p75 = scmp.eq.s32.totalorder %s14, 0
    %p76 = por %p74, %p75
    %p77 = scmp.ne.s32.totalorder %s69, %s71
    %p78 = scmp.eq.s32.totalorder %s19, 1
    %p79 = por %p77, %p78
    %p80 = scmp.ne.s32.totalorder %s71, %s72
    %p81 = scmp.eq.s32.totalorder %s19, 0
    %p82 = por %p80, %p81
    %p83 = scmp.ne.s32.totalorder %s71, %s72
    %p84 = scmp.eq.s32.totalorder %s20, 1
    %p85 = por %p83, %p84
    %p87 = scmp.ne.s32.totalorder %s72, %s86
    %p88 = scmp.eq.s32.totalorder %s20, 0
    %p89 = por %p87, %p88
    %s91 = sadd.s32 %s90, 1
    %p94 = scmp.eq.s32.totalorder %s14, 1
    %p95 = scmp.ne.s32.totalorder %s90, %s92
    %p96 = scmp.eq.s32.totalorder %s14, 0
    %p97 = por %p95, %p96
    %p98 = scmp.ne.s32.totalorder %s90, %s92
    %p99 = scmp.eq.s32.totalorder %s19, 1
    %p100 = por %p98, %p99
    %p101 = scmp.ne.s32.totalorder %s92, %s93
    %p102 = scmp.eq.s32.totalorder %s19, 0
    %p103 = por %p101, %p102
    %p104 = scmp.ne.s32.totalorder %s92, %s93
    %p105 = scmp.eq.s32.totalorder %s20, 1
    %p106 = por %p104, %p105
    %p108 = scmp.ne.s32.totalorder %s93, %s107
    %p109 = scmp.eq.s32.totalorder %s20, 0
    %p110 = por %p108, %p109
    %s112 = sadd.s32 %s111, 1
    %p115 = scmp.eq.s32.totalorder %s14, 1
    %p116 = scmp.ne.s32.totalorder %s111, %s113
    %p117 = scmp.eq.s32.totalorder %s14, 0
    %p118 = por %p116, %p117
    %p119 = scmp.ne.s32.totalorder %s111, %s113
    %p120 = scmp.eq.s32.totalorder %s19, 1
    %p121 = por %p119, %p120
    %p122 = scmp.ne.s32.totalorder %s113, %s114
    %p123 = scmp.eq.s32.totalorder %s19, 0
    %p124 = por %p122, %p123
    %p125 = scmp.ne.s32.totalorder %s113, %s114
    %p126 = scmp.eq.s32.totalorder %s20, 1
    %p127 = por %p125, %p126
    %p129 = scmp.ne.s32.totalorder %s114, %s128
    %p130 = scmp.eq.s32.totalorder %s20, 0
    %p131 = por %p129, %p130
    %s132 = ssub.s32 %s14, %s21
    %p133 = scmp.eq.s32.totalorder %s132, 0
    %s135 = sadd.s32 %s134, 1
    %s136 = scalar_select %p133, %s134, %s135
    %p139 = pneg %p133
    %p140 = scmp.eq.s32.totalorder %s14, 1
    %p141 = por %p139, %p140
    %p142 = scmp.ne.s32.totalorder %s134, %s137
    %p143 = scmp.eq.s32.totalorder %s14, 0
    %p144 = por %p142, %p143
    %p145 = scmp.ne.s32.totalorder %s134, %s137
    %p146 = scmp.eq.s32.totalorder %s19, 1
    %p147 = por %p145, %p146
    %p148 = scmp.ne.s32.totalorder %s137, %s138
    %p149 = scmp.eq.s32.totalorder %s19, 0
    %p150 = por %p148, %p149
    %p151 = scmp.ne.s32.totalorder %s137, %s138
    %p152 = scmp.eq.s32.totalorder %s20, 1
    %p153 = por %p151, %p152
    %p155 = scmp.ne.s32.totalorder %s138, %s154
    %p156 = scmp.eq.s32.totalorder %s20, 0
    %p157 = por %p155, %p156
    %s158 = ssub.s32 %s14, %s21
    %p159 = scmp.eq.s32.totalorder %s158, 0
    %s161 = sadd.s32 %s160, 1
    %s162 = scalar_select %p159, %s160, %s161
    %p165 = pneg %p159
    %p166 = scmp.eq.s32.totalorder %s14, 1
    %p167 = por %p165, %p166
    %p168 = scmp.ne.s32.totalorder %s160, %s163
    %p169 = scmp.eq.s32.totalorder %s14, 0
    %p170 = por %p168, %p169
    %p171 = scmp.ne.s32.totalorder %s160, %s163
    %p172 = scmp.eq.s32.totalorder %s19, 1
    %p173 = por %p171, %p172
    %p174 = scmp.ne.s32.totalorder %s163, %s164
    %p175 = scmp.eq.s32.totalorder %s19, 0
    %p176 = por %p174, %p175
    %p177 = scmp.ne.s32.totalorder %s163, %s164
    %p178 = scmp.eq.s32.totalorder %s20, 1
    %p179 = por %p177, %p178
    %p181 = scmp.ne.s32.totalorder %s164, %s180
    %p182 = scmp.eq.s32.totalorder %s20, 0
    %p183 = por %p181, %p182
    %s184 = ssub.s32 %s14, %s21
    %p185 = scmp.eq.s32.totalorder %s184, 0
    %s187 = sadd.s32 %s186, 1
    %s188 = scalar_select %p185, %s186, %s187
    %p191 = pneg %p185
    %p192 = scmp.eq.s32.totalorder %s14, 1
    %p193 = por %p191, %p192
    %p194 = scmp.ne.s32.totalorder %s186, %s189
    %p195 = scmp.eq.s32.totalorder %s14, 0
    %p196 = por %p194, %p195
    %p197 = scmp.ne.s32.totalorder %s186, %s189
    %p198 = scmp.eq.s32.totalorder %s19, 1
    %p199 = por %p197, %p198
    %p200 = scmp.ne.s32.totalorder %s189, %s190
    %p201 = scmp.eq.s32.totalorder %s19, 0
    %p202 = por %p200, %p201
    %p203 = scmp.ne.s32.totalorder %s189, %s190
    %p204 = scmp.eq.s32.totalorder %s20, 1
    %p205 = por %p203, %p204
    %p207 = scmp.ne.s32.totalorder %s190, %s206
    %p208 = scmp.eq.s32.totalorder %s20, 0
    %p209 = por %p207, %p208
    %p210 = scmp.le.s32.totalorder 1, %s14
    %p211 = scmp.lt.s32.totalorder %s14, 3
    %p212 = pnand %p210, %p211
    %p213 = pneg %p212
    // Predicated region
    $region9: #{resblock_pallas.3} parent=5 // pred_check
      _
    $region10: #{resblock_pallas.3} parent=5 // pred_check_branch
      %215 = sbr.rel (%p212) target = $region12
    $region11: #{resblock_pallas.3} parent=5 // pred_region
      %s216 = ssub.s32 %s14, 1
      // Predicated region
      $region13: #{resblock_pallas.3} parent=11 // pred_check
        %p217 = pneg %p61
      $region14: #{resblock_pallas.3} parent=11 // pred_check_branch
        %219 = sbr.rel (%p217) target = $region16
      $region15: #{resblock_pallas.3} parent=11 // pred_region
        _
      $region16: #{resblock_pallas.3} parent=11 // pred_fallthru
        _
      // Predicated region
      $region17: #{resblock_pallas.3} parent=11 // pred_check
        %p220 = pneg %p82
      $region18: #{resblock_pallas.3} parent=11 // pred_check_branch
        %222 = sbr.rel (%p220) target = $region20
      $region19: #{resblock_pallas.3} parent=11 // pred_region
        _
      $region20: #{resblock_pallas.3} parent=11 // pred_fallthru
        _
      // Predicated region
      $region21: #{resblock_pallas.3} parent=11 // pred_check
        %p223 = pneg %p103
      $region22: #{resblock_pallas.3} parent=11 // pred_check_branch
        %225 = sbr.rel (%p223) target = $region24
      $region23: #{resblock_pallas.3} parent=11 // pred_region
        _
      $region24: #{resblock_pallas.3} parent=11 // pred_fallthru
        _
      // Predicated region
      $region25: #{resblock_pallas.3} parent=11 // pred_check
        %p226 = pneg %p124
      $region26: #{resblock_pallas.3} parent=11 // pred_check_branch
        %228 = sbr.rel (%p226) target = $region28
      $region27: #{resblock_pallas.3} parent=11 // pred_region
        _
      $region28: #{resblock_pallas.3} parent=11 // pred_fallthru
        _
    $region12: #{resblock_pallas.3} parent=5 // pred_fallthru
      _
    %p229 = scmp.lt.s32.totalorder %s14, 2
    // Predicated region
    $region29: #{resblock_pallas.3} parent=5 // pred_check
      %p230 = pneg %p229
    $region30: #{resblock_pallas.3} parent=5 // pred_check_branch
      %232 = sbr.rel (%p230) target = $region32
    $region31: #{resblock_pallas.3} parent=5 // pred_region
      // Predicated region
      $region33: #{resblock_pallas.3} parent=31 // pred_check
        %p233 = pneg %p34
      $region34: #{resblock_pallas.3} parent=31 // pred_check_branch
        %235 = sbr.rel (%p233) target = $region36
      $region35: #{resblock_pallas.3} parent=31 // pred_region
        %s236 = smul.u32 8, %s14
        %p237 = scmp.lt.s32.totalorder %s236, 15
        %s238 = scalar_select %p237, %s236, 15
        %s239 = smul.addr %s238, 2
        %s240 = smul.addr %s239, 8
        %s241 = scalar_lea.vmem %s0, %s240
        %s242 = smul.u32 8, %s14
      $region36: #{resblock_pallas.3} parent=31 // pred_fallthru
        _
    $region32: #{resblock_pallas.3} parent=5 // pred_fallthru
      _
    %p243 = scmp.le.s32.totalorder 1, %s14
    %p244 = scmp.lt.s32.totalorder %s14, 3
    %p245 = pnand %p243, %p244
    %p246 = pneg %p245
    // Predicated region
    $region37: #{resblock_pallas.3} parent=5 // pred_check
      _
    $region38: #{resblock_pallas.3} parent=5 // pred_check_branch
      %248 = sbr.rel (%p245) target = $region40
    $region39: #{resblock_pallas.3} parent=5 // pred_region
      %s249 = ssub.s32 %s14, 1
      %s250 = smul.u32 8, %s19
      %p251 = scmp.lt.s32.totalorder %s250, 15
      %s252 = scalar_select %p251, %s250, 15
      %s253 = smul.addr %s252, 2
      %s254 = smul.addr %s253, 8
      %s255 = scalar_lea.vmem %s0, %s254
      %p256 = pneg %p40
      %p257 = pneg %p37
      %p258 = pneg %p61
      %p259 = pneg %p58
      %p260 = pneg %p82
      %p261 = pneg %p79
      %p262 = pneg %p103
      %p263 = pneg %p100
      %p264 = pneg %p124
      %p265 = pneg %p121
      %p266 = pneg %p150
      %p267 = pneg %p147
      %s268 = smul.u32 8, %s19
      %p269 = scmp.lt.s32.totalorder %s268, 15
      %s270 = scalar_select %p269, %s268, 15
      %s271 = smul.addr %s270, 2
      %s272 = smul.addr %s271, 8
      %s273 = scalar_lea.vmem %s5, %s272
      %p274 = pneg %p176
      %p275 = pneg %p173
      %p276 = scmp.lt.s32.totalorder %s19, 1
      %s277 = scalar_select %p276, %s19, 1
      %s278 = smul.addr %s277, 2
      %s279 = scalar_lea.vmem %s6, %s278
      %p280 = pneg %p202
      %p281 = pneg %p199
      %p282 = scmp.lt.s32.totalorder %s19, 1
      %s283 = scalar_select %p282, %s19, 1
      %s284 = smul.addr %s283, 2
      %s285 = scalar_lea.vmem %s7, %s284
      %s286 = smul.u32 8, %s19
      %p287 = scmp.lt.s32.totalorder %s286, 15
      %s288 = scalar_select %p287, %s286, 15
      %s289 = smul.addr %s288, 2
      %s290 = smul.addr %s289, 8
      %s291 = scalar_lea.vmem %s0, %s290
      %s292 = smul.u32 8, %s19
      %s293 = smul.u32 8, %s19
      %p294 = scmp.lt.s32.totalorder %s293, 15
      %s295 = scalar_select %p294, %s293, 15
      %s296 = smul.addr %s295, 2
      %s297 = smul.addr %s296, 8
      %s298 = scalar_lea.vmem %s5, %s297
      %s299 = smul.u32 8, %s19
      %p300 = scmp.lt.s32.totalorder %s19, 1
      %s301 = scalar_select %p300, %s19, 1
      %s302 = smul.addr %s301, 2
      %s303 = scalar_lea.vmem %s6, %s302
      %p304 = scmp.lt.s32.totalorder %s19, 1
      %s305 = scalar_select %p304, %s19, 1
      %s306 = smul.addr %s305, 2
      %s307 = scalar_lea.vmem %s7, %s306
      %v308 = vld [vmem:[%s291] sm:$0xff]
      %v309 = vld [vmem:[%s291 + $0x8] sm:$0xff]
      %v310 = vld [vmem:[%s291 + $0x10] sm:$0xff]
      %v311 = vld [vmem:[%s291 + $0x18] sm:$0xff]
      %v312 = vld [vmem:[%s291 + $0x20] sm:$0xff]
      %v313 = vld [vmem:[%s291 + $0x28] sm:$0xff]
      %v314 = vld [vmem:[%s291 + $0x30] sm:$0xff]
      %v315 = vld [vmem:[%s291 + $0x38] sm:$0xff]
      %v316 = vld [vmem:[%s291 + $0x40] sm:$0xff]
      %v317 = vld [vmem:[%s291 + $0x48] sm:$0xff]
      %v318 = vld [vmem:[%s291 + $0x50] sm:$0xff]
      %v319 = vld [vmem:[%s291 + $0x58] sm:$0xff]
      %v320 = vld [vmem:[%s291 + $0x60] sm:$0xff]
      %v321 = vld [vmem:[%s291 + $0x68] sm:$0xff]
      %v322 = vld [vmem:[%s291 + $0x70] sm:$0xff]
      %v323 = vld [vmem:[%s291 + $0x78] sm:$0xff]
      %v324 = vlaneseq
      %vm325 = vcmp.ge.s32.totalorder %v324, 0
      %vm326 = vcmp.lt.s32.totalorder %v324, 256
      %vm327 = vmand %vm325, %vm326
      %328 = vst.msk [vmem:[#allocation2] ss:$8 sm:$0x3] %vm327, 0.0
      %329 = vst.msk [vmem:[#allocation2] ss:$8 sm:$0x0] %vm327, 0.0
      %s330 = scalar_lea.vmem [#allocation2], 32
      %331 = vst.msk [vmem:[%s330] ss:$8 sm:$0x3] %vm327, 0.0
      %332 = vst.msk [vmem:[%s330] ss:$8 sm:$0x0] %vm327, 0.0
      %s333 = scalar_lea.vmem [#allocation2], 64
      %334 = vst.msk [vmem:[%s333] ss:$8 sm:$0x3] %vm327, 0.0
      %335 = vst.msk [vmem:[%s333] ss:$8 sm:$0x0] %vm327, 0.0
      %s336 = scalar_lea.vmem [#allocation2], 96
      %337 = vst.msk [vmem:[%s336] ss:$8 sm:$0x3] %vm327, 0.0
      %338 = vst.msk [vmem:[%s336] ss:$8 sm:$0x0] %vm327, 0.0
      %s339 = scalar_lea.vmem [#allocation2], 128
      %340 = vst.msk [vmem:[%s339] ss:$8 sm:$0x3] %vm327, 0.0
      %341 = vst.msk [vmem:[%s339] ss:$8 sm:$0x0] %vm327, 0.0
      %s342 = scalar_lea.vmem [#allocation2], 160
      %343 = vst.msk [vmem:[%s342] ss:$8 sm:$0x3] %vm327, 0.0
      %344 = vst.msk [vmem:[%s342] ss:$8 sm:$0x0] %vm327, 0.0
      %s345 = scalar_lea.vmem [#allocation2], 192
      %346 = vst.msk [vmem:[%s345] ss:$8 sm:$0x3] %vm327, 0.0
      %347 = vst.msk [vmem:[%s345] ss:$8 sm:$0x0] %vm327, 0.0
      %s348 = scalar_lea.vmem [#allocation2], 224
      %349 = vst.msk [vmem:[%s348] ss:$8 sm:$0x3] %vm327, 0.0
      %350 = vst.msk [vmem:[%s348] ss:$8 sm:$0x0] %vm327, 0.0
      %s351 = scalar_lea.vmem [#allocation2], 17
      %352 = vst.msk [vmem:[%s351] ss:$8 sm:$0x3] %vm327, 0.0
      %353 = vst.msk [vmem:[%s351] ss:$8 sm:$0x0] %vm327, 0.0
      %s354 = scalar_lea.vmem [#allocation2], 49
      %355 = vst.msk [vmem:[%s354] ss:$8 sm:$0x3] %vm327, 0.0
      %356 = vst.msk [vmem:[%s354] ss:$8 sm:$0x0] %vm327, 0.0
      %s357 = scalar_lea.vmem [#allocation2], 81
      %358 = vst.msk [vmem:[%s357] ss:$8 sm:$0x3] %vm327, 0.0
      %359 = vst.msk [vmem:[%s357] ss:$8 sm:$0x0] %vm327, 0.0
      %s360 = scalar_lea.vmem [#allocation2], 113
      %361 = vst.msk [vmem:[%s360] ss:$8 sm:$0x3] %vm327, 0.0
      %362 = vst.msk [vmem:[%s360] ss:$8 sm:$0x0] %vm327, 0.0
      %s363 = scalar_lea.vmem [#allocation2], 145
      %364 = vst.msk [vmem:[%s363] ss:$8 sm:$0x3] %vm327, 0.0
      %365 = vst.msk [vmem:[%s363] ss:$8 sm:$0x0] %vm327, 0.0
      %s366 = scalar_lea.vmem [#allocation2], 177
      %367 = vst.msk [vmem:[%s366] ss:$8 sm:$0x3] %vm327, 0.0
      %368 = vst.msk [vmem:[%s366] ss:$8 sm:$0x0] %vm327, 0.0
      %s369 = scalar_lea.vmem [#allocation2], 209
      %370 = vst.msk [vmem:[%s369] ss:$8 sm:$0x3] %vm327, 0.0
      %371 = vst.msk [vmem:[%s369] ss:$8 sm:$0x0] %vm327, 0.0
      %s372 = scalar_lea.vmem [#allocation2], 241
      %373 = vst.msk [vmem:[%s372] ss:$8 sm:$0x3] %vm327, 0.0
      %374 = vst.msk [vmem:[%s372] ss:$8 sm:$0x0] %vm327, 0.0
      %v391 = vrot.slane %v308, 7
      %v392 = vrot.slane %v309, 7
      %v393 = vrot.slane %v310, 7
      %v394 = vrot.slane %v311, 7
      %v395 = vrot.slane %v312, 7
      %v396 = vrot.slane %v313, 7
      %v397 = vrot.slane %v314, 7
      %v398 = vrot.slane %v315, 7
      %v399 = vrot.slane %v316, 7
      %v400 = vrot.slane %v317, 7
      %v401 = vrot.slane %v318, 7
      %v402 = vrot.slane %v319, 7
      %v403 = vrot.slane %v320, 7
      %v404 = vrot.slane %v321, 7
      %v405 = vrot.slane %v322, 7
      %v406 = vrot.slane %v323, 7
      %423 = vst [vmem:[#allocation2] sm:$0xfe] %v391
      %424 = vst [vmem:[#allocation2 + $0x8] sm:$0xfe] %v392
      %425 = vst [vmem:[#allocation2 + $0x10] sm:$0x1] %v391
      %426 = vst [vmem:[#allocation2 + $0x18] sm:$0x1] %v392
      %427 = vst [vmem:[#allocation2 + $0x20] sm:$0xfe] %v393
      %428 = vst [vmem:[#allocation2 + $0x28] sm:$0xfe] %v394
      %429 = vst [vmem:[#allocation2 + $0x30] sm:$0x1] %v393
      %430 = vst [vmem:[#allocation2 + $0x38] sm:$0x1] %v394
      %431 = vst [vmem:[#allocation2 + $0x40] sm:$0xfe] %v395
      %432 = vst [vmem:[#allocation2 + $0x48] sm:$0xfe] %v396
      %433 = vst [vmem:[#allocation2 + $0x50] sm:$0x1] %v395
      %434 = vst [vmem:[#allocation2 + $0x58] sm:$0x1] %v396
      %435 = vst [vmem:[#allocation2 + $0x60] sm:$0xfe] %v397
      %436 = vst [vmem:[#allocation2 + $0x68] sm:$0xfe] %v398
      %437 = vst [vmem:[#allocation2 + $0x70] sm:$0x1] %v397
      %438 = vst [vmem:[#allocation2 + $0x78] sm:$0x1] %v398
      %439 = vst [vmem:[#allocation2 + $0x80] sm:$0xfe] %v399
      %440 = vst [vmem:[#allocation2 + $0x88] sm:$0xfe] %v400
      %441 = vst [vmem:[#allocation2 + $0x90] sm:$0x1] %v399
      %442 = vst [vmem:[#allocation2 + $0x98] sm:$0x1] %v400
      %443 = vst [vmem:[#allocation2 + $0xa0] sm:$0xfe] %v401
      %444 = vst [vmem:[#allocation2 + $0xa8] sm:$0xfe] %v402
      %445 = vst [vmem:[#allocation2 + $0xb0] sm:$0x1] %v401
      %446 = vst [vmem:[#allocation2 + $0xb8] sm:$0x1] %v402
      %447 = vst [vmem:[#allocation2 + $0xc0] sm:$0xfe] %v403
      %448 = vst [vmem:[#allocation2 + $0xc8] sm:$0xfe] %v404
      %449 = vst [vmem:[#allocation2 + $0xd0] sm:$0x1] %v403
      %450 = vst [vmem:[#allocation2 + $0xd8] sm:$0x1] %v404
      %451 = vst [vmem:[#allocation2 + $0xe0] sm:$0xfe] %v405
      %452 = vst [vmem:[#allocation2 + $0xe8] sm:$0xfe] %v406
      %453 = vst [vmem:[#allocation2 + $0xf0] sm:$0x1] %v405
      %454 = vst [vmem:[#allocation2 + $0xf8] sm:$0x1] %v406
      %v455 = vld [vmem:[#allocation2] sm:$0xff]
      %v456 = vld [vmem:[#allocation2 + $0x8] sm:$0xff]
      %v457 = vld [vmem:[#allocation2 + $0x20] sm:$0xff]
      %v458 = vld [vmem:[#allocation2 + $0x28] sm:$0xff]
      %v459 = vld [vmem:[#allocation2 + $0x40] sm:$0xff]
      %v460 = vld [vmem:[#allocation2 + $0x48] sm:$0xff]
      %v461 = vld [vmem:[#allocation2 + $0x60] sm:$0xff]
      %v462 = vld [vmem:[#allocation2 + $0x68] sm:$0xff]
      %v463 = vld [vmem:[#allocation2 + $0x80] sm:$0xff]
      %v464 = vld [vmem:[#allocation2 + $0x88] sm:$0xff]
      %v465 = vld [vmem:[#allocation2 + $0xa0] sm:$0xff]
      %v466 = vld [vmem:[#allocation2 + $0xa8] sm:$0xff]
      %v467 = vld [vmem:[#allocation2 + $0xc0] sm:$0xff]
      %v468 = vld [vmem:[#allocation2 + $0xc8] sm:$0xff]
      %v469 = vld [vmem:[#allocation2 + $0xe0] sm:$0xff]
      %v470 = vld [vmem:[#allocation2 + $0xe8] sm:$0xff]
      %v471 = vld [vmem:[%s1] sm:$0xff]
      %v472 = vld [vmem:[%s1 + $0x8] sm:$0xff]
      %v473 = vld [vmem:[%s1 + $0x10] sm:$0xff]
      %v474 = vld [vmem:[%s1 + $0x18] sm:$0xff]
      %v475 = vld [vmem:[%s1 + $0x20] sm:$0xff]
      %v476 = vld [vmem:[%s1 + $0x28] sm:$0xff]
      %v477 = vld [vmem:[%s1 + $0x30] sm:$0xff]
      %v478 = vld [vmem:[%s1 + $0x38] sm:$0xff]
      %v479 = vld [vmem:[%s1 + $0x40] sm:$0xff]
      %v480 = vld [vmem:[%s1 + $0x48] sm:$0xff]
      %v481 = vld [vmem:[%s1 + $0x50] sm:$0xff]
      %v482 = vld [vmem:[%s1 + $0x58] sm:$0xff]
      %v483 = vld [vmem:[%s1 + $0x60] sm:$0xff]
      %v484 = vld [vmem:[%s1 + $0x68] sm:$0xff]
      %v485 = vld [vmem:[%s1 + $0x70] sm:$0xff]
      %v486 = vld [vmem:[%s1 + $0x78] sm:$0xff]
      %v487 = vld [vmem:[%s1 + $0x80] sm:$0xff]
      %v488 = vld [vmem:[%s1 + $0x88] sm:$0xff]
      %v489 = vld [vmem:[%s1 + $0x90] sm:$0xff]
      %v490 = vld [vmem:[%s1 + $0x98] sm:$0xff]
      %v491 = vld [vmem:[%s1 + $0xa0] sm:$0xff]
      %v492 = vld [vmem:[%s1 + $0xa8] sm:$0xff]
      %v493 = vld [vmem:[%s1 + $0xb0] sm:$0xff]
      %v494 = vld [vmem:[%s1 + $0xb8] sm:$0xff]
      %v495 = vld [vmem:[%s1 + $0xc0] sm:$0xff]
      %v496 = vld [vmem:[%s1 + $0xc8] sm:$0xff]
      %v497 = vld [vmem:[%s1 + $0xd0] sm:$0xff]
      %v498 = vld [vmem:[%s1 + $0xd8] sm:$0xff]
      %v499 = vld [vmem:[%s1 + $0xe0] sm:$0xff]
      %v500 = vld [vmem:[%s1 + $0xe8] sm:$0xff]
      %v501 = vld [vmem:[%s1 + $0xf0] sm:$0xff]
      %v502 = vld [vmem:[%s1 + $0xf8] sm:$0xff]
      %v503 = vld [vmem:[%s1 + $0x100] sm:$0xff]
      %v504 = vld [vmem:[%s1 + $0x108] sm:$0xff]
      %v505 = vld [vmem:[%s1 + $0x110] sm:$0xff]
      %v506 = vld [vmem:[%s1 + $0x118] sm:$0xff]
      %v507 = vld [vmem:[%s1 + $0x120] sm:$0xff]
      %v508 = vld [vmem:[%s1 + $0x128] sm:$0xff]
      %v509 = vld [vmem:[%s1 + $0x130] sm:$0xff]
      %v510 = vld [vmem:[%s1 + $0x138] sm:$0xff]
      %v511 = vld [vmem:[%s1 + $0x140] sm:$0xff]
      %v512 = vld [vmem:[%s1 + $0x148] sm:$0xff]
      %v513 = vld [vmem:[%s1 + $0x150] sm:$0xff]
      %v514 = vld [vmem:[%s1 + $0x158] sm:$0xff]
      %v515 = vld [vmem:[%s1 + $0x160] sm:$0xff]
      %v516 = vld [vmem:[%s1 + $0x168] sm:$0xff]
      %v517 = vld [vmem:[%s1 + $0x170] sm:$0xff]
      %v518 = vld [vmem:[%s1 + $0x178] sm:$0xff]
      %v519 = vld [vmem:[%s1 + $0x180] sm:$0xff]
      %v520 = vld [vmem:[%s1 + $0x188] sm:$0xff]
      %v521 = vld [vmem:[%s1 + $0x190] sm:$0xff]
      %v522 = vld [vmem:[%s1 + $0x198] sm:$0xff]
      %v523 = vld [vmem:[%s1 + $0x1a0] sm:$0xff]
      %v524 = vld [vmem:[%s1 + $0x1a8] sm:$0xff]
      %v525 = vld [vmem:[%s1 + $0x1b0] sm:$0xff]
      %v526 = vld [vmem:[%s1 + $0x1b8] sm:$0xff]
      %v527 = vld [vmem:[%s1 + $0x1c0] sm:$0xff]
      %v528 = vld [vmem:[%s1 + $0x1c8] sm:$0xff]
      %v529 = vld [vmem:[%s1 + $0x1d0] sm:$0xff]
      %v530 = vld [vmem:[%s1 + $0x1d8] sm:$0xff]
      %v531 = vld [vmem:[%s1 + $0x1e0] sm:$0xff]
      %v532 = vld [vmem:[%s1 + $0x1e8] sm:$0xff]
      %v533 = vld [vmem:[%s1 + $0x1f0] sm:$0xff]
      %v534 = vld [vmem:[%s1 + $0x1f8] sm:$0xff]
      %v535 = vld [vmem:[#allocation2] sm:$0xfe]
      %v536 = vld [vmem:[#allocation2 + $0x8] sm:$0xfe]
      %v537 = vld [vmem:[#allocation2 + $0x10] sm:$0x1]
      %v538 = vld [vmem:[#allocation2 + $0x18] sm:$0x1]
      %v539 = vld [vmem:[#allocation2 + $0x20] sm:$0xfe]
      %v540 = vld [vmem:[#allocation2 + $0x28] sm:$0xfe]
      %v541 = vld [vmem:[#allocation2 + $0x30] sm:$0x1]
      %v542 = vld [vmem:[#allocation2 + $0x38] sm:$0x1]
      %v543 = vld [vmem:[#allocation2 + $0x40] sm:$0xfe]
      %v544 = vld [vmem:[#allocation2 + $0x48] sm:$0xfe]
      %v545 = vld [vmem:[#allocation2 + $0x50] sm:$0x1]
      %v546 = vld [vmem:[#allocation2 + $0x58] sm:$0x1]
      %v547 = vld [vmem:[#allocation2 + $0x60] sm:$0xfe]
      %v548 = vld [vmem:[#allocation2 + $0x68] sm:$0xfe]
      %v549 = vld [vmem:[#allocation2 + $0x70] sm:$0x1]
      %v550 = vld [vmem:[#allocation2 + $0x78] sm:$0x1]
      %v551 = vld [vmem:[#allocation2 + $0x80] sm:$0xfe]
      %v552 = vld [vmem:[#allocation2 + $0x88] sm:$0xfe]
      %v553 = vld [vmem:[#allocation2 + $0x90] sm:$0x1]
      %v554 = vld [vmem:[#allocation2 + $0x98] sm:$0x1]
      %v555 = vld [vmem:[#allocation2 + $0xa0] sm:$0xfe]
      %v556 = vld [vmem:[#allocation2 + $0xa8] sm:$0xfe]
      %v557 = vld [vmem:[#allocation2 + $0xb0] sm:$0x1]
      %v558 = vld [vmem:[#allocation2 + $0xb8] sm:$0x1]
      %v559 = vld [vmem:[#allocation2 + $0xc0] sm:$0xfe]
      %v560 = vld [vmem:[#allocation2 + $0xc8] sm:$0xfe]
      %v561 = vld [vmem:[#allocation2 + $0xd0] sm:$0x1]
      %v562 = vld [vmem:[#allocation2 + $0xd8] sm:$0x1]
      %v563 = vld [vmem:[#allocation2 + $0xe0] sm:$0xfe]
      %v564 = vld [vmem:[#allocation2 + $0xe8] sm:$0xfe]
      %v565 = vld [vmem:[#allocation2 + $0xf0] sm:$0x1]
      %v566 = vld [vmem:[#allocation2 + $0xf8] sm:$0x1]
      %vm599 = vcmask 1046528
      %v600 = vrot.slane %v535, 1
      %v601 = vrot.slane %v537, 1
      %v602 = vsel %vm599, %v600, %v601
      %v603 = vrot.slane %v536, 1
      %v604 = vrot.slane %v538, 1
      %v605 = vsel %vm599, %v603, %v604
      %v606 = vrot.slane %v539, 1
      %v607 = vrot.slane %v541, 1
      %v608 = vsel %vm599, %v606, %v607
      %v609 = vrot.slane %v540, 1
      %v610 = vrot.slane %v542, 1
      %v611 = vsel %vm599, %v609, %v610
      %v612 = vrot.slane %v543, 1
      %v613 = vrot.slane %v545, 1
      %v614 = vsel %vm599, %v612, %v613
      %v615 = vrot.slane %v544, 1
      %v616 = vrot.slane %v546, 1
      %v617 = vsel %vm599, %v615, %v616
      %v618 = vrot.slane %v547, 1
      %v619 = vrot.slane %v549, 1
      %v620 = vsel %vm599, %v618, %v619
      %v621 = vrot.slane %v548, 1
      %v622 = vrot.slane %v550, 1
      %v623 = vsel %vm599, %v621, %v622
      %v624 = vrot.slane %v551, 1
      %v625 = vrot.slane %v553, 1
      %v626 = vsel %vm599, %v624, %v625
      %v627 = vrot.slane %v552, 1
      %v628 = vrot.slane %v554, 1
      %v629 = vsel %vm599, %v627, %v628
      %v630 = vrot.slane %v555, 1
      %v631 = vrot.slane %v557, 1
      %v632 = vsel %vm599, %v630, %v631
      %v633 = vrot.slane %v556, 1
      %v634 = vrot.slane %v558, 1
      %v635 = vsel %vm599, %v633, %v634
      %v636 = vrot.slane %v559, 1
      %v637 = vrot.slane %v561, 1
      %v638 = vsel %vm599, %v636, %v637
      %v639 = vrot.slane %v560, 1
      %v640 = vrot.slane %v562, 1
      %v641 = vsel %vm599, %v639, %v640
      %v642 = vrot.slane %v563, 1
      %v643 = vrot.slane %v565, 1
      %v644 = vsel %vm599, %v642, %v643
      %v645 = vrot.slane %v564, 1
      %v646 = vrot.slane %v566, 1
      %v647 = vsel %vm599, %v645, %v646
      %s664 = scalar_lea.vmem %s1, 512
      %v665 = vld [vmem:[%s664] sm:$0xff]
      %v666 = vld [vmem:[%s664 + $0x8] sm:$0xff]
      %v667 = vld [vmem:[%s664 + $0x10] sm:$0xff]
      %v668 = vld [vmem:[%s664 + $0x18] sm:$0xff]
      %v669 = vld [vmem:[%s664 + $0x20] sm:$0xff]
      %v670 = vld [vmem:[%s664 + $0x28] sm:$0xff]
      %v671 = vld [vmem:[%s664 + $0x30] sm:$0xff]
      %v672 = vld [vmem:[%s664 + $0x38] sm:$0xff]
      %v673 = vld [vmem:[%s664 + $0x40] sm:$0xff]
      %v674 = vld [vmem:[%s664 + $0x48] sm:$0xff]
      %v675 = vld [vmem:[%s664 + $0x50] sm:$0xff]
      %v676 = vld [vmem:[%s664 + $0x58] sm:$0xff]
      %v677 = vld [vmem:[%s664 + $0x60] sm:$0xff]
      %v678 = vld [vmem:[%s664 + $0x68] sm:$0xff]
      %v679 = vld [vmem:[%s664 + $0x70] sm:$0xff]
      %v680 = vld [vmem:[%s664 + $0x78] sm:$0xff]
      %v681 = vld [vmem:[%s664 + $0x80] sm:$0xff]
      %v682 = vld [vmem:[%s664 + $0x88] sm:$0xff]
      %v683 = vld [vmem:[%s664 + $0x90] sm:$0xff]
      %v684 = vld [vmem:[%s664 + $0x98] sm:$0xff]
      %v685 = vld [vmem:[%s664 + $0xa0] sm:$0xff]
      %v686 = vld [vmem:[%s664 + $0xa8] sm:$0xff]
      %v687 = vld [vmem:[%s664 + $0xb0] sm:$0xff]
      %v688 = vld [vmem:[%s664 + $0xb8] sm:$0xff]
      %v689 = vld [vmem:[%s664 + $0xc0] sm:$0xff]
      %v690 = vld [vmem:[%s664 + $0xc8] sm:$0xff]
      %v691 = vld [vmem:[%s664 + $0xd0] sm:$0xff]
      %v692 = vld [vmem:[%s664 + $0xd8] sm:$0xff]
      %v693 = vld [vmem:[%s664 + $0xe0] sm:$0xff]
      %v694 = vld [vmem:[%s664 + $0xe8] sm:$0xff]
      %v695 = vld [vmem:[%s664 + $0xf0] sm:$0xff]
      %v696 = vld [vmem:[%s664 + $0xf8] sm:$0xff]
      %v697 = vld [vmem:[%s664 + $0x100] sm:$0xff]
      %v698 = vld [vmem:[%s664 + $0x108] sm:$0xff]
      %v699 = vld [vmem:[%s664 + $0x110] sm:$0xff]
      %v700 = vld [vmem:[%s664 + $0x118] sm:$0xff]
      %v701 = vld [vmem:[%s664 + $0x120] sm:$0xff]
      %v702 = vld [vmem:[%s664 + $0x128] sm:$0xff]
      %v703 = vld [vmem:[%s664 + $0x130] sm:$0xff]
      %v704 = vld [vmem:[%s664 + $0x138] sm:$0xff]
      %v705 = vld [vmem:[%s664 + $0x140] sm:$0xff]
      %v706 = vld [vmem:[%s664 + $0x148] sm:$0xff]
      %v707 = vld [vmem:[%s664 + $0x150] sm:$0xff]
      %v708 = vld [vmem:[%s664 + $0x158] sm:$0xff]
      %v709 = vld [vmem:[%s664 + $0x160] sm:$0xff]
      %v710 = vld [vmem:[%s664 + $0x168] sm:$0xff]
      %v711 = vld [vmem:[%s664 + $0x170] sm:$0xff]
      %v712 = vld [vmem:[%s664 + $0x178] sm:$0xff]
      %v713 = vld [vmem:[%s664 + $0x180] sm:$0xff]
      %v714 = vld [vmem:[%s664 + $0x188] sm:$0xff]
      %v715 = vld [vmem:[%s664 + $0x190] sm:$0xff]
      %v716 = vld [vmem:[%s664 + $0x198] sm:$0xff]
      %v717 = vld [vmem:[%s664 + $0x1a0] sm:$0xff]
      %v718 = vld [vmem:[%s664 + $0x1a8] sm:$0xff]
      %v719 = vld [vmem:[%s664 + $0x1b0] sm:$0xff]
      %v720 = vld [vmem:[%s664 + $0x1b8] sm:$0xff]
      %v721 = vld [vmem:[%s664 + $0x1c0] sm:$0xff]
      %v722 = vld [vmem:[%s664 + $0x1c8] sm:$0xff]
      %v723 = vld [vmem:[%s664 + $0x1d0] sm:$0xff]
      %v724 = vld [vmem:[%s664 + $0x1d8] sm:$0xff]
      %v725 = vld [vmem:[%s664 + $0x1e0] sm:$0xff]
      %v726 = vld [vmem:[%s664 + $0x1e8] sm:$0xff]
      %v727 = vld [vmem:[%s664 + $0x1f0] sm:$0xff]
      %v728 = vld [vmem:[%s664 + $0x1f8] sm:$0xff]
      %729 = vmatprep.subr.mxu0 %v666
      %730 = vmatpush1.msra.mxu0 %v665
      %731 = vmatprep.subr.mxu0 %v668
      %732 = vmatpush1.msra.mxu0 %v667
      %733 = vmatprep.subr.mxu0 %v670
      %734 = vmatpush1.msra.mxu0 %v669
      %735 = vmatprep.subr.mxu0 %v672
      %736 = vmatpush1.msra.mxu0 %v671
      %737 = vmatprep.subr.mxu0 %v674
      %738 = vmatpush1.msra.mxu0 %v673
      %739 = vmatprep.subr.mxu0 %v676
      %740 = vmatpush1.msra.mxu0 %v675
      %741 = vmatprep.subr.mxu0 %v678
      %742 = vmatpush1.msra.mxu0 %v677
      %743 = vmatprep.subr.mxu0 %v680
      %744 = vmatpush1.msra.mxu0 %v679
      %745 = vmatprep.subr.mxu0 %v682
      %746 = vmatpush1.msra.mxu0 %v681
      %747 = vmatprep.subr.mxu0 %v684
      %748 = vmatpush1.msra.mxu0 %v683
      %749 = vmatprep.subr.mxu0 %v686
      %750 = vmatpush1.msra.mxu0 %v685
      %751 = vmatprep.subr.mxu0 %v688
      %752 = vmatpush1.msra.mxu0 %v687
      %753 = vmatprep.subr.mxu0 %v690
      %754 = vmatpush1.msra.mxu0 %v689
      %755 = vmatprep.subr.mxu0 %v692
      %756 = vmatpush1.msra.mxu0 %v691
      %757 = vmatprep.subr.mxu0 %v694
      %758 = vmatpush1.msra.mxu0 %v693
      %759 = vmatprep.subr.mxu0 %v696
      %760 = vmatpush1.msra.mxu0 %v695
      %761 = vmatprep.subr.mxu0 %v698
      %762 = vmatpush1.msra.mxu0 %v697
      %763 = vmatprep.subr.mxu0 %v700
      %764 = vmatpush1.msra.mxu0 %v699
      %765 = vmatprep.subr.mxu0 %v702
      %766 = vmatpush1.msra.mxu0 %v701
      %767 = vmatprep.subr.mxu0 %v704
      %768 = vmatpush1.msra.mxu0 %v703
      %769 = vmatprep.subr.mxu0 %v706
      %770 = vmatpush1.msra.mxu0 %v705
      %771 = vmatprep.subr.mxu0 %v708
      %772 = vmatpush1.msra.mxu0 %v707
      %773 = vmatprep.subr.mxu0 %v710
      %774 = vmatpush1.msra.mxu0 %v709
      %775 = vmatprep.subr.mxu0 %v712
      %776 = vmatpush1.msra.mxu0 %v711
      %777 = vmatprep.subr.mxu0 %v714
      %778 = vmatpush1.msra.mxu0 %v713
      %779 = vmatprep.subr.mxu0 %v716
      %780 = vmatpush1.msra.mxu0 %v715
      %781 = vmatprep.subr.mxu0 %v718
      %782 = vmatpush1.msra.mxu0 %v717
      %783 = vmatprep.subr.mxu0 %v720
      %784 = vmatpush1.msra.mxu0 %v719
      %785 = vmatprep.subr.mxu0 %v722
      %786 = vmatpush1.msra.mxu0 %v721
      %787 = vmatprep.subr.mxu0 %v724
      %788 = vmatpush1.msra.mxu0 %v723
      %789 = vmatprep.subr.mxu0 %v726
      %790 = vmatpush1.msra.mxu0 %v725
      %791 = vmatprep.subr.mxu0 %v728
      %792 = vmatpush1.msra.mxu0 %v727
      %793 = vmatprep.mubr.f32.mxu0 %v605
      %794 = vmatmul.mubr.f32.gmra.mrb[0].mxu0 %v602
      %v795 = vpop.f32.mrb[0].mxu0
      %v796 = vadd.f32 0.0, %v795
      %v797 = vpop.f32.mrb[0].mxu0
      %v798 = vadd.f32 0.0, %v797
      %799 = vmatprep.mubr.f32.mxu0 %v611
      %800 = vmatmul.mubr.f32.gmra.mrb[0].mxu0 %v608
      %v801 = vpop.f32.mrb[0].mxu0
      %v802 = vadd.f32 0.0, %v801
      %v803 = vpop.f32.mrb[0].mxu0
      %v804 = vadd.f32 0.0, %v803
      %805 = vmatprep.mubr.f32.mxu0 %v617
      %806 = vmatmul.mubr.f32.gmra.mrb[0].mxu0 %v614
      %v807 = vpop.f32.mrb[0].mxu0
      %v808 = vadd.f32 0.0, %v807
      %v809 = vpop.f32.mrb[0].mxu0
      %v810 = vadd.f32 0.0, %v809
      %811 = vmatprep.mubr.f32.mxu0 %v623
      %812 = vmatmul.mubr.f32.gmra.mrb[0].mxu0 %v620
      %v813 = vpop.f32.mrb[0].mxu0
      %v814 = vadd.f32 0.0, %v813
      %v815 = vpop.f32.mrb[0].mxu0
      %v816 = vadd.f32 0.0, %v815
      %817 = vmatprep.mubr.f32.mxu0 %v629
      %818 = vmatmul.mubr.f32.gmra.mrb[0].mxu0 %v626
      %v819 = vpop.f32.mrb[0].mxu0
      %v820 = vadd.f32 0.0, %v819
      %v821 = vpop.f32.mrb[0].mxu0
      %v822 = vadd.f32 0.0, %v821
      %823 = vmatprep.mubr.f32.mxu0 %v635
      %824 = vmatmul.mubr.f32.gmra.mrb[0].mxu0 %v632
      %v825 = vpop.f32.mrb[0].mxu0
      %v826 = vadd.f32 0.0, %v825
      %v827 = vpop.f32.mrb[0].mxu0
      %v828 = vadd.f32 0.0, %v827
      %829 = vmatprep.mubr.f32.mxu0 %v641
      %830 = vmatmul.mubr.f32.gmra.mrb[0].mxu0 %v638
      %v831 = vpop.f32.mrb[0].mxu0
      %v832 = vadd.f32 0.0, %v831
      %v833 = vpop.f32.mrb[0].mxu0
      %v834 = vadd.f32 0.0, %v833
      %835 = vmatprep.mubr.f32.mxu0 %v647
      %836 = vmatmul.mubr.f32.gmra.mrb[0].mxu0 %v644
      %v837 = vpop.f32.mrb[0].mxu0
      %v838 = vadd.f32 0.0, %v837
      %v839 = vpop.f32.mrb[0].mxu0
      %v840 = vadd.f32 0.0, %v839
      %841 = vdwg.mxu0
      %842 = vmatprep.subr.mxu0 %v472
      %843 = vmatpush1.msra.mxu0 %v471
      %844 = vmatprep.subr.mxu0 %v474
      %845 = vmatpush1.msra.mxu0 %v473
      %846 = vmatprep.subr.mxu0 %v476
      %847 = vmatpush1.msra.mxu0 %v475
      %848 = vmatprep.subr.mxu0 %v478
      %849 = vmatpush1.msra.mxu0 %v477
      %850 = vmatprep.subr.mxu0 %v480
      %851 = vmatpush1.msra.mxu0 %v479
      %852 = vmatprep.subr.mxu0 %v482
      %853 = vmatpush1.msra.mxu0 %v481
      %854 = vmatprep.subr.mxu0 %v484
      %855 = vmatpush1.msra.mxu0 %v483
      %856 = vmatprep.subr.mxu0 %v486
      %857 = vmatpush1.msra.mxu0 %v485
      %858 = vmatprep.subr.mxu0 %v488
      %859 = vmatpush1.msra.mxu0 %v487
      %860 = vmatprep.subr.mxu0 %v490
      %861 = vmatpush1.msra.mxu0 %v489
      %862 = vmatprep.subr.mxu0 %v492
      %863 = vmatpush1.msra.mxu0 %v491
      %864 = vmatprep.subr.mxu0 %v494
      %865 = vmatpush1.msra.mxu0 %v493
      %866 = vmatprep.subr.mxu0 %v496
      %867 = vmatpush1.msra.mxu0 %v495
      %868 = vmatprep.subr.mxu0 %v498
      %869 = vmatpush1.msra.mxu0 %v497
      %870 = vmatprep.subr.mxu0 %v500
      %871 = vmatpush1.msra.mxu0 %v499
      %872 = vmatprep.subr.mxu0 %v502
      %873 = vmatpush1.msra.mxu0 %v501
      %874 = vmatprep.subr.mxu0 %v504
      %875 = vmatpush1.msra.mxu0 %v503
      %876 = vmatprep.subr.mxu0 %v506
      %877 = vmatpush1.msra.mxu0 %v505
      %878 = vmatprep.subr.mxu0 %v508
      %879 = vmatpush1.msra.mxu0 %v507
      %880 = vmatprep.subr.mxu0 %v510
      %881 = vmatpush1.msra.mxu0 %v509
      %882 = vmatprep.subr.mxu0 %v512
      %883 = vmatpush1.msra.mxu0 %v511
      %884 = vmatprep.subr.mxu0 %v514
      %885 = vmatpush1.msra.mxu0 %v513
      %886 = vmatprep.subr.mxu0 %v516
      %887 = vmatpush1.msra.mxu0 %v515
      %888 = vmatprep.subr.mxu0 %v518
      %889 = vmatpush1.msra.mxu0 %v517
      %890 = vmatprep.subr.mxu0 %v520
      %891 = vmatpush1.msra.mxu0 %v519
      %892 = vmatprep.subr.mxu0 %v522
      %893 = vmatpush1.msra.mxu0 %v521
      %894 = vmatprep.subr.mxu0 %v524
      %895 = vmatpush1.msra.mxu0 %v523
      %896 = vmatprep.subr.mxu0 %v526
      %897 = vmatpush1.msra.mxu0 %v525
      %898 = vmatprep.subr.mxu0 %v528
      %899 = vmatpush1.msra.mxu0 %v527
      %900 = vmatprep.subr.mxu0 %v530
      %901 = vmatpush1.msra.mxu0 %v529
      %902 = vmatprep.subr.mxu0 %v532
      %903 = vmatpush1.msra.mxu0 %v531
      %904 = vmatprep.subr.mxu0 %v534
      %905 = vmatpush1.msra.mxu0 %v533
      %906 = vmatprep.mubr.f32.mxu0 %v456
      %907 = vmatmul.mubr.f32.gmra.mrb[0].mxu0 %v455
      %v908 = vpop.f32.mrb[0].mxu0
      %v909 = vadd.f32 %v796, %v908
      %v910 = vpop.f32.mrb[0].mxu0
      %v911 = vadd.f32 %v798, %v910
      %912 = vmatprep.mubr.f32.mxu0 %v458
      %913 = vmatmul.mubr.f32.gmra.mrb[0].mxu0 %v457
      %v914 = vpop.f32.mrb[0].mxu0
      %v915 = vadd.f32 %v802, %v914
      %v916 = vpop.f32.mrb[0].mxu0
      %v917 = vadd.f32 %v804, %v916
      %918 = vmatprep.mubr.f32.mxu0 %v460
      %919 = vmatmul.mubr.f32.gmra.mrb[0].mxu0 %v459
      %v920 = vpop.f32.mrb[0].mxu0
      %v921 = vadd.f32 %v808, %v920
      %v922 = vpop.f32.mrb[0].mxu0
      %v923 = vadd.f32 %v810, %v922
      %924 = vmatprep.mubr.f32.mxu0 %v462
      %925 = vmatmul.mubr.f32.gmra.mrb[0].mxu0 %v461
      %v926 = vpop.f32.mrb[0].mxu0
      %v927 = vadd.f32 %v814, %v926
      %v928 = vpop.f32.mrb[0].mxu0
      %v929 = vadd.f32 %v816, %v928
      %930 = vmatprep.mubr.f32.mxu0 %v464
      %931 = vmatmul.mubr.f32.gmra.mrb[0].mxu0 %v463
      %v932 = vpop.f32.mrb[0].mxu0
      %v933 = vadd.f32 %v820, %v932
      %v934 = vpop.f32.mrb[0].mxu0
      %v935 = vadd.f32 %v822, %v934
      %936 = vmatprep.mubr.f32.mxu0 %v466
      %937 = vmatmul.mubr.f32.gmra.mrb[0].mxu0 %v465
      %v938 = vpop.f32.mrb[0].mxu0
      %v939 = vadd.f32 %v826, %v938
      %v940 = vpop.f32.mrb[0].mxu0
      %v941 = vadd.f32 %v828, %v940
      %942 = vmatprep.mubr.f32.mxu0 %v468
      %943 = vmatmul.mubr.f32.gmra.mrb[0].mxu0 %v467
      %v944 = vpop.f32.mrb[0].mxu0
      %v945 = vadd.f32 %v832, %v944
      %v946 = vpop.f32.mrb[0].mxu0
      %v947 = vadd.f32 %v834, %v946
      %948 = vmatprep.mubr.f32.mxu0 %v470
      %949 = vmatmul.mubr.f32.gmra.mrb[0].mxu0 %v469
      %v950 = vpop.f32.mrb[0].mxu0
      %v951 = vadd.f32 %v838, %v950
      %v952 = vpop.f32.mrb[0].mxu0
      %v953 = vadd.f32 %v840, %v952
      %954 = vdwg.mxu0
      %v955 = vld [vmem:[#allocation2] sm:$0xfc]
      %v956 = vld [vmem:[#allocation2 + $0x8] sm:$0xfc]
      %v957 = vld [vmem:[#allocation2 + $0x10] sm:$0x3]
      %v958 = vld [vmem:[#allocation2 + $0x18] sm:$0x3]
      %v959 = vld [vmem:[#allocation2 + $0x20] sm:$0xfc]
      %v960 = vld [vmem:[#allocation2 + $0x28] sm:$0xfc]
      %v961 = vld [vmem:[#allocation2 + $0x30] sm:$0x3]
      %v962 = vld [vmem:[#allocation2 + $0x38] sm:$0x3]
      %v963 = vld [vmem:[#allocation2 + $0x40] sm:$0xfc]
      %v964 = vld [vmem:[#allocation2 + $0x48] sm:$0xfc]
      %v965 = vld [vmem:[#allocation2 + $0x50] sm:$0x3]
      %v966 = vld [vmem:[#allocation2 + $0x58] sm:$0x3]
      %v967 = vld [vmem:[#allocation2 + $0x60] sm:$0xfc]
      %v968 = vld [vmem:[#allocation2 + $0x68] sm:$0xfc]
      %v969 = vld [vmem:[#allocation2 + $0x70] sm:$0x3]
      %v970 = vld [vmem:[#allocation2 + $0x78] sm:$0x3]
      %v971 = vld [vmem:[#allocation2 + $0x80] sm:$0xfc]
      %v972 = vld [vmem:[#allocation2 + $0x88] sm:$0xfc]
      %v973 = vld [vmem:[#allocation2 + $0x90] sm:$0x3]
      %v974 = vld [vmem:[#allocation2 + $0x98] sm:$0x3]
      %v975 = vld [vmem:[#allocation2 + $0xa0] sm:$0xfc]
      %v976 = vld [vmem:[#allocation2 + $0xa8] sm:$0xfc]
      %v977 = vld [vmem:[#allocation2 + $0xb0] sm:$0x3]
      %v978 = vld [vmem:[#allocation2 + $0xb8] sm:$0x3]
      %v979 = vld [vmem:[#allocation2 + $0xc0] sm:$0xfc]
      %v980 = vld [vmem:[#allocation2 + $0xc8] sm:$0xfc]
      %v981 = vld [vmem:[#allocation2 + $0xd0] sm:$0x3]
      %v982 = vld [vmem:[#allocation2 + $0xd8] sm:$0x3]
      %v983 = vld [vmem:[#allocation2 + $0xe0] sm:$0xfc]
      %v984 = vld [vmem:[#allocation2 + $0xe8] sm:$0xfc]
      %v985 = vld [vmem:[#allocation2 + $0xf0] sm:$0x3]
      %v986 = vld [vmem:[#allocation2 + $0xf8] sm:$0x3]
      %vm1019 = vcmask 1045504
      %v1020 = vrot.slane %v955, 2
      %v1021 = vrot.slane %v957, 2
      %v1022 = vsel %vm1019, %v1020, %v1021
      %v1023 = vrot.slane %v956, 2
      %v1024 = vrot.slane %v958, 2
      %v1025 = vsel %vm1019, %v1023, %v1024
      %v1026 = vrot.slane %v959, 2
      %v1027 = vrot.slane %v961, 2
      %v1028 = vsel %vm1019, %v1026, %v1027
      %v1029 = vrot.slane %v960, 2
      %v1030 = vrot.slane %v962, 2
      %v1031 = vsel %vm1019, %v1029, %v1030
      %v1032 = vrot.slane %v963, 2
      %v1033 = vrot.slane %v965, 2
      %v1034 = vsel %vm1019, %v1032, %v1033
      %v1035 = vrot.slane %v964, 2
      %v1036 = vrot.slane %v966, 2
      %v1037 = vsel %vm1019, %v1035, %v1036
      %v1038 = vrot.slane %v967, 2
      %v1039 = vrot.slane %v969, 2
      %v1040 = vsel %vm1019, %v1038, %v1039
      %v1041 = vrot.slane %v968, 2
      %v1042 = vrot.slane %v970, 2
      %v1043 = vsel %vm1019, %v1041, %v1042
      %v1044 = vrot.slane %v971, 2
      %v1045 = vrot.slane %v973, 2
      %v1046 = vsel %vm1019, %v1044, %v1045
      %v1047 = vrot.slane %v972, 2
      %v1048 = vrot.slane %v974, 2
      %v1049 = vsel %vm1019, %v1047, %v1048
      %v1050 = vrot.slane %v975, 2
      %v1051 = vrot.slane %v977, 2
      %v1052 = vsel %vm1019, %v1050, %v1051
      %v1053 = vrot.slane %v976, 2
      %v1054 = vrot.slane %v978, 2
      %v1055 = vsel %vm1019, %v1053, %v1054
      %v1056 = vrot.slane %v979, 2
      %v1057 = vrot.slane %v981, 2
      %v1058 = vsel %vm1019, %v1056, %v1057
      %v1059 = vrot.slane %v980, 2
      %v1060 = vrot.slane %v982, 2
      %v1061 = vsel %vm1019, %v1059, %v1060
      %v1062 = vrot.slane %v983, 2
      %v1063 = vrot.slane %v985, 2
      %v1064 = vsel %vm1019, %v1062, %v1063
      %v1065 = vrot.slane %v984, 2
      %v1066 = vrot.slane %v986, 2
      %v1067 = vsel %vm1019, %v1065, %v1066
      %s1084 = scalar_lea.vmem %s1, 1024
      %v1085 = vld [vmem:[%s1084] sm:$0xff]
      %v1086 = vld [vmem:[%s1084 + $0x8] sm:$0xff]
      %v1087 = vld [vmem:[%s1084 + $0x10] sm:$0xff]
      %v1088 = vld [vmem:[%s1084 + $0x18] sm:$0xff]
      %v1089 = vld [vmem:[%s1084 + $0x20] sm:$0xff]
      %v1090 = vld [vmem:[%s1084 + $0x28] sm:$0xff]
      %v1091 = vld [vmem:[%s1084 + $0x30] sm:$0xff]
      %v1092 = vld [vmem:[%s1084 + $0x38] sm:$0xff]
      %v1093 = vld [vmem:[%s1084 + $0x40] sm:$0xff]
      %v1094 = vld [vmem:[%s1084 + $0x48] sm:$0xff]
      %v1095 = vld [vmem:[%s1084 + $0x50] sm:$0xff]
      %v1096 = vld [vmem:[%s1084 + $0x58] sm:$0xff]
      %v1097 = vld [vmem:[%s1084 + $0x60] sm:$0xff]
      %v1098 = vld [vmem:[%s1084 + $0x68] sm:$0xff]
      %v1099 = vld [vmem:[%s1084 + $0x70] sm:$0xff]
      %v1100 = vld [vmem:[%s1084 + $0x78] sm:$0xff]
      %v1101 = vld [vmem:[%s1084 + $0x80] sm:$0xff]
      %v1102 = vld [vmem:[%s1084 + $0x88] sm:$0xff]
      %v1103 = vld [vmem:[%s1084 + $0x90] sm:$0xff]
      %v1104 = vld [vmem:[%s1084 + $0x98] sm:$0xff]
      %v1105 = vld [vmem:[%s1084 + $0xa0] sm:$0xff]
      %v1106 = vld [vmem:[%s1084 + $0xa8] sm:$0xff]
      %v1107 = vld [vmem:[%s1084 + $0xb0] sm:$0xff]
      %v1108 = vld [vmem:[%s1084 + $0xb8] sm:$0xff]
      %v1109 = vld [vmem:[%s1084 + $0xc0] sm:$0xff]
      %v1110 = vld [vmem:[%s1084 + $0xc8] sm:$0xff]
      %v1111 = vld [vmem:[%s1084 + $0xd0] sm:$0xff]
      %v1112 = vld [vmem:[%s1084 + $0xd8] sm:$0xff]
      %v1113 = vld [vmem:[%s1084 + $0xe0] sm:$0xff]
      %v1114 = vld [vmem:[%s1084 + $0xe8] sm:$0xff]
      %v1115 = vld [vmem:[%s1084 + $0xf0] sm:$0xff]
      %v1116 = vld [vmem:[%s1084 + $0xf8] sm:$0xff]
      %v1117 = vld [vmem:[%s1084 + $0x100] sm:$0xff]
      %v1118 = vld [vmem:[%s1084 + $0x108] sm:$0xff]
      %v1119 = vld [vmem:[%s1084 + $0x110] sm:$0xff]
      %v1120 = vld [vmem:[%s1084 + $0x118] sm:$0xff]
      %v1121 = vld [vmem:[%s1084 + $0x120] sm:$0xff]
      %v1122 = vld [vmem:[%s1084 + $0x128] sm:$0xff]
      %v1123 = vld [vmem:[%s1084 + $0x130] sm:$0xff]
      %v1124 = vld [vmem:[%s1084 + $0x138] sm:$0xff]
      %v1125 = vld [vmem:[%s1084 + $0x140] sm:$0xff]
      %v1126 = vld [vmem:[%s1084 + $0x148] sm:$0xff]
      %v1127 = vld [vmem:[%s1084 + $0x150] sm:$0xff]
      %v1128 = vld [vmem:[%s1084 + $0x158] sm:$0xff]
      %v1129 = vld [vmem:[%s1084 + $0x160] sm:$0xff]
      %v1130 = vld [vmem:[%s1084 + $0x168] sm:$0xff]
      %v1131 = vld [vmem:[%s1084 + $0x170] sm:$0xff]
      %v1132 = vld [vmem:[%s1084 + $0x178] sm:$0xff]
      %v1133 = vld [vmem:[%s1084 + $0x180] sm:$0xff]
      %v1134 = vld [vmem:[%s1084 + $0x188] sm:$0xff]
      %v1135 = vld [vmem:[%s1084 + $0x190] sm:$0xff]
      %v1136 = vld [vmem:[%s1084 + $0x198] sm:$0xff]
      %v1137 = vld [vmem:[%s1084 + $0x1a0] sm:$0xff]
      %v1138 = vld [vmem:[%s1084 + $0x1a8] sm:$0xff]
      %v1139 = vld [vmem:[%s1084 + $0x1b0] sm:$0xff]
      %v1140 = vld [vmem:[%s1084 + $0x1b8] sm:$0xff]
      %v1141 = vld [vmem:[%s1084 + $0x1c0] sm:$0xff]
      %v1142 = vld [vmem:[%s1084 + $0x1c8] sm:$0xff]
      %v1143 = vld [vmem:[%s1084 + $0x1d0] sm:$0xff]
      %v1144 = vld [vmem:[%s1084 + $0x1d8] sm:$0xff]
      %v1145 = vld [vmem:[%s1084 + $0x1e0] sm:$0xff]
      %v1146 = vld [vmem:[%s1084 + $0x1e8] sm:$0xff]
      %v1147 = vld [vmem:[%s1084 + $0x1f0] sm:$0xff]
      %v1148 = vld [vmem:[%s1084 + $0x1f8] sm:$0xff]
      %1149 = vmatprep.subr.mxu0 %v1086
      %1150 = vmatpush1.msra.mxu0 %v1085
      %1151 = vmatprep.subr.mxu0 %v1088
      %1152 = vmatpush1.msra.mxu0 %v1087
      %1153 = vmatprep.subr.mxu0 %v1090
      %1154 = vmatpush1.msra.mxu0 %v1089
      %1155 = vmatprep.subr.mxu0 %v1092
      %1156 = vmatpush1.msra.mxu0 %v1091
      %1157 = vmatprep.subr.mxu0 %v1094
      %1158 = vmatpush1.msra.mxu0 %v1093
      %1159 = vmatprep.subr.mxu0 %v1096
      %1160 = vmatpush1.msra.mxu0 %v1095
      %1161 = vmatprep.subr.mxu0 %v1098
      %1162 = vmatpush1.msra.mxu0 %v1097
      %1163 = vmatprep.subr.mxu0 %v1100
      %1164 = vmatpush1.msra.mxu0 %v1099
      %1165 = vmatprep.subr.mxu0 %v1102
      %1166 = vmatpush1.msra.mxu0 %v1101
      %1167 = vmatprep.subr.mxu0 %v1104
      %1168 = vmatpush1.msra.mxu0 %v1103
      %1169 = vmatprep.subr.mxu0 %v1106
      %1170 = vmatpush1.msra.mxu0 %v1105
      %1171 = vmatprep.subr.mxu0 %v1108
      %1172 = vmatpush1.msra.mxu0 %v1107
      %1173 = vmatprep.subr.mxu0 %v1110
      %1174 = vmatpush1.msra.mxu0 %v1109
      %1175 = vmatprep.subr.mxu0 %v1112
      %1176 = vmatpush1.msra.mxu0 %v1111
      %1177 = vmatprep.subr.mxu0 %v1114
      %1178 = vmatpush1.msra.mxu0 %v1113
      %1179 = vmatprep.subr.mxu0 %v1116
      %1180 = vmatpush1.msra.mxu0 %v1115
      %1181 = vmatprep.subr.mxu0 %v1118
      %1182 = vmatpush1.msra.mxu0 %v1117
      %1183 = vmatprep.subr.mxu0 %v1120
      %1184 = vmatpush1.msra.mxu0 %v1119
      %1185 = vmatprep.subr.mxu0 %v1122
      %1186 = vmatpush1.msra.mxu0 %v1121
      %1187 = vmatprep.subr.mxu0 %v1124
      %1188 = vmatpush1.msra.mxu0 %v1123
      %1189 = vmatprep.subr.mxu0 %v1126
      %1190 = vmatpush1.msra.mxu0 %v1125
      %1191 = vmatprep.subr.mxu0 %v1128
      %1192 = vmatpush1.msra.mxu0 %v1127
      %1193 = vmatprep.subr.mxu0 %v1130
      %1194 = vmatpush1.msra.mxu0 %v1129
      %1195 = vmatprep.subr.mxu0 %v1132
      %1196 = vmatpush1.msra.mxu0 %v1131
      %1197 = vmatprep.subr.mxu0 %v1134
      %1198 = vmatpush1.msra.mxu0 %v1133
      %1199 = vmatprep.subr.mxu0 %v1136
      %1200 = vmatpush1.msra.mxu0 %v1135
      %1201 = vmatprep.subr.mxu0 %v1138
      %1202 = vmatpush1.msra.mxu0 %v1137
      %1203 = vmatprep.subr.mxu0 %v1140
      %1204 = vmatpush1.msra.mxu0 %v1139
      %1205 = vmatprep.subr.mxu0 %v1142
      %1206 = vmatpush1.msra.mxu0 %v1141
      %1207 = vmatprep.subr.mxu0 %v1144
      %1208 = vmatpush1.msra.mxu0 %v1143
      %1209 = vmatprep.subr.mxu0 %v1146
      %1210 = vmatpush1.msra.mxu0 %v1145
      %1211 = vmatprep.subr.mxu0 %v1148
      %1212 = vmatpush1.msra.mxu0 %v1147
      %1213 = vmatprep.mubr.f32.mxu0 %v1025
      %1214 = vmatmul.mubr.f32.gmra.mrb[0].mxu0 %v1022
      %v1215 = vpop.f32.mrb[0].mxu0
      %v1216 = vadd.f32 0.0, %v1215
      %v1217 = vpop.f32.mrb[0].mxu0
      %v1218 = vadd.f32 0.0, %v1217
      %1219 = vmatprep.mubr.f32.mxu0 %v1031
      %1220 = vmatmul.mubr.f32.gmra.mrb[0].mxu0 %v1028
      %v1221 = vpop.f32.mrb[0].mxu0
      %v1222 = vadd.f32 0.0, %v1221
      %v1223 = vpop.f32.mrb[0].mxu0
      %v1224 = vadd.f32 0.0, %v1223
      %1225 = vmatprep.mubr.f32.mxu0 %v1037
      %1226 = vmatmul.mubr.f32.gmra.mrb[0].mxu0 %v1034
      %v1227 = vpop.f32.mrb[0].mxu0
      %v1228 = vadd.f32 0.0, %v1227
      %v1229 = vpop.f32.mrb[0].mxu0
      %v1230 = vadd.f32 0.0, %v1229
      %1231 = vmatprep.mubr.f32.mxu0 %v1043
      %1232 = vmatmul.mubr.f32.gmra.mrb[0].mxu0 %v1040
      %v1233 = vpop.f32.mrb[0].mxu0
      %v1234 = vadd.f32 0.0, %v1233
      %v1235 = vpop.f32.mrb[0].mxu0
      %v1236 = vadd.f32 0.0, %v1235
      %1237 = vmatprep.mubr.f32.mxu0 %v1049
      %1238 = vmatmul.mubr.f32.gmra.mrb[0].mxu0 %v1046
      %v1239 = vpop.f32.mrb[0].mxu0
      %v1240 = vadd.f32 0.0, %v1239
      %v1241 = vpop.f32.mrb[0].mxu0
      %v1242 = vadd.f32 0.0, %v1241
      %1243 = vmatprep.mubr.f32.mxu0 %v1055
      %1244 = vmatmul.mubr.f32.gmra.mrb[0].mxu0 %v1052
      %v1245 = vpop.f32.mrb[0].mxu0
      %v1246 = vadd.f32 0.0, %v1245
      %v1247 = vpop.f32.mrb[0].mxu0
      %v1248 = vadd.f32 0.0, %v1247
      %1249 = vmatprep.mubr.f32.mxu0 %v1061
      %1250 = vmatmul.mubr.f32.gmra.mrb[0].mxu0 %v1058
      %v1251 = vpop.f32.mrb[0].mxu0
      %v1252 = vadd.f32 0.0, %v1251
      %v1253 = vpop.f32.mrb[0].mxu0
      %v1254 = vadd.f32 0.0, %v1253
      %1255 = vmatprep.mubr.f32.mxu0 %v1067
      %1256 = vmatmul.mubr.f32.gmra.mrb[0].mxu0 %v1064
      %v1257 = vpop.f32.mrb[0].mxu0
      %v1258 = vadd.f32 0.0, %v1257
      %v1259 = vpop.f32.mrb[0].mxu0
      %v1260 = vadd.f32 0.0, %v1259
      %1261 = vdwg.mxu0
      %v1262 = vadd.f32 %v909, %v1216
      %v1263 = vadd.f32 %v911, %v1218
      %v1264 = vadd.f32 %v915, %v1222
      %v1265 = vadd.f32 %v917, %v1224
      %v1266 = vadd.f32 %v921, %v1228
      %v1267 = vadd.f32 %v923, %v1230
      %v1268 = vadd.f32 %v927, %v1234
      %v1269 = vadd.f32 %v929, %v1236
      %v1270 = vadd.f32 %v933, %v1240
      %v1271 = vadd.f32 %v935, %v1242
      %v1272 = vadd.f32 %v939, %v1246
      %v1273 = vadd.f32 %v941, %v1248
      %v1274 = vadd.f32 %v945, %v1252
      %v1275 = vadd.f32 %v947, %v1254
      %v1276 = vadd.f32 %v951, %v1258
      %v1277 = vadd.f32 %v953, %v1260
      %v1278 = vld [vmem:[%s2] sm:$0x3]
      %v1280 = vlaneseq
      %v1281 = vshrl.u32 %v1280, 7
      %v1282 = vsub.s32 0, %v1281
      %v1283 = vrot.slane %v1278, %v1282
      %v1284 = vlaneseq
      %v1285 = vshrl.u32 %v1284, 7
      %v1286 = vsub.s32 1, %v1285
      %v1287 = vrot.slane %v1278, %v1286
      %v1290 = vadd.f32 %v1262, %v1283
      %v1291 = vadd.f32 %v1263, %v1287
      %v1292 = vadd.f32 %v1264, %v1283
      %v1293 = vadd.f32 %v1265, %v1287
      %v1294 = vadd.f32 %v1266, %v1283
      %v1295 = vadd.f32 %v1267, %v1287
      %v1296 = vadd.f32 %v1268, %v1283
      %v1297 = vadd.f32 %v1269, %v1287
      %v1298 = vadd.f32 %v1270, %v1283
      %v1299 = vadd.f32 %v1271, %v1287
      %v1300 = vadd.f32 %v1272, %v1283
      %v1301 = vadd.f32 %v1273, %v1287
      %v1302 = vadd.f32 %v1274, %v1283
      %v1303 = vadd.f32 %v1275, %v1287
      %v1304 = vadd.f32 %v1276, %v1283
      %v1305 = vadd.f32 %v1277, %v1287
      %1306 = vst [vmem:[%s298] sm:$0xff] %v1290
      %1307 = vst [vmem:[%s298 + $0x8] sm:$0xff] %v1291
      %1308 = vst [vmem:[%s298 + $0x10] sm:$0xff] %v1292
      %1309 = vst [vmem:[%s298 + $0x18] sm:$0xff] %v1293
      %1310 = vst [vmem:[%s298 + $0x20] sm:$0xff] %v1294
      %1311 = vst [vmem:[%s298 + $0x28] sm:$0xff] %v1295
      %1312 = vst [vmem:[%s298 + $0x30] sm:$0xff] %v1296
      %1313 = vst [vmem:[%s298 + $0x38] sm:$0xff] %v1297
      %1314 = vst [vmem:[%s298 + $0x40] sm:$0xff] %v1298
      %1315 = vst [vmem:[%s298 + $0x48] sm:$0xff] %v1299
      %1316 = vst [vmem:[%s298 + $0x50] sm:$0xff] %v1300
      %1317 = vst [vmem:[%s298 + $0x58] sm:$0xff] %v1301
      %1318 = vst [vmem:[%s298 + $0x60] sm:$0xff] %v1302
      %1319 = vst [vmem:[%s298 + $0x68] sm:$0xff] %v1303
      %1320 = vst [vmem:[%s298 + $0x70] sm:$0xff] %v1304
      %1321 = vst [vmem:[%s298 + $0x78] sm:$0xff] %v1305
      %v1322 = vadd.f32 %v1290, %v1292
      %v1323 = vadd.f32 %v1322, %v1294
      %v1324 = vadd.f32 %v1323, %v1296
      %v1325 = vadd.f32 %v1324, %v1298
      %v1326 = vadd.f32 %v1325, %v1300
      %v1327 = vadd.f32 %v1326, %v1302
      %v1328 = vadd.f32 %v1327, %v1304
      %v1329 = vrot.slane %v1328, 4
      %v1330 = vadd.f32 %v1328, %v1329
      %v1331 = vrot.slane %v1330, 2
      %v1332 = vadd.f32 %v1330, %v1331
      %v1333 = vrot.slane %v1332, 1
      %v1334 = vadd.f32 %v1332, %v1333
      %v1335 = vadd.f32 %v1291, %v1293
      %v1336 = vadd.f32 %v1335, %v1295
      %v1337 = vadd.f32 %v1336, %v1297
      %v1338 = vadd.f32 %v1337, %v1299
      %v1339 = vadd.f32 %v1338, %v1301
      %v1340 = vadd.f32 %v1339, %v1303
      %v1341 = vadd.f32 %v1340, %v1305
      %v1342 = vrot.slane %v1341, 4
      %v1343 = vadd.f32 %v1341, %v1342
      %v1344 = vrot.slane %v1343, 2
      %v1345 = vadd.f32 %v1343, %v1344
      %v1346 = vrot.slane %v1345, 1
      %v1347 = vadd.f32 %v1345, %v1346
      %v1350 = vcombine.low %v1334, %v1347
      %v1352 = vunpack.c.l.s4 1966171168
      %v1353 = vunpack.c.0.s8 %v1352
      %v1354 = vlaneseq
      %v1355 = vshrl.u32 %v1354, 7
      %v1356 = vsub.s32 %v1353, %v1355
      %v1357 = vrot.slane %v1350, %v1356
      %v1359 = vunpack.c.l.s4 1966171168
      %v1360 = vunpack.c.0.s8 %v1359
      %v1361 = vlaneseq
      %v1362 = vshrl.u32 %v1361, 7
      %v1363 = vsub.s32 %v1360, %v1362
      %v1364 = vrot.slane %v1357, %v1363
      %1366 = vst.msk [vmem:[%s303] sm:$0x3] %vm327, %v1364
      %v1367 = vmul.f32 %v1290, %v1290
      %v1368 = vmul.f32 %v1291, %v1291
      %v1369 = vmul.f32 %v1292, %v1292
      %v1370 = vmul.f32 %v1293, %v1293
      %v1371 = vmul.f32 %v1294, %v1294
      %v1372 = vmul.f32 %v1295, %v1295
      %v1373 = vmul.f32 %v1296, %v1296
      %v1374 = vmul.f32 %v1297, %v1297
      %v1375 = vmul.f32 %v1298, %v1298
      %v1376 = vmul.f32 %v1299, %v1299
      %v1377 = vmul.f32 %v1300, %v1300
      %v1378 = vmul.f32 %v1301, %v1301
      %v1379 = vmul.f32 %v1302, %v1302
      %v1380 = vmul.f32 %v1303, %v1303
      %v1381 = vmul.f32 %v1304, %v1304
      %v1382 = vmul.f32 %v1305, %v1305
      %v1383 = vadd.f32 %v1367, %v1369
      %v1384 = vadd.f32 %v1383, %v1371
      %v1385 = vadd.f32 %v1384, %v1373
      %v1386 = vadd.f32 %v1385, %v1375
      %v1387 = vadd.f32 %v1386, %v1377
      %v1388 = vadd.f32 %v1387, %v1379
      %v1389 = vadd.f32 %v1388, %v1381
      %v1390 = vrot.slane %v1389, 4
      %v1391 = vadd.f32 %v1389, %v1390
      %v1392 = vrot.slane %v1391, 2
      %v1393 = vadd.f32 %v1391, %v1392
      %v1394 = vrot.slane %v1393, 1
      %v1395 = vadd.f32 %v1393, %v1394
      %v1396 = vadd.f32 %v1368, %v1370
      %v1397 = vadd.f32 %v1396, %v1372
      %v1398 = vadd.f32 %v1397, %v1374
      %v1399 = vadd.f32 %v1398, %v1376
      %v1400 = vadd.f32 %v1399, %v1378
      %v1401 = vadd.f32 %v1400, %v1380
      %v1402 = vadd.f32 %v1401, %v1382
      %v1403 = vrot.slane %v1402, 4
      %v1404 = vadd.f32 %v1402, %v1403
      %v1405 = vrot.slane %v1404, 2
      %v1406 = vadd.f32 %v1404, %v1405
      %v1407 = vrot.slane %v1406, 1
      %v1408 = vadd.f32 %v1406, %v1407
      %v1411 = vcombine.low %v1395, %v1408
      %v1413 = vunpack.c.l.s4 1966171168
      %v1414 = vunpack.c.0.s8 %v1413
      %v1415 = vlaneseq
      %v1416 = vshrl.u32 %v1415, 7
      %v1417 = vsub.s32 %v1414, %v1416
      %v1418 = vrot.slane %v1411, %v1417
      %v1420 = vunpack.c.l.s4 1966171168
      %v1421 = vunpack.c.0.s8 %v1420
      %v1422 = vlaneseq
      %v1423 = vshrl.u32 %v1422, 7
      %v1424 = vsub.s32 %v1421, %v1423
      %v1425 = vrot.slane %v1418, %v1424
      %1427 = vst.msk [vmem:[%s307] sm:$0x3] %vm327, %v1425
      %s1428 = smul.u32 8, %s19
      %p1429 = scmp.lt.s32.totalorder %s1428, 15
      %s1430 = scalar_select %p1429, %s1428, 15
      %s1431 = smul.addr %s1430, 2
      %s1432 = smul.addr %s1431, 8
      %s1433 = scalar_lea.vmem %s5, %s1432
      %p1434 = scmp.lt.s32.totalorder %s19, 1
      %s1435 = scalar_select %p1434, %s19, 1
      %s1436 = smul.addr %s1435, 2
      %s1437 = scalar_lea.vmem %s6, %s1436
      %p1438 = scmp.lt.s32.totalorder %s19, 1
      %s1439 = scalar_select %p1438, %s19, 1
      %s1440 = smul.addr %s1439, 2
      %s1441 = scalar_lea.vmem %s7, %s1440
      // Predicated region
      $region41: #{resblock_pallas.3} parent=39 // pred_check
        %p1442 = pneg %p147
      $region42: #{resblock_pallas.3} parent=39 // pred_check_branch
        %1444 = sbr.rel (%p1442) target = $region44
      $region43: #{resblock_pallas.3} parent=39 // pred_region
        %s1445 = smul.u32 8, %s19
      $region44: #{resblock_pallas.3} parent=39 // pred_fallthru
        _
      // Predicated region
      $region45: #{resblock_pallas.3} parent=39 // pred_check
        %p1446 = pneg %p173
      $region46: #{resblock_pallas.3} parent=39 // pred_check_branch
        %1448 = sbr.rel (%p1446) target = $region48
      $region47: #{resblock_pallas.3} parent=39 // pred_region
        _
      $region48: #{resblock_pallas.3} parent=39 // pred_fallthru
        _
      // Predicated region
      $region49: #{resblock_pallas.3} parent=39 // pred_check
        %p1449 = pneg %p199
      $region50: #{resblock_pallas.3} parent=39 // pred_check_branch
        %1451 = sbr.rel (%p1449) target = $region52
      $region51: #{resblock_pallas.3} parent=39 // pred_region
        _
      $region52: #{resblock_pallas.3} parent=39 // pred_fallthru
        _
    $region40: #{resblock_pallas.3} parent=5 // pred_fallthru
      _
    %p1452 = scmp.le.s32.totalorder 2, %s14
    // Predicated region
    $region53: #{resblock_pallas.3} parent=5 // pred_check
      %p1453 = pneg %p1452
    $region54: #{resblock_pallas.3} parent=5 // pred_check_branch
      %1455 = sbr.rel (%p1453) target = $region56
    $region55: #{resblock_pallas.3} parent=5 // pred_region
      %s1456 = ssub.s32 %s14, 2
      // Predicated region
      $region57: #{resblock_pallas.3} parent=55 // pred_check
        %p1457 = pneg %p153
      $region58: #{resblock_pallas.3} parent=55 // pred_check_branch
        %1459 = sbr.rel (%p1457) target = $region60
      $region59: #{resblock_pallas.3} parent=55 // pred_region
        %s1460 = smul.u32 8, %s20
        %p1461 = scmp.lt.s32.totalorder %s1460, 15
        %s1462 = scalar_select %p1461, %s1460, 15
        %s1463 = smul.addr %s1462, 2
        %s1464 = smul.addr %s1463, 8
        %s1465 = scalar_lea.vmem %s5, %s1464
      $region60: #{resblock_pallas.3} parent=55 // pred_fallthru
        _
      // Predicated region
      $region61: #{resblock_pallas.3} parent=55 // pred_check
        %p1466 = pneg %p179
      $region62: #{resblock_pallas.3} parent=55 // pred_check_branch
        %1468 = sbr.rel (%p1466) target = $region64
      $region63: #{resblock_pallas.3} parent=55 // pred_region
        %p1469 = scmp.lt.s32.totalorder %s20, 1
        %s1470 = scalar_select %p1469, %s20, 1
        %s1471 = smul.addr %s1470, 2
        %s1472 = scalar_lea.vmem %s6, %s1471
      $region64: #{resblock_pallas.3} parent=55 // pred_fallthru
        _
      // Predicated region
      $region65: #{resblock_pallas.3} parent=55 // pred_check
        %p1473 = pneg %p205
      $region66: #{resblock_pallas.3} parent=55 // pred_check_branch
        %1475 = sbr.rel (%p1473) target = $region68
      $region67: #{resblock_pallas.3} parent=55 // pred_region
        %p1476 = scmp.lt.s32.totalorder %s20, 1
        %s1477 = scalar_select %p1476, %s20, 1
        %s1478 = smul.addr %s1477, 2
        %s1479 = scalar_lea.vmem %s7, %s1478
      $region68: #{resblock_pallas.3} parent=55 // pred_fallthru
        _
    $region56: #{resblock_pallas.3} parent=5 // pred_fallthru
      _
  $region6: #{resblock_pallas.3} parent=0 // loop_footer
    %s18 = sadd.s32 1, %s14
  $region7: #{resblock_pallas.3} parent=0 // loop_footer_branch
    %13 = sbr.rel target = $region3
  $region8: #{resblock_pallas.3} parent=0 // loop_exit
    _

// kernel: resblock_pallas.4
$region0: #{resblock_pallas.4}
  #allocation0 [shape = 'u32[]', space=smem, size = 0x4, offset = 0x4, fixed_abs, tag = 'smem constant byte address 0x4 - core index']
  #allocation1 [shape = 'u32[144,128]{1,0:T(1,128)}', space=vmem, size = 0x12000, scoped, tag = 'internal scratch']
  #allocation2 [shape = 'f32[8,10,256]{2,1,0:T(8,128)}', space=vmem, size = 0x20000, scoped, tag = 'scratch operand']
  %s0 = inlined_call_operand.vmem [shape: f32[128,256], index: 0, kind: input, shape index: {}]
  %s1 = inlined_call_operand.vmem [shape: f32[3,256,256], index: 1, kind: input, shape index: {}]
  %s2 = inlined_call_operand.vmem [shape: f32[1,256], index: 2, kind: input, shape index: {}]
  %s3 = inlined_call_operand.vmem [shape: f32[1,256], index: 3, kind: input, shape index: {}]
  %s4 = inlined_call_operand.vmem [shape: f32[1,256], index: 4, kind: input, shape index: {}]
  %s5 = inlined_call_operand.vmem [shape: f32[128,256], index: 5, kind: output, shape index: {0}]
  %s6 = inlined_call_operand.vmem [shape: f32[2,1,256], index: 6, kind: output, shape index: {1}]
  %s7 = inlined_call_operand.vmem [shape: f32[2,1,256], index: 7, kind: output, shape index: {2}]
  %8 = xla_tuple %s5, %s6, %s7
  %s9 = sld [smem:[#allocation0]]
  $region69: #{resblock_pallas.4} parent=0
    _
  %s11 = ssub.s32 1, %s9
  %s12 = scalar_select 0, %s11, %s9
  loop: start=0, step=1, limit=4
  $region2: #{resblock_pallas.4} parent=0 // loop_pre_header
    _
  $region3: #{resblock_pallas.4} parent=0 // loop_header
    %s14 = sphi 0, %s18
    %p15 = scmp.ge.s32.totalorder %s14, 4
    %s24 = sphi 0, %s26
    %s27 = sphi 0, %s24
    %s28 = sphi 0, %s27
    %s44 = sphi 0, %s28
    %s48 = sphi 0, %s48
    %s50 = sphi 0, %s48
    %s51 = sphi 0, %s50
    %s65 = sphi 0, %s51
    %s69 = sphi 0, %s69
    %s71 = sphi 0, %s69
    %s72 = sphi 0, %s71
    %s86 = sphi 0, %s72
    %s90 = sphi 0, %s90
    %s92 = sphi 0, %s90
    %s93 = sphi 0, %s92
    %s107 = sphi 0, %s93
    %s111 = sphi 0, %s111
    %s113 = sphi 0, %s111
    %s114 = sphi 0, %s113
    %s128 = sphi 0, %s114
    %s134 = sphi 0, %s136
    %s137 = sphi 0, %s134
    %s138 = sphi 0, %s137
    %s154 = sphi 0, %s138
    %s160 = sphi 0, %s162
    %s163 = sphi 0, %s160
    %s164 = sphi 0, %s163
    %s180 = sphi 0, %s164
    %s186 = sphi 0, %s188
    %s189 = sphi 0, %s186
    %s190 = sphi 0, %s189
    %s206 = sphi 0, %s190
  $region4: #{resblock_pallas.4} parent=0 // loop_header_branch
    %17 = sbr.rel (%p15) target = $region8
  $region5: #{resblock_pallas.4} parent=0 // loop_body
    %s19 = ssub.s32 %s14, 1
    %s20 = ssub.s32 %s14, 2
    %s21 = sadd.s32 %s14, 1
    %s22 = ssub.s32 %s14, %s21
    %p23 = scmp.eq.s32.totalorder %s22, 0
    %s25 = sadd.s32 %s24, 1
    %s26 = scalar_select %p23, %s24, %s25
    %p29 = pneg %p23
    %p30 = scmp.eq.s32.totalorder %s14, 1
    %p31 = por %p29, %p30
    %p32 = scmp.ne.s32.totalorder %s24, %s27
    %p33 = scmp.eq.s32.totalorder %s14, 0
    %p34 = por %p32, %p33
    %p35 = scmp.ne.s32.totalorder %s24, %s27
    %p36 = scmp.eq.s32.totalorder %s19, 1
    %p37 = por %p35, %p36
    %p38 = scmp.ne.s32.totalorder %s27, %s28
    %p39 = scmp.eq.s32.totalorder %s19, 0
    %p40 = por %p38, %p39
    %p41 = scmp.ne.s32.totalorder %s27, %s28
    %p42 = scmp.eq.s32.totalorder %s20, 1
    %p43 = por %p41, %p42
    %p45 = scmp.ne.s32.totalorder %s28, %s44
    %p46 = scmp.eq.s32.totalorder %s20, 0
    %p47 = por %p45, %p46
    %s49 = sadd.s32 %s48, 1
    %p52 = scmp.eq.s32.totalorder %s14, 1
    %p53 = scmp.ne.s32.totalorder %s48, %s50
    %p54 = scmp.eq.s32.totalorder %s14, 0
    %p55 = por %p53, %p54
    %p56 = scmp.ne.s32.totalorder %s48, %s50
    %p57 = scmp.eq.s32.totalorder %s19, 1
    %p58 = por %p56, %p57
    %p59 = scmp.ne.s32.totalorder %s50, %s51
    %p60 = scmp.eq.s32.totalorder %s19, 0
    %p61 = por %p59, %p60
    %p62 = scmp.ne.s32.totalorder %s50, %s51
    %p63 = scmp.eq.s32.totalorder %s20, 1
    %p64 = por %p62, %p63
    %p66 = scmp.ne.s32.totalorder %s51, %s65
    %p67 = scmp.eq.s32.totalorder %s20, 0
    %p68 = por %p66, %p67
    %s70 = sadd.s32 %s69, 1
    %p73 = scmp.eq.s32.totalorder %s14, 1
    %p74 = scmp.ne.s32.totalorder %s69, %s71
    %p75 = scmp.eq.s32.totalorder %s14, 0
    %p76 = por %p74, %p75
    %p77 = scmp.ne.s32.totalorder %s69, %s71
    %p78 = scmp.eq.s32.totalorder %s19, 1
    %p79 = por %p77, %p78
    %p80 = scmp.ne.s32.totalorder %s71, %s72
    %p81 = scmp.eq.s32.totalorder %s19, 0
    %p82 = por %p80, %p81
    %p83 = scmp.ne.s32.totalorder %s71, %s72
    %p84 = scmp.eq.s32.totalorder %s20, 1
    %p85 = por %p83, %p84
    %p87 = scmp.ne.s32.totalorder %s72, %s86
    %p88 = scmp.eq.s32.totalorder %s20, 0
    %p89 = por %p87, %p88
    %s91 = sadd.s32 %s90, 1
    %p94 = scmp.eq.s32.totalorder %s14, 1
    %p95 = scmp.ne.s32.totalorder %s90, %s92
    %p96 = scmp.eq.s32.totalorder %s14, 0
    %p97 = por %p95, %p96
    %p98 = scmp.ne.s32.totalorder %s90, %s92
    %p99 = scmp.eq.s32.totalorder %s19, 1
    %p100 = por %p98, %p99
    %p101 = scmp.ne.s32.totalorder %s92, %s93
    %p102 = scmp.eq.s32.totalorder %s19, 0
    %p103 = por %p101, %p102
    %p104 = scmp.ne.s32.totalorder %s92, %s93
    %p105 = scmp.eq.s32.totalorder %s20, 1
    %p106 = por %p104, %p105
    %p108 = scmp.ne.s32.totalorder %s93, %s107
    %p109 = scmp.eq.s32.totalorder %s20, 0
    %p110 = por %p108, %p109
    %s112 = sadd.s32 %s111, 1
    %p115 = scmp.eq.s32.totalorder %s14, 1
    %p116 = scmp.ne.s32.totalorder %s111, %s113
    %p117 = scmp.eq.s32.totalorder %s14, 0
    %p118 = por %p116, %p117
    %p119 = scmp.ne.s32.totalorder %s111, %s113
    %p120 = scmp.eq.s32.totalorder %s19, 1
    %p121 = por %p119, %p120
    %p122 = scmp.ne.s32.totalorder %s113, %s114
    %p123 = scmp.eq.s32.totalorder %s19, 0
    %p124 = por %p122, %p123
    %p125 = scmp.ne.s32.totalorder %s113, %s114
    %p126 = scmp.eq.s32.totalorder %s20, 1
    %p127 = por %p125, %p126
    %p129 = scmp.ne.s32.totalorder %s114, %s128
    %p130 = scmp.eq.s32.totalorder %s20, 0
    %p131 = por %p129, %p130
    %s132 = ssub.s32 %s14, %s21
    %p133 = scmp.eq.s32.totalorder %s132, 0
    %s135 = sadd.s32 %s134, 1
    %s136 = scalar_select %p133, %s134, %s135
    %p139 = pneg %p133
    %p140 = scmp.eq.s32.totalorder %s14, 1
    %p141 = por %p139, %p140
    %p142 = scmp.ne.s32.totalorder %s134, %s137
    %p143 = scmp.eq.s32.totalorder %s14, 0
    %p144 = por %p142, %p143
    %p145 = scmp.ne.s32.totalorder %s134, %s137
    %p146 = scmp.eq.s32.totalorder %s19, 1
    %p147 = por %p145, %p146
    %p148 = scmp.ne.s32.totalorder %s137, %s138
    %p149 = scmp.eq.s32.totalorder %s19, 0
    %p150 = por %p148, %p149
    %p151 = scmp.ne.s32.totalorder %s137, %s138
    %p152 = scmp.eq.s32.totalorder %s20, 1
    %p153 = por %p151, %p152
    %p155 = scmp.ne.s32.totalorder %s138, %s154
    %p156 = scmp.eq.s32.totalorder %s20, 0
    %p157 = por %p155, %p156
    %s158 = ssub.s32 %s14, %s21
    %p159 = scmp.eq.s32.totalorder %s158, 0
    %s161 = sadd.s32 %s160, 1
    %s162 = scalar_select %p159, %s160, %s161
    %p165 = pneg %p159
    %p166 = scmp.eq.s32.totalorder %s14, 1
    %p167 = por %p165, %p166
    %p168 = scmp.ne.s32.totalorder %s160, %s163
    %p169 = scmp.eq.s32.totalorder %s14, 0
    %p170 = por %p168, %p169
    %p171 = scmp.ne.s32.totalorder %s160, %s163
    %p172 = scmp.eq.s32.totalorder %s19, 1
    %p173 = por %p171, %p172
    %p174 = scmp.ne.s32.totalorder %s163, %s164
    %p175 = scmp.eq.s32.totalorder %s19, 0
    %p176 = por %p174, %p175
    %p177 = scmp.ne.s32.totalorder %s163, %s164
    %p178 = scmp.eq.s32.totalorder %s20, 1
    %p179 = por %p177, %p178
    %p181 = scmp.ne.s32.totalorder %s164, %s180
    %p182 = scmp.eq.s32.totalorder %s20, 0
    %p183 = por %p181, %p182
    %s184 = ssub.s32 %s14, %s21
    %p185 = scmp.eq.s32.totalorder %s184, 0
    %s187 = sadd.s32 %s186, 1
    %s188 = scalar_select %p185, %s186, %s187
    %p191 = pneg %p185
    %p192 = scmp.eq.s32.totalorder %s14, 1
    %p193 = por %p191, %p192
    %p194 = scmp.ne.s32.totalorder %s186, %s189
    %p195 = scmp.eq.s32.totalorder %s14, 0
    %p196 = por %p194, %p195
    %p197 = scmp.ne.s32.totalorder %s186, %s189
    %p198 = scmp.eq.s32.totalorder %s19, 1
    %p199 = por %p197, %p198
    %p200 = scmp.ne.s32.totalorder %s189, %s190
    %p201 = scmp.eq.s32.totalorder %s19, 0
    %p202 = por %p200, %p201
    %p203 = scmp.ne.s32.totalorder %s189, %s190
    %p204 = scmp.eq.s32.totalorder %s20, 1
    %p205 = por %p203, %p204
    %p207 = scmp.ne.s32.totalorder %s190, %s206
    %p208 = scmp.eq.s32.totalorder %s20, 0
    %p209 = por %p207, %p208
    %p210 = scmp.le.s32.totalorder 1, %s14
    %p211 = scmp.lt.s32.totalorder %s14, 3
    %p212 = pnand %p210, %p211
    %p213 = pneg %p212
    // Predicated region
    $region9: #{resblock_pallas.4} parent=5 // pred_check
      _
    $region10: #{resblock_pallas.4} parent=5 // pred_check_branch
      %215 = sbr.rel (%p212) target = $region12
    $region11: #{resblock_pallas.4} parent=5 // pred_region
      %s216 = ssub.s32 %s14, 1
      // Predicated region
      $region13: #{resblock_pallas.4} parent=11 // pred_check
        %p217 = pneg %p61
      $region14: #{resblock_pallas.4} parent=11 // pred_check_branch
        %219 = sbr.rel (%p217) target = $region16
      $region15: #{resblock_pallas.4} parent=11 // pred_region
        _
      $region16: #{resblock_pallas.4} parent=11 // pred_fallthru
        _
      // Predicated region
      $region17: #{resblock_pallas.4} parent=11 // pred_check
        %p220 = pneg %p82
      $region18: #{resblock_pallas.4} parent=11 // pred_check_branch
        %222 = sbr.rel (%p220) target = $region20
      $region19: #{resblock_pallas.4} parent=11 // pred_region
        _
      $region20: #{resblock_pallas.4} parent=11 // pred_fallthru
        _
      // Predicated region
      $region21: #{resblock_pallas.4} parent=11 // pred_check
        %p223 = pneg %p103
      $region22: #{resblock_pallas.4} parent=11 // pred_check_branch
        %225 = sbr.rel (%p223) target = $region24
      $region23: #{resblock_pallas.4} parent=11 // pred_region
        _
      $region24: #{resblock_pallas.4} parent=11 // pred_fallthru
        _
      // Predicated region
      $region25: #{resblock_pallas.4} parent=11 // pred_check
        %p226 = pneg %p124
      $region26: #{resblock_pallas.4} parent=11 // pred_check_branch
        %228 = sbr.rel (%p226) target = $region28
      $region27: #{resblock_pallas.4} parent=11 // pred_region
        _
      $region28: #{resblock_pallas.4} parent=11 // pred_fallthru
        _
    $region12: #{resblock_pallas.4} parent=5 // pred_fallthru
      _
    %p229 = scmp.lt.s32.totalorder %s14, 2
    // Predicated region
    $region29: #{resblock_pallas.4} parent=5 // pred_check
      %p230 = pneg %p229
    $region30: #{resblock_pallas.4} parent=5 // pred_check_branch
      %232 = sbr.rel (%p230) target = $region32
    $region31: #{resblock_pallas.4} parent=5 // pred_region
      // Predicated region
      $region33: #{resblock_pallas.4} parent=31 // pred_check
        %p233 = pneg %p34
      $region34: #{resblock_pallas.4} parent=31 // pred_check_branch
        %235 = sbr.rel (%p233) target = $region36
      $region35: #{resblock_pallas.4} parent=31 // pred_region
        %s236 = smul.u32 8, %s14
        %p237 = scmp.lt.s32.totalorder %s236, 15
        %s238 = scalar_select %p237, %s236, 15
        %s239 = smul.addr %s238, 2
        %s240 = smul.addr %s239, 8
        %s241 = scalar_lea.vmem %s0, %s240
        %s242 = smul.u32 8, %s14
      $region36: #{resblock_pallas.4} parent=31 // pred_fallthru
        _
    $region32: #{resblock_pallas.4} parent=5 // pred_fallthru
      _
    %p243 = scmp.le.s32.totalorder 1, %s14
    %p244 = scmp.lt.s32.totalorder %s14, 3
    %p245 = pnand %p243, %p244
    %p246 = pneg %p245
    // Predicated region
    $region37: #{resblock_pallas.4} parent=5 // pred_check
      _
    $region38: #{resblock_pallas.4} parent=5 // pred_check_branch
      %248 = sbr.rel (%p245) target = $region40
    $region39: #{resblock_pallas.4} parent=5 // pred_region
      %s249 = ssub.s32 %s14, 1
      %s250 = smul.u32 8, %s19
      %p251 = scmp.lt.s32.totalorder %s250, 15
      %s252 = scalar_select %p251, %s250, 15
      %s253 = smul.addr %s252, 2
      %s254 = smul.addr %s253, 8
      %s255 = scalar_lea.vmem %s0, %s254
      %p256 = pneg %p40
      %p257 = pneg %p37
      %p258 = pneg %p61
      %p259 = pneg %p58
      %p260 = pneg %p82
      %p261 = pneg %p79
      %p262 = pneg %p103
      %p263 = pneg %p100
      %p264 = pneg %p124
      %p265 = pneg %p121
      %p266 = pneg %p150
      %p267 = pneg %p147
      %s268 = smul.u32 8, %s19
      %p269 = scmp.lt.s32.totalorder %s268, 15
      %s270 = scalar_select %p269, %s268, 15
      %s271 = smul.addr %s270, 2
      %s272 = smul.addr %s271, 8
      %s273 = scalar_lea.vmem %s5, %s272
      %p274 = pneg %p176
      %p275 = pneg %p173
      %p276 = scmp.lt.s32.totalorder %s19, 1
      %s277 = scalar_select %p276, %s19, 1
      %s278 = smul.addr %s277, 2
      %s279 = scalar_lea.vmem %s6, %s278
      %p280 = pneg %p202
      %p281 = pneg %p199
      %p282 = scmp.lt.s32.totalorder %s19, 1
      %s283 = scalar_select %p282, %s19, 1
      %s284 = smul.addr %s283, 2
      %s285 = scalar_lea.vmem %s7, %s284
      %s286 = smul.u32 8, %s19
      %p287 = scmp.lt.s32.totalorder %s286, 15
      %s288 = scalar_select %p287, %s286, 15
      %s289 = smul.addr %s288, 2
      %s290 = smul.addr %s289, 8
      %s291 = scalar_lea.vmem %s0, %s290
      %s292 = smul.u32 8, %s19
      %s293 = smul.u32 8, %s19
      %p294 = scmp.lt.s32.totalorder %s293, 15
      %s295 = scalar_select %p294, %s293, 15
      %s296 = smul.addr %s295, 2
      %s297 = smul.addr %s296, 8
      %s298 = scalar_lea.vmem %s5, %s297
      %s299 = smul.u32 8, %s19
      %p300 = scmp.lt.s32.totalorder %s19, 1
      %s301 = scalar_select %p300, %s19, 1
      %s302 = smul.addr %s301, 2
      %s303 = scalar_lea.vmem %s6, %s302
      %p304 = scmp.lt.s32.totalorder %s19, 1
      %s305 = scalar_select %p304, %s19, 1
      %s306 = smul.addr %s305, 2
      %s307 = scalar_lea.vmem %s7, %s306
      %v308 = vld [vmem:[%s291] sm:$0xff]
      %v309 = vld [vmem:[%s291 + $0x8] sm:$0xff]
      %v310 = vld [vmem:[%s291 + $0x10] sm:$0xff]
      %v311 = vld [vmem:[%s291 + $0x18] sm:$0xff]
      %v312 = vld [vmem:[%s291 + $0x20] sm:$0xff]
      %v313 = vld [vmem:[%s291 + $0x28] sm:$0xff]
      %v314 = vld [vmem:[%s291 + $0x30] sm:$0xff]
      %v315 = vld [vmem:[%s291 + $0x38] sm:$0xff]
      %v316 = vld [vmem:[%s291 + $0x40] sm:$0xff]
      %v317 = vld [vmem:[%s291 + $0x48] sm:$0xff]
      %v318 = vld [vmem:[%s291 + $0x50] sm:$0xff]
      %v319 = vld [vmem:[%s291 + $0x58] sm:$0xff]
      %v320 = vld [vmem:[%s291 + $0x60] sm:$0xff]
      %v321 = vld [vmem:[%s291 + $0x68] sm:$0xff]
      %v322 = vld [vmem:[%s291 + $0x70] sm:$0xff]
      %v323 = vld [vmem:[%s291 + $0x78] sm:$0xff]
      %v324 = vld [vmem:[%s3] sm:$0x3]
      %v326 = vlaneseq
      %v327 = vshrl.u32 %v326, 7
      %v328 = vsub.s32 0, %v327
      %v329 = vrot.slane %v324, %v328
      %v330 = vlaneseq
      %v331 = vshrl.u32 %v330, 7
      %v332 = vsub.s32 1, %v331
      %v333 = vrot.slane %v324, %v332
      %v336 = vmul.f32 %v308, %v329
      %v337 = vmul.f32 %v309, %v333
      %v338 = vmul.f32 %v310, %v329
      %v339 = vmul.f32 %v311, %v333
      %v340 = vmul.f32 %v312, %v329
      %v341 = vmul.f32 %v313, %v333
      %v342 = vmul.f32 %v314, %v329
      %v343 = vmul.f32 %v315, %v333
      %v344 = vmul.f32 %v316, %v329
      %v345 = vmul.f32 %v317, %v333
      %v346 = vmul.f32 %v318, %v329
      %v347 = vmul.f32 %v319, %v333
      %v348 = vmul.f32 %v320, %v329
      %v349 = vmul.f32 %v321, %v333
      %v350 = vmul.f32 %v322, %v329
      %v351 = vmul.f32 %v323, %v333
      %v352 = vld [vmem:[%s4] sm:$0x3]
      %v354 = vlaneseq
      %v355 = vshrl.u32 %v354, 7
      %v356 = vsub.s32 0, %v355
      %v357 = vrot.slane %v352, %v356
      %v358 = vlaneseq
      %v359 = vshrl.u32 %v358, 7
      %v360 = vsub.s32 1, %v359
      %v361 = vrot.slane %v352, %v360
      %v364 = vadd.f32 %v336, %v357
      %v365 = vadd.f32 %v337, %v361
      %v366 = vadd.f32 %v338, %v357
      %v367 = vadd.f32 %v339, %v361
      %v368 = vadd.f32 %v340, %v357
      %v369 = vadd.f32 %v341, %v361
      %v370 = vadd.f32 %v342, %v357
      %v371 = vadd.f32 %v343, %v361
      %v372 = vadd.f32 %v344, %v357
      %v373 = vadd.f32 %v345, %v361
      %v374 = vadd.f32 %v346, %v357
      %v375 = vadd.f32 %v347, %v361
      %v376 = vadd.f32 %v348, %v357
      %v377 = vadd.f32 %v349, %v361
      %v378 = vadd.f32 %v350, %v357
      %v379 = vadd.f32 %v351, %v361
      %v380 = vmax.f32 %v364, 0.0
      %v381 = vmax.f32 %v365, 0.0
      %v382 = vmax.f32 %v366, 0.0
      %v383 = vmax.f32 %v367, 0.0
      %v384 = vmax.f32 %v368, 0.0
      %v385 = vmax.f32 %v369, 0.0
      %v386 = vmax.f32 %v370, 0.0
      %v387 = vmax.f32 %v371, 0.0
      %v388 = vmax.f32 %v372, 0.0
      %v389 = vmax.f32 %v373, 0.0
      %v390 = vmax.f32 %v374, 0.0
      %v391 = vmax.f32 %v375, 0.0
      %v392 = vmax.f32 %v376, 0.0
      %v393 = vmax.f32 %v377, 0.0
      %v394 = vmax.f32 %v378, 0.0
      %v395 = vmax.f32 %v379, 0.0
      %v396 = vlaneseq
      %vm397 = vcmp.ge.s32.totalorder %v396, 0
      %vm398 = vcmp.lt.s32.totalorder %v396, 256
      %vm399 = vmand %vm397, %vm398
      %400 = vst.msk [vmem:[#allocation2] ss:$8 sm:$0x3] %vm399, 0.0
      %401 = vst.msk [vmem:[#allocation2] ss:$8 sm:$0x0] %vm399, 0.0
      %s402 = scalar_lea.vmem [#allocation2], 32
      %403 = vst.msk [vmem:[%s402] ss:$8 sm:$0x3] %vm399, 0.0
      %404 = vst.msk [vmem:[%s402] ss:$8 sm:$0x0] %vm399, 0.0
      %s405 = scalar_lea.vmem [#allocation2], 64
      %406 = vst.msk [vmem:[%s405] ss:$8 sm:$0x3] %vm399, 0.0
      %407 = vst.msk [vmem:[%s405] ss:$8 sm:$0x0] %vm399, 0.0
      %s408 = scalar_lea.vmem [#allocation2], 96
      %409 = vst.msk [vmem:[%s408] ss:$8 sm:$0x3] %vm399, 0.0
      %410 = vst.msk [vmem:[%s408] ss:$8 sm:$0x0] %vm399, 0.0
      %s411 = scalar_lea.vmem [#allocation2], 128
      %412 = vst.msk [vmem:[%s411] ss:$8 sm:$0x3] %vm399, 0.0
      %413 = vst.msk [vmem:[%s411] ss:$8 sm:$0x0] %vm399, 0.0
      %s414 = scalar_lea.vmem [#allocation2], 160
      %415 = vst.msk [vmem:[%s414] ss:$8 sm:$0x3] %vm399, 0.0
      %416 = vst.msk [vmem:[%s414] ss:$8 sm:$0x0] %vm399, 0.0
      %s417 = scalar_lea.vmem [#allocation2], 192
      %418 = vst.msk [vmem:[%s417] ss:$8 sm:$0x3] %vm399, 0.0
      %419 = vst.msk [vmem:[%s417] ss:$8 sm:$0x0] %vm399, 0.0
      %s420 = scalar_lea.vmem [#allocation2], 224
      %421 = vst.msk [vmem:[%s420] ss:$8 sm:$0x3] %vm399, 0.0
      %422 = vst.msk [vmem:[%s420] ss:$8 sm:$0x0] %vm399, 0.0
      %s423 = scalar_lea.vmem [#allocation2], 17
      %424 = vst.msk [vmem:[%s423] ss:$8 sm:$0x3] %vm399, 0.0
      %425 = vst.msk [vmem:[%s423] ss:$8 sm:$0x0] %vm399, 0.0
      %s426 = scalar_lea.vmem [#allocation2], 49
      %427 = vst.msk [vmem:[%s426] ss:$8 sm:$0x3] %vm399, 0.0
      %428 = vst.msk [vmem:[%s426] ss:$8 sm:$0x0] %vm399, 0.0
      %s429 = scalar_lea.vmem [#allocation2], 81
      %430 = vst.msk [vmem:[%s429] ss:$8 sm:$0x3] %vm399, 0.0
      %431 = vst.msk [vmem:[%s429] ss:$8 sm:$0x0] %vm399, 0.0
      %s432 = scalar_lea.vmem [#allocation2], 113
      %433 = vst.msk [vmem:[%s432] ss:$8 sm:$0x3] %vm399, 0.0
      %434 = vst.msk [vmem:[%s432] ss:$8 sm:$0x0] %vm399, 0.0
      %s435 = scalar_lea.vmem [#allocation2], 145
      %436 = vst.msk [vmem:[%s435] ss:$8 sm:$0x3] %vm399, 0.0
      %437 = vst.msk [vmem:[%s435] ss:$8 sm:$0x0] %vm399, 0.0
      %s438 = scalar_lea.vmem [#allocation2], 177
      %439 = vst.msk [vmem:[%s438] ss:$8 sm:$0x3] %vm399, 0.0
      %440 = vst.msk [vmem:[%s438] ss:$8 sm:$0x0] %vm399, 0.0
      %s441 = scalar_lea.vmem [#allocation2], 209
      %442 = vst.msk [vmem:[%s441] ss:$8 sm:$0x3] %vm399, 0.0
      %443 = vst.msk [vmem:[%s441] ss:$8 sm:$0x0] %vm399, 0.0
      %s444 = scalar_lea.vmem [#allocation2], 241
      %445 = vst.msk [vmem:[%s444] ss:$8 sm:$0x3] %vm399, 0.0
      %446 = vst.msk [vmem:[%s444] ss:$8 sm:$0x0] %vm399, 0.0
      %v463 = vrot.slane %v380, 7
      %v464 = vrot.slane %v381, 7
      %v465 = vrot.slane %v382, 7
      %v466 = vrot.slane %v383, 7
      %v467 = vrot.slane %v384, 7
      %v468 = vrot.slane %v385, 7
      %v469 = vrot.slane %v386, 7
      %v470 = vrot.slane %v387, 7
      %v471 = vrot.slane %v388, 7
      %v472 = vrot.slane %v389, 7
      %v473 = vrot.slane %v390, 7
      %v474 = vrot.slane %v391, 7
      %v475 = vrot.slane %v392, 7
      %v476 = vrot.slane %v393, 7
      %v477 = vrot.slane %v394, 7
      %v478 = vrot.slane %v395, 7
      %495 = vst [vmem:[#allocation2] sm:$0xfe] %v463
      %496 = vst [vmem:[#allocation2 + $0x8] sm:$0xfe] %v464
      %497 = vst [vmem:[#allocation2 + $0x10] sm:$0x1] %v463
      %498 = vst [vmem:[#allocation2 + $0x18] sm:$0x1] %v464
      %499 = vst [vmem:[#allocation2 + $0x20] sm:$0xfe] %v465
      %500 = vst [vmem:[#allocation2 + $0x28] sm:$0xfe] %v466
      %501 = vst [vmem:[#allocation2 + $0x30] sm:$0x1] %v465
      %502 = vst [vmem:[#allocation2 + $0x38] sm:$0x1] %v466
      %503 = vst [vmem:[#allocation2 + $0x40] sm:$0xfe] %v467
      %504 = vst [vmem:[#allocation2 + $0x48] sm:$0xfe] %v468
      %505 = vst [vmem:[#allocation2 + $0x50] sm:$0x1] %v467
      %506 = vst [vmem:[#allocation2 + $0x58] sm:$0x1] %v468
      %507 = vst [vmem:[#allocation2 + $0x60] sm:$0xfe] %v469
      %508 = vst [vmem:[#allocation2 + $0x68] sm:$0xfe] %v470
      %509 = vst [vmem:[#allocation2 + $0x70] sm:$0x1] %v469
      %510 = vst [vmem:[#allocation2 + $0x78] sm:$0x1] %v470
      %511 = vst [vmem:[#allocation2 + $0x80] sm:$0xfe] %v471
      %512 = vst [vmem:[#allocation2 + $0x88] sm:$0xfe] %v472
      %513 = vst [vmem:[#allocation2 + $0x90] sm:$0x1] %v471
      %514 = vst [vmem:[#allocation2 + $0x98] sm:$0x1] %v472
      %515 = vst [vmem:[#allocation2 + $0xa0] sm:$0xfe] %v473
      %516 = vst [vmem:[#allocation2 + $0xa8] sm:$0xfe] %v474
      %517 = vst [vmem:[#allocation2 + $0xb0] sm:$0x1] %v473
      %518 = vst [vmem:[#allocation2 + $0xb8] sm:$0x1] %v474
      %519 = vst [vmem:[#allocation2 + $0xc0] sm:$0xfe] %v475
      %520 = vst [vmem:[#allocation2 + $0xc8] sm:$0xfe] %v476
      %521 = vst [vmem:[#allocation2 + $0xd0] sm:$0x1] %v475
      %522 = vst [vmem:[#allocation2 + $0xd8] sm:$0x1] %v476
      %523 = vst [vmem:[#allocation2 + $0xe0] sm:$0xfe] %v477
      %524 = vst [vmem:[#allocation2 + $0xe8] sm:$0xfe] %v478
      %525 = vst [vmem:[#allocation2 + $0xf0] sm:$0x1] %v477
      %526 = vst [vmem:[#allocation2 + $0xf8] sm:$0x1] %v478
      %v527 = vld [vmem:[#allocation2] sm:$0xff]
      %v528 = vld [vmem:[#allocation2 + $0x8] sm:$0xff]
      %v529 = vld [vmem:[#allocation2 + $0x20] sm:$0xff]
      %v530 = vld [vmem:[#allocation2 + $0x28] sm:$0xff]
      %v531 = vld [vmem:[#allocation2 + $0x40] sm:$0xff]
      %v532 = vld [vmem:[#allocation2 + $0x48] sm:$0xff]
      %v533 = vld [vmem:[#allocation2 + $0x60] sm:$0xff]
      %v534 = vld [vmem:[#allocation2 + $0x68] sm:$0xff]
      %v535 = vld [vmem:[#allocation2 + $0x80] sm:$0xff]
      %v536 = vld [vmem:[#allocation2 + $0x88] sm:$0xff]
      %v537 = vld [vmem:[#allocation2 + $0xa0] sm:$0xff]
      %v538 = vld [vmem:[#allocation2 + $0xa8] sm:$0xff]
      %v539 = vld [vmem:[#allocation2 + $0xc0] sm:$0xff]
      %v540 = vld [vmem:[#allocation2 + $0xc8] sm:$0xff]
      %v541 = vld [vmem:[#allocation2 + $0xe0] sm:$0xff]
      %v542 = vld [vmem:[#allocation2 + $0xe8] sm:$0xff]
      %v543 = vld [vmem:[%s1] sm:$0xff]
      %v544 = vld [vmem:[%s1 + $0x8] sm:$0xff]
      %v545 = vld [vmem:[%s1 + $0x10] sm:$0xff]
      %v546 = vld [vmem:[%s1 + $0x18] sm:$0xff]
      %v547 = vld [vmem:[%s1 + $0x20] sm:$0xff]
      %v548 = vld [vmem:[%s1 + $0x28] sm:$0xff]
      %v549 = vld [vmem:[%s1 + $0x30] sm:$0xff]
      %v550 = vld [vmem:[%s1 + $0x38] sm:$0xff]
      %v551 = vld [vmem:[%s1 + $0x40] sm:$0xff]
      %v552 = vld [vmem:[%s1 + $0x48] sm:$0xff]
      %v553 = vld [vmem:[%s1 + $0x50] sm:$0xff]
      %v554 = vld [vmem:[%s1 + $0x58] sm:$0xff]
      %v555 = vld [vmem:[%s1 + $0x60] sm:$0xff]
      %v556 = vld [vmem:[%s1 + $0x68] sm:$0xff]
      %v557 = vld [vmem:[%s1 + $0x70] sm:$0xff]
      %v558 = vld [vmem:[%s1 + $0x78] sm:$0xff]
      %v559 = vld [vmem:[%s1 + $0x80] sm:$0xff]
      %v560 = vld [vmem:[%s1 + $0x88] sm:$0xff]
      %v561 = vld [vmem:[%s1 + $0x90] sm:$0xff]
      %v562 = vld [vmem:[%s1 + $0x98] sm:$0xff]
      %v563 = vld [vmem:[%s1 + $0xa0] sm:$0xff]
      %v564 = vld [vmem:[%s1 + $0xa8] sm:$0xff]
      %v565 = vld [vmem:[%s1 + $0xb0] sm:$0xff]
      %v566 = vld [vmem:[%s1 + $0xb8] sm:$0xff]
      %v567 = vld [vmem:[%s1 + $0xc0] sm:$0xff]
      %v568 = vld [vmem:[%s1 + $0xc8] sm:$0xff]
      %v569 = vld [vmem:[%s1 + $0xd0] sm:$0xff]
      %v570 = vld [vmem:[%s1 + $0xd8] sm:$0xff]
      %v571 = vld [vmem:[%s1 + $0xe0] sm:$0xff]
      %v572 = vld [vmem:[%s1 + $0xe8] sm:$0xff]
      %v573 = vld [vmem:[%s1 + $0xf0] sm:$0xff]
      %v574 = vld [vmem:[%s1 + $0xf8] sm:$0xff]
      %v575 = vld [vmem:[%s1 + $0x100] sm:$0xff]
      %v576 = vld [vmem:[%s1 + $0x108] sm:$0xff]
      %v577 = vld [vmem:[%s1 + $0x110] sm:$0xff]
      %v578 = vld [vmem:[%s1 + $0x118] sm:$0xff]
      %v579 = vld [vmem:[%s1 + $0x120] sm:$0xff]
      %v580 = vld [vmem:[%s1 + $0x128] sm:$0xff]
      %v581 = vld [vmem:[%s1 + $0x130] sm:$0xff]
      %v582 = vld [vmem:[%s1 + $0x138] sm:$0xff]
      %v583 = vld [vmem:[%s1 + $0x140] sm:$0xff]
      %v584 = vld [vmem:[%s1 + $0x148] sm:$0xff]
      %v585 = vld [vmem:[%s1 + $0x150] sm:$0xff]
      %v586 = vld [vmem:[%s1 + $0x158] sm:$0xff]
      %v587 = vld [vmem:[%s1 + $0x160] sm:$0xff]
      %v588 = vld [vmem:[%s1 + $0x168] sm:$0xff]
      %v589 = vld [vmem:[%s1 + $0x170] sm:$0xff]
      %v590 = vld [vmem:[%s1 + $0x178] sm:$0xff]
      %v591 = vld [vmem:[%s1 + $0x180] sm:$0xff]
      %v592 = vld [vmem:[%s1 + $0x188] sm:$0xff]
      %v593 = vld [vmem:[%s1 + $0x190] sm:$0xff]
      %v594 = vld [vmem:[%s1 + $0x198] sm:$0xff]
      %v595 = vld [vmem:[%s1 + $0x1a0] sm:$0xff]
      %v596 = vld [vmem:[%s1 + $0x1a8] sm:$0xff]
      %v597 = vld [vmem:[%s1 + $0x1b0] sm:$0xff]
      %v598 = vld [vmem:[%s1 + $0x1b8] sm:$0xff]
      %v599 = vld [vmem:[%s1 + $0x1c0] sm:$0xff]
      %v600 = vld [vmem:[%s1 + $0x1c8] sm:$0xff]
      %v601 = vld [vmem:[%s1 + $0x1d0] sm:$0xff]
      %v602 = vld [vmem:[%s1 + $0x1d8] sm:$0xff]
      %v603 = vld [vmem:[%s1 + $0x1e0] sm:$0xff]
      %v604 = vld [vmem:[%s1 + $0x1e8] sm:$0xff]
      %v605 = vld [vmem:[%s1 + $0x1f0] sm:$0xff]
      %v606 = vld [vmem:[%s1 + $0x1f8] sm:$0xff]
      %v607 = vld [vmem:[#allocation2] sm:$0xfe]
      %v608 = vld [vmem:[#allocation2 + $0x8] sm:$0xfe]
      %v609 = vld [vmem:[#allocation2 + $0x10] sm:$0x1]
      %v610 = vld [vmem:[#allocation2 + $0x18] sm:$0x1]
      %v611 = vld [vmem:[#allocation2 + $0x20] sm:$0xfe]
      %v612 = vld [vmem:[#allocation2 + $0x28] sm:$0xfe]
      %v613 = vld [vmem:[#allocation2 + $0x30] sm:$0x1]
      %v614 = vld [vmem:[#allocation2 + $0x38] sm:$0x1]
      %v615 = vld [vmem:[#allocation2 + $0x40] sm:$0xfe]
      %v616 = vld [vmem:[#allocation2 + $0x48] sm:$0xfe]
      %v617 = vld [vmem:[#allocation2 + $0x50] sm:$0x1]
      %v618 = vld [vmem:[#allocation2 + $0x58] sm:$0x1]
      %v619 = vld [vmem:[#allocation2 + $0x60] sm:$0xfe]
      %v620 = vld [vmem:[#allocation2 + $0x68] sm:$0xfe]
      %v621 = vld [vmem:[#allocation2 + $0x70] sm:$0x1]
      %v622 = vld [vmem:[#allocation2 + $0x78] sm:$0x1]
      %v623 = vld [vmem:[#allocation2 + $0x80] sm:$0xfe]
      %v624 = vld [vmem:[#allocation2 + $0x88] sm:$0xfe]
      %v625 = vld [vmem:[#allocation2 + $0x90] sm:$0x1]
      %v626 = vld [vmem:[#allocation2 + $0x98] sm:$0x1]
      %v627 = vld [vmem:[#allocation2 + $0xa0] sm:$0xfe]
      %v628 = vld [vmem:[#allocation2 + $0xa8] sm:$0xfe]
      %v629 = vld [vmem:[#allocation2 + $0xb0] sm:$0x1]
      %v630 = vld [vmem:[#allocation2 + $0xb8] sm:$0x1]
      %v631 = vld [vmem:[#allocation2 + $0xc0] sm:$0xfe]
      %v632 = vld [vmem:[#allocation2 + $0xc8] sm:$0xfe]
      %v633 = vld [vmem:[#allocation2 + $0xd0] sm:$0x1]
      %v634 = vld [vmem:[#allocation2 + $0xd8] sm:$0x1]
      %v635 = vld [vmem:[#allocation2 + $0xe0] sm:$0xfe]
      %v636 = vld [vmem:[#allocation2 + $0xe8] sm:$0xfe]
      %v637 = vld [vmem:[#allocation2 + $0xf0] sm:$0x1]
      %v638 = vld [vmem:[#allocation2 + $0xf8] sm:$0x1]
      %vm671 = vcmask 1046528
      %v672 = vrot.slane %v607, 1
      %v673 = vrot.slane %v609, 1
      %v674 = vsel %vm671, %v672, %v673
      %v675 = vrot.slane %v608, 1
      %v676 = vrot.slane %v610, 1
      %v677 = vsel %vm671, %v675, %v676
      %v678 = vrot.slane %v611, 1
      %v679 = vrot.slane %v613, 1
      %v680 = vsel %vm671, %v678, %v679
      %v681 = vrot.slane %v612, 1
      %v682 = vrot.slane %v614, 1
      %v683 = vsel %vm671, %v681, %v682
      %v684 = vrot.slane %v615, 1
      %v685 = vrot.slane %v617, 1
      %v686 = vsel %vm671, %v684, %v685
      %v687 = vrot.slane %v616, 1
      %v688 = vrot.slane %v618, 1
      %v689 = vsel %vm671, %v687, %v688
      %v690 = vrot.slane %v619, 1
      %v691 = vrot.slane %v621, 1
      %v692 = vsel %vm671, %v690, %v691
      %v693 = vrot.slane %v620, 1
      %v694 = vrot.slane %v622, 1
      %v695 = vsel %vm671, %v693, %v694
      %v696 = vrot.slane %v623, 1
      %v697 = vrot.slane %v625, 1
      %v698 = vsel %vm671, %v696, %v697
      %v699 = vrot.slane %v624, 1
      %v700 = vrot.slane %v626, 1
      %v701 = vsel %vm671, %v699, %v700
      %v702 = vrot.slane %v627, 1
      %v703 = vrot.slane %v629, 1
      %v704 = vsel %vm671, %v702, %v703
      %v705 = vrot.slane %v628, 1
      %v706 = vrot.slane %v630, 1
      %v707 = vsel %vm671, %v705, %v706
      %v708 = vrot.slane %v631, 1
      %v709 = vrot.slane %v633, 1
      %v710 = vsel %vm671, %v708, %v709
      %v711 = vrot.slane %v632, 1
      %v712 = vrot.slane %v634, 1
      %v713 = vsel %vm671, %v711, %v712
      %v714 = vrot.slane %v635, 1
      %v715 = vrot.slane %v637, 1
      %v716 = vsel %vm671, %v714, %v715
      %v717 = vrot.slane %v636, 1
      %v718 = vrot.slane %v638, 1
      %v719 = vsel %vm671, %v717, %v718
      %s736 = scalar_lea.vmem %s1, 512
      %v737 = vld [vmem:[%s736] sm:$0xff]
      %v738 = vld [vmem:[%s736 + $0x8] sm:$0xff]
      %v739 = vld [vmem:[%s736 + $0x10] sm:$0xff]
      %v740 = vld [vmem:[%s736 + $0x18] sm:$0xff]
      %v741 = vld [vmem:[%s736 + $0x20] sm:$0xff]
      %v742 = vld [vmem:[%s736 + $0x28] sm:$0xff]
      %v743 = vld [vmem:[%s736 + $0x30] sm:$0xff]
      %v744 = vld [vmem:[%s736 + $0x38] sm:$0xff]
      %v745 = vld [vmem:[%s736 + $0x40] sm:$0xff]
      %v746 = vld [vmem:[%s736 + $0x48] sm:$0xff]
      %v747 = vld [vmem:[%s736 + $0x50] sm:$0xff]
      %v748 = vld [vmem:[%s736 + $0x58] sm:$0xff]
      %v749 = vld [vmem:[%s736 + $0x60] sm:$0xff]
      %v750 = vld [vmem:[%s736 + $0x68] sm:$0xff]
      %v751 = vld [vmem:[%s736 + $0x70] sm:$0xff]
      %v752 = vld [vmem:[%s736 + $0x78] sm:$0xff]
      %v753 = vld [vmem:[%s736 + $0x80] sm:$0xff]
      %v754 = vld [vmem:[%s736 + $0x88] sm:$0xff]
      %v755 = vld [vmem:[%s736 + $0x90] sm:$0xff]
      %v756 = vld [vmem:[%s736 + $0x98] sm:$0xff]
      %v757 = vld [vmem:[%s736 + $0xa0] sm:$0xff]
      %v758 = vld [vmem:[%s736 + $0xa8] sm:$0xff]
      %v759 = vld [vmem:[%s736 + $0xb0] sm:$0xff]
      %v760 = vld [vmem:[%s736 + $0xb8] sm:$0xff]
      %v761 = vld [vmem:[%s736 + $0xc0] sm:$0xff]
      %v762 = vld [vmem:[%s736 + $0xc8] sm:$0xff]
      %v763 = vld [vmem:[%s736 + $0xd0] sm:$0xff]
      %v764 = vld [vmem:[%s736 + $0xd8] sm:$0xff]
      %v765 = vld [vmem:[%s736 + $0xe0] sm:$0xff]
      %v766 = vld [vmem:[%s736 + $0xe8] sm:$0xff]
      %v767 = vld [vmem:[%s736 + $0xf0] sm:$0xff]
      %v768 = vld [vmem:[%s736 + $0xf8] sm:$0xff]
      %v769 = vld [vmem:[%s736 + $0x100] sm:$0xff]
      %v770 = vld [vmem:[%s736 + $0x108] sm:$0xff]
      %v771 = vld [vmem:[%s736 + $0x110] sm:$0xff]
      %v772 = vld [vmem:[%s736 + $0x118] sm:$0xff]
      %v773 = vld [vmem:[%s736 + $0x120] sm:$0xff]
      %v774 = vld [vmem:[%s736 + $0x128] sm:$0xff]
      %v775 = vld [vmem:[%s736 + $0x130] sm:$0xff]
      %v776 = vld [vmem:[%s736 + $0x138] sm:$0xff]
      %v777 = vld [vmem:[%s736 + $0x140] sm:$0xff]
      %v778 = vld [vmem:[%s736 + $0x148] sm:$0xff]
      %v779 = vld [vmem:[%s736 + $0x150] sm:$0xff]
      %v780 = vld [vmem:[%s736 + $0x158] sm:$0xff]
      %v781 = vld [vmem:[%s736 + $0x160] sm:$0xff]
      %v782 = vld [vmem:[%s736 + $0x168] sm:$0xff]
      %v783 = vld [vmem:[%s736 + $0x170] sm:$0xff]
      %v784 = vld [vmem:[%s736 + $0x178] sm:$0xff]
      %v785 = vld [vmem:[%s736 + $0x180] sm:$0xff]
      %v786 = vld [vmem:[%s736 + $0x188] sm:$0xff]
      %v787 = vld [vmem:[%s736 + $0x190] sm:$0xff]
      %v788 = vld [vmem:[%s736 + $0x198] sm:$0xff]
      %v789 = vld [vmem:[%s736 + $0x1a0] sm:$0xff]
      %v790 = vld [vmem:[%s736 + $0x1a8] sm:$0xff]
      %v791 = vld [vmem:[%s736 + $0x1b0] sm:$0xff]
      %v792 = vld [vmem:[%s736 + $0x1b8] sm:$0xff]
      %v793 = vld [vmem:[%s736 + $0x1c0] sm:$0xff]
      %v794 = vld [vmem:[%s736 + $0x1c8] sm:$0xff]
      %v795 = vld [vmem:[%s736 + $0x1d0] sm:$0xff]
      %v796 = vld [vmem:[%s736 + $0x1d8] sm:$0xff]
      %v797 = vld [vmem:[%s736 + $0x1e0] sm:$0xff]
      %v798 = vld [vmem:[%s736 + $0x1e8] sm:$0xff]
      %v799 = vld [vmem:[%s736 + $0x1f0] sm:$0xff]
      %v800 = vld [vmem:[%s736 + $0x1f8] sm:$0xff]
      %801 = vmatprep.subr.mxu0 %v738
      %802 = vmatpush1.msra.mxu0 %v737
      %803 = vmatprep.subr.mxu0 %v740
      %804 = vmatpush1.msra.mxu0 %v739
      %805 = vmatprep.subr.mxu0 %v742
      %806 = vmatpush1.msra.mxu0 %v741
      %807 = vmatprep.subr.mxu0 %v744
      %808 = vmatpush1.msra.mxu0 %v743
      %809 = vmatprep.subr.mxu0 %v746
      %810 = vmatpush1.msra.mxu0 %v745
      %811 = vmatprep.subr.mxu0 %v748
      %812 = vmatpush1.msra.mxu0 %v747
      %813 = vmatprep.subr.mxu0 %v750
      %814 = vmatpush1.msra.mxu0 %v749
      %815 = vmatprep.subr.mxu0 %v752
      %816 = vmatpush1.msra.mxu0 %v751
      %817 = vmatprep.subr.mxu0 %v754
      %818 = vmatpush1.msra.mxu0 %v753
      %819 = vmatprep.subr.mxu0 %v756
      %820 = vmatpush1.msra.mxu0 %v755
      %821 = vmatprep.subr.mxu0 %v758
      %822 = vmatpush1.msra.mxu0 %v757
      %823 = vmatprep.subr.mxu0 %v760
      %824 = vmatpush1.msra.mxu0 %v759
      %825 = vmatprep.subr.mxu0 %v762
      %826 = vmatpush1.msra.mxu0 %v761
      %827 = vmatprep.subr.mxu0 %v764
      %828 = vmatpush1.msra.mxu0 %v763
      %829 = vmatprep.subr.mxu0 %v766
      %830 = vmatpush1.msra.mxu0 %v765
      %831 = vmatprep.subr.mxu0 %v768
      %832 = vmatpush1.msra.mxu0 %v767
      %833 = vmatprep.subr.mxu0 %v770
      %834 = vmatpush1.msra.mxu0 %v769
      %835 = vmatprep.subr.mxu0 %v772
      %836 = vmatpush1.msra.mxu0 %v771
      %837 = vmatprep.subr.mxu0 %v774
      %838 = vmatpush1.msra.mxu0 %v773
      %839 = vmatprep.subr.mxu0 %v776
      %840 = vmatpush1.msra.mxu0 %v775
      %841 = vmatprep.subr.mxu0 %v778
      %842 = vmatpush1.msra.mxu0 %v777
      %843 = vmatprep.subr.mxu0 %v780
      %844 = vmatpush1.msra.mxu0 %v779
      %845 = vmatprep.subr.mxu0 %v782
      %846 = vmatpush1.msra.mxu0 %v781
      %847 = vmatprep.subr.mxu0 %v784
      %848 = vmatpush1.msra.mxu0 %v783
      %849 = vmatprep.subr.mxu0 %v786
      %850 = vmatpush1.msra.mxu0 %v785
      %851 = vmatprep.subr.mxu0 %v788
      %852 = vmatpush1.msra.mxu0 %v787
      %853 = vmatprep.subr.mxu0 %v790
      %854 = vmatpush1.msra.mxu0 %v789
      %855 = vmatprep.subr.mxu0 %v792
      %856 = vmatpush1.msra.mxu0 %v791
      %857 = vmatprep.subr.mxu0 %v794
      %858 = vmatpush1.msra.mxu0 %v793
      %859 = vmatprep.subr.mxu0 %v796
      %860 = vmatpush1.msra.mxu0 %v795
      %861 = vmatprep.subr.mxu0 %v798
      %862 = vmatpush1.msra.mxu0 %v797
      %863 = vmatprep.subr.mxu0 %v800
      %864 = vmatpush1.msra.mxu0 %v799
      %865 = vmatprep.mubr.f32.mxu0 %v677
      %866 = vmatmul.mubr.f32.gmra.mrb[0].mxu0 %v674
      %v867 = vpop.f32.mrb[0].mxu0
      %v868 = vadd.f32 0.0, %v867
      %v869 = vpop.f32.mrb[0].mxu0
      %v870 = vadd.f32 0.0, %v869
      %871 = vmatprep.mubr.f32.mxu0 %v683
      %872 = vmatmul.mubr.f32.gmra.mrb[0].mxu0 %v680
      %v873 = vpop.f32.mrb[0].mxu0
      %v874 = vadd.f32 0.0, %v873
      %v875 = vpop.f32.mrb[0].mxu0
      %v876 = vadd.f32 0.0, %v875
      %877 = vmatprep.mubr.f32.mxu0 %v689
      %878 = vmatmul.mubr.f32.gmra.mrb[0].mxu0 %v686
      %v879 = vpop.f32.mrb[0].mxu0
      %v880 = vadd.f32 0.0, %v879
      %v881 = vpop.f32.mrb[0].mxu0
      %v882 = vadd.f32 0.0, %v881
      %883 = vmatprep.mubr.f32.mxu0 %v695
      %884 = vmatmul.mubr.f32.gmra.mrb[0].mxu0 %v692
      %v885 = vpop.f32.mrb[0].mxu0
      %v886 = vadd.f32 0.0, %v885
      %v887 = vpop.f32.mrb[0].mxu0
      %v888 = vadd.f32 0.0, %v887
      %889 = vmatprep.mubr.f32.mxu0 %v701
      %890 = vmatmul.mubr.f32.gmra.mrb[0].mxu0 %v698
      %v891 = vpop.f32.mrb[0].mxu0
      %v892 = vadd.f32 0.0, %v891
      %v893 = vpop.f32.mrb[0].mxu0
      %v894 = vadd.f32 0.0, %v893
      %895 = vmatprep.mubr.f32.mxu0 %v707
      %896 = vmatmul.mubr.f32.gmra.mrb[0].mxu0 %v704
      %v897 = vpop.f32.mrb[0].mxu0
      %v898 = vadd.f32 0.0, %v897
      %v899 = vpop.f32.mrb[0].mxu0
      %v900 = vadd.f32 0.0, %v899
      %901 = vmatprep.mubr.f32.mxu0 %v713
      %902 = vmatmul.mubr.f32.gmra.mrb[0].mxu0 %v710
      %v903 = vpop.f32.mrb[0].mxu0
      %v904 = vadd.f32 0.0, %v903
      %v905 = vpop.f32.mrb[0].mxu0
      %v906 = vadd.f32 0.0, %v905
      %907 = vmatprep.mubr.f32.mxu0 %v719
      %908 = vmatmul.mubr.f32.gmra.mrb[0].mxu0 %v716
      %v909 = vpop.f32.mrb[0].mxu0
      %v910 = vadd.f32 0.0, %v909
      %v911 = vpop.f32.mrb[0].mxu0
      %v912 = vadd.f32 0.0, %v911
      %913 = vdwg.mxu0
      %914 = vmatprep.subr.mxu0 %v544
      %915 = vmatpush1.msra.mxu0 %v543
      %916 = vmatprep.subr.mxu0 %v546
      %917 = vmatpush1.msra.mxu0 %v545
      %918 = vmatprep.subr.mxu0 %v548
      %919 = vmatpush1.msra.mxu0 %v547
      %920 = vmatprep.subr.mxu0 %v550
      %921 = vmatpush1.msra.mxu0 %v549
      %922 = vmatprep.subr.mxu0 %v552
      %923 = vmatpush1.msra.mxu0 %v551
      %924 = vmatprep.subr.mxu0 %v554
      %925 = vmatpush1.msra.mxu0 %v553
      %926 = vmatprep.subr.mxu0 %v556
      %927 = vmatpush1.msra.mxu0 %v555
      %928 = vmatprep.subr.mxu0 %v558
      %929 = vmatpush1.msra.mxu0 %v557
      %930 = vmatprep.subr.mxu0 %v560
      %931 = vmatpush1.msra.mxu0 %v559
      %932 = vmatprep.subr.mxu0 %v562
      %933 = vmatpush1.msra.mxu0 %v561
      %934 = vmatprep.subr.mxu0 %v564
      %935 = vmatpush1.msra.mxu0 %v563
      %936 = vmatprep.subr.mxu0 %v566
      %937 = vmatpush1.msra.mxu0 %v565
      %938 = vmatprep.subr.mxu0 %v568
      %939 = vmatpush1.msra.mxu0 %v567
      %940 = vmatprep.subr.mxu0 %v570
      %941 = vmatpush1.msra.mxu0 %v569
      %942 = vmatprep.subr.mxu0 %v572
      %943 = vmatpush1.msra.mxu0 %v571
      %944 = vmatprep.subr.mxu0 %v574
      %945 = vmatpush1.msra.mxu0 %v573
      %946 = vmatprep.subr.mxu0 %v576
      %947 = vmatpush1.msra.mxu0 %v575
      %948 = vmatprep.subr.mxu0 %v578
      %949 = vmatpush1.msra.mxu0 %v577
      %950 = vmatprep.subr.mxu0 %v580
      %951 = vmatpush1.msra.mxu0 %v579
      %952 = vmatprep.subr.mxu0 %v582
      %953 = vmatpush1.msra.mxu0 %v581
      %954 = vmatprep.subr.mxu0 %v584
      %955 = vmatpush1.msra.mxu0 %v583
      %956 = vmatprep.subr.mxu0 %v586
      %957 = vmatpush1.msra.mxu0 %v585
      %958 = vmatprep.subr.mxu0 %v588
      %959 = vmatpush1.msra.mxu0 %v587
      %960 = vmatprep.subr.mxu0 %v590
      %961 = vmatpush1.msra.mxu0 %v589
      %962 = vmatprep.subr.mxu0 %v592
      %963 = vmatpush1.msra.mxu0 %v591
      %964 = vmatprep.subr.mxu0 %v594
      %965 = vmatpush1.msra.mxu0 %v593
      %966 = vmatprep.subr.mxu0 %v596
      %967 = vmatpush1.msra.mxu0 %v595
      %968 = vmatprep.subr.mxu0 %v598
      %969 = vmatpush1.msra.mxu0 %v597
      %970 = vmatprep.subr.mxu0 %v600
      %971 = vmatpush1.msra.mxu0 %v599
      %972 = vmatprep.subr.mxu0 %v602
      %973 = vmatpush1.msra.mxu0 %v601
      %974 = vmatprep.subr.mxu0 %v604
      %975 = vmatpush1.msra.mxu0 %v603
      %976 = vmatprep.subr.mxu0 %v606
      %977 = vmatpush1.msra.mxu0 %v605
      %978 = vmatprep.mubr.f32.mxu0 %v528
      %979 = vmatmul.mubr.f32.gmra.mrb[0].mxu0 %v527
      %v980 = vpop.f32.mrb[0].mxu0
      %v981 = vadd.f32 %v868, %v980
      %v982 = vpop.f32.mrb[0].mxu0
      %v983 = vadd.f32 %v870, %v982
      %984 = vmatprep.mubr.f32.mxu0 %v530
      %985 = vmatmul.mubr.f32.gmra.mrb[0].mxu0 %v529
      %v986 = vpop.f32.mrb[0].mxu0
      %v987 = vadd.f32 %v874, %v986
      %v988 = vpop.f32.mrb[0].mxu0
      %v989 = vadd.f32 %v876, %v988
      %990 = vmatprep.mubr.f32.mxu0 %v532
      %991 = vmatmul.mubr.f32.gmra.mrb[0].mxu0 %v531
      %v992 = vpop.f32.mrb[0].mxu0
      %v993 = vadd.f32 %v880, %v992
      %v994 = vpop.f32.mrb[0].mxu0
      %v995 = vadd.f32 %v882, %v994
      %996 = vmatprep.mubr.f32.mxu0 %v534
      %997 = vmatmul.mubr.f32.gmra.mrb[0].mxu0 %v533
      %v998 = vpop.f32.mrb[0].mxu0
      %v999 = vadd.f32 %v886, %v998
      %v1000 = vpop.f32.mrb[0].mxu0
      %v1001 = vadd.f32 %v888, %v1000
      %1002 = vmatprep.mubr.f32.mxu0 %v536
      %1003 = vmatmul.mubr.f32.gmra.mrb[0].mxu0 %v535
      %v1004 = vpop.f32.mrb[0].mxu0
      %v1005 = vadd.f32 %v892, %v1004
      %v1006 = vpop.f32.mrb[0].mxu0
      %v1007 = vadd.f32 %v894, %v1006
      %1008 = vmatprep.mubr.f32.mxu0 %v538
      %1009 = vmatmul.mubr.f32.gmra.mrb[0].mxu0 %v537
      %v1010 = vpop.f32.mrb[0].mxu0
      %v1011 = vadd.f32 %v898, %v1010
      %v1012 = vpop.f32.mrb[0].mxu0
      %v1013 = vadd.f32 %v900, %v1012
      %1014 = vmatprep.mubr.f32.mxu0 %v540
      %1015 = vmatmul.mubr.f32.gmra.mrb[0].mxu0 %v539
      %v1016 = vpop.f32.mrb[0].mxu0
      %v1017 = vadd.f32 %v904, %v1016
      %v1018 = vpop.f32.mrb[0].mxu0
      %v1019 = vadd.f32 %v906, %v1018
      %1020 = vmatprep.mubr.f32.mxu0 %v542
      %1021 = vmatmul.mubr.f32.gmra.mrb[0].mxu0 %v541
      %v1022 = vpop.f32.mrb[0].mxu0
      %v1023 = vadd.f32 %v910, %v1022
      %v1024 = vpop.f32.mrb[0].mxu0
      %v1025 = vadd.f32 %v912, %v1024
      %1026 = vdwg.mxu0
      %v1027 = vld [vmem:[#allocation2] sm:$0xfc]
      %v1028 = vld [vmem:[#allocation2 + $0x8] sm:$0xfc]
      %v1029 = vld [vmem:[#allocation2 + $0x10] sm:$0x3]
      %v1030 = vld [vmem:[#allocation2 + $0x18] sm:$0x3]
      %v1031 = vld [vmem:[#allocation2 + $0x20] sm:$0xfc]
      %v1032 = vld [vmem:[#allocation2 + $0x28] sm:$0xfc]
      %v1033 = vld [vmem:[#allocation2 + $0x30] sm:$0x3]
      %v1034 = vld [vmem:[#allocation2 + $0x38] sm:$0x3]
      %v1035 = vld [vmem:[#allocation2 + $0x40] sm:$0xfc]
      %v1036 = vld [vmem:[#allocation2 + $0x48] sm:$0xfc]
      %v1037 = vld [vmem:[#allocation2 + $0x50] sm:$0x3]
      %v1038 = vld [vmem:[#allocation2 + $0x58] sm:$0x3]
      %v1039 = vld [vmem:[#allocation2 + $0x60] sm:$0xfc]
      %v1040 = vld [vmem:[#allocation2 + $0x68] sm:$0xfc]
      %v1041 = vld [vmem:[#allocation2 + $0x70] sm:$0x3]
      %v1042 = vld [vmem:[#allocation2 + $0x78] sm:$0x3]
      %v1043 = vld [vmem:[#allocation2 + $0x80] sm:$0xfc]
      %v1044 = vld [vmem:[#allocation2 + $0x88] sm:$0xfc]
      %v1045 = vld [vmem:[#allocation2 + $0x90] sm:$0x3]
      %v1046 = vld [vmem:[#allocation2 + $0x98] sm:$0x3]
      %v1047 = vld [vmem:[#allocation2 + $0xa0] sm:$0xfc]
      %v1048 = vld [vmem:[#allocation2 + $0xa8] sm:$0xfc]
      %v1049 = vld [vmem:[#allocation2 + $0xb0] sm:$0x3]
      %v1050 = vld [vmem:[#allocation2 + $0xb8] sm:$0x3]
      %v1051 = vld [vmem:[#allocation2 + $0xc0] sm:$0xfc]
      %v1052 = vld [vmem:[#allocation2 + $0xc8] sm:$0xfc]
      %v1053 = vld [vmem:[#allocation2 + $0xd0] sm:$0x3]
      %v1054 = vld [vmem:[#allocation2 + $0xd8] sm:$0x3]
      %v1055 = vld [vmem:[#allocation2 + $0xe0] sm:$0xfc]
      %v1056 = vld [vmem:[#allocation2 + $0xe8] sm:$0xfc]
      %v1057 = vld [vmem:[#allocation2 + $0xf0] sm:$0x3]
      %v1058 = vld [vmem:[#allocation2 + $0xf8] sm:$0x3]
      %vm1091 = vcmask 1045504
      %v1092 = vrot.slane %v1027, 2
      %v1093 = vrot.slane %v1029, 2
      %v1094 = vsel %vm1091, %v1092, %v1093
      %v1095 = vrot.slane %v1028, 2
      %v1096 = vrot.slane %v1030, 2
      %v1097 = vsel %vm1091, %v1095, %v1096
      %v1098 = vrot.slane %v1031, 2
      %v1099 = vrot.slane %v1033, 2
      %v1100 = vsel %vm1091, %v1098, %v1099
      %v1101 = vrot.slane %v1032, 2
      %v1102 = vrot.slane %v1034, 2
      %v1103 = vsel %vm1091, %v1101, %v1102
      %v1104 = vrot.slane %v1035, 2
      %v1105 = vrot.slane %v1037, 2
      %v1106 = vsel %vm1091, %v1104, %v1105
      %v1107 = vrot.slane %v1036, 2
      %v1108 = vrot.slane %v1038, 2
      %v1109 = vsel %vm1091, %v1107, %v1108
      %v1110 = vrot.slane %v1039, 2
      %v1111 = vrot.slane %v1041, 2
      %v1112 = vsel %vm1091, %v1110, %v1111
      %v1113 = vrot.slane %v1040, 2
      %v1114 = vrot.slane %v1042, 2
      %v1115 = vsel %vm1091, %v1113, %v1114
      %v1116 = vrot.slane %v1043, 2
      %v1117 = vrot.slane %v1045, 2
      %v1118 = vsel %vm1091, %v1116, %v1117
      %v1119 = vrot.slane %v1044, 2
      %v1120 = vrot.slane %v1046, 2
      %v1121 = vsel %vm1091, %v1119, %v1120
      %v1122 = vrot.slane %v1047, 2
      %v1123 = vrot.slane %v1049, 2
      %v1124 = vsel %vm1091, %v1122, %v1123
      %v1125 = vrot.slane %v1048, 2
      %v1126 = vrot.slane %v1050, 2
      %v1127 = vsel %vm1091, %v1125, %v1126
      %v1128 = vrot.slane %v1051, 2
      %v1129 = vrot.slane %v1053, 2
      %v1130 = vsel %vm1091, %v1128, %v1129
      %v1131 = vrot.slane %v1052, 2
      %v1132 = vrot.slane %v1054, 2
      %v1133 = vsel %vm1091, %v1131, %v1132
      %v1134 = vrot.slane %v1055, 2
      %v1135 = vrot.slane %v1057, 2
      %v1136 = vsel %vm1091, %v1134, %v1135
      %v1137 = vrot.slane %v1056, 2
      %v1138 = vrot.slane %v1058, 2
      %v1139 = vsel %vm1091, %v1137, %v1138
      %s1156 = scalar_lea.vmem %s1, 1024
      %v1157 = vld [vmem:[%s1156] sm:$0xff]
      %v1158 = vld [vmem:[%s1156 + $0x8] sm:$0xff]
      %v1159 = vld [vmem:[%s1156 + $0x10] sm:$0xff]
      %v1160 = vld [vmem:[%s1156 + $0x18] sm:$0xff]
      %v1161 = vld [vmem:[%s1156 + $0x20] sm:$0xff]
      %v1162 = vld [vmem:[%s1156 + $0x28] sm:$0xff]
      %v1163 = vld [vmem:[%s1156 + $0x30] sm:$0xff]
      %v1164 = vld [vmem:[%s1156 + $0x38] sm:$0xff]
      %v1165 = vld [vmem:[%s1156 + $0x40] sm:$0xff]
      %v1166 = vld [vmem:[%s1156 + $0x48] sm:$0xff]
      %v1167 = vld [vmem:[%s1156 + $0x50] sm:$0xff]
      %v1168 = vld [vmem:[%s1156 + $0x58] sm:$0xff]
      %v1169 = vld [vmem:[%s1156 + $0x60] sm:$0xff]
      %v1170 = vld [vmem:[%s1156 + $0x68] sm:$0xff]
      %v1171 = vld [vmem:[%s1156 + $0x70] sm:$0xff]
      %v1172 = vld [vmem:[%s1156 + $0x78] sm:$0xff]
      %v1173 = vld [vmem:[%s1156 + $0x80] sm:$0xff]
      %v1174 = vld [vmem:[%s1156 + $0x88] sm:$0xff]
      %v1175 = vld [vmem:[%s1156 + $0x90] sm:$0xff]
      %v1176 = vld [vmem:[%s1156 + $0x98] sm:$0xff]
      %v1177 = vld [vmem:[%s1156 + $0xa0] sm:$0xff]
      %v1178 = vld [vmem:[%s1156 + $0xa8] sm:$0xff]
      %v1179 = vld [vmem:[%s1156 + $0xb0] sm:$0xff]
      %v1180 = vld [vmem:[%s1156 + $0xb8] sm:$0xff]
      %v1181 = vld [vmem:[%s1156 + $0xc0] sm:$0xff]
      %v1182 = vld [vmem:[%s1156 + $0xc8] sm:$0xff]
      %v1183 = vld [vmem:[%s1156 + $0xd0] sm:$0xff]
      %v1184 = vld [vmem:[%s1156 + $0xd8] sm:$0xff]
      %v1185 = vld [vmem:[%s1156 + $0xe0] sm:$0xff]
      %v1186 = vld [vmem:[%s1156 + $0xe8] sm:$0xff]
      %v1187 = vld [vmem:[%s1156 + $0xf0] sm:$0xff]
      %v1188 = vld [vmem:[%s1156 + $0xf8] sm:$0xff]
      %v1189 = vld [vmem:[%s1156 + $0x100] sm:$0xff]
      %v1190 = vld [vmem:[%s1156 + $0x108] sm:$0xff]
      %v1191 = vld [vmem:[%s1156 + $0x110] sm:$0xff]
      %v1192 = vld [vmem:[%s1156 + $0x118] sm:$0xff]
      %v1193 = vld [vmem:[%s1156 + $0x120] sm:$0xff]
      %v1194 = vld [vmem:[%s1156 + $0x128] sm:$0xff]
      %v1195 = vld [vmem:[%s1156 + $0x130] sm:$0xff]
      %v1196 = vld [vmem:[%s1156 + $0x138] sm:$0xff]
      %v1197 = vld [vmem:[%s1156 + $0x140] sm:$0xff]
      %v1198 = vld [vmem:[%s1156 + $0x148] sm:$0xff]
      %v1199 = vld [vmem:[%s1156 + $0x150] sm:$0xff]
      %v1200 = vld [vmem:[%s1156 + $0x158] sm:$0xff]
      %v1201 = vld [vmem:[%s1156 + $0x160] sm:$0xff]
      %v1202 = vld [vmem:[%s1156 + $0x168] sm:$0xff]
      %v1203 = vld [vmem:[%s1156 + $0x170] sm:$0xff]
      %v1204 = vld [vmem:[%s1156 + $0x178] sm:$0xff]
      %v1205 = vld [vmem:[%s1156 + $0x180] sm:$0xff]
      %v1206 = vld [vmem:[%s1156 + $0x188] sm:$0xff]
      %v1207 = vld [vmem:[%s1156 + $0x190] sm:$0xff]
      %v1208 = vld [vmem:[%s1156 + $0x198] sm:$0xff]
      %v1209 = vld [vmem:[%s1156 + $0x1a0] sm:$0xff]
      %v1210 = vld [vmem:[%s1156 + $0x1a8] sm:$0xff]
      %v1211 = vld [vmem:[%s1156 + $0x1b0] sm:$0xff]
      %v1212 = vld [vmem:[%s1156 + $0x1b8] sm:$0xff]
      %v1213 = vld [vmem:[%s1156 + $0x1c0] sm:$0xff]
      %v1214 = vld [vmem:[%s1156 + $0x1c8] sm:$0xff]
      %v1215 = vld [vmem:[%s1156 + $0x1d0] sm:$0xff]
      %v1216 = vld [vmem:[%s1156 + $0x1d8] sm:$0xff]
      %v1217 = vld [vmem:[%s1156 + $0x1e0] sm:$0xff]
      %v1218 = vld [vmem:[%s1156 + $0x1e8] sm:$0xff]
      %v1219 = vld [vmem:[%s1156 + $0x1f0] sm:$0xff]
      %v1220 = vld [vmem:[%s1156 + $0x1f8] sm:$0xff]
      %1221 = vmatprep.subr.mxu0 %v1158
      %1222 = vmatpush1.msra.mxu0 %v1157
      %1223 = vmatprep.subr.mxu0 %v1160
      %1224 = vmatpush1.msra.mxu0 %v1159
      %1225 = vmatprep.subr.mxu0 %v1162
      %1226 = vmatpush1.msra.mxu0 %v1161
      %1227 = vmatprep.subr.mxu0 %v1164
      %1228 = vmatpush1.msra.mxu0 %v1163
      %1229 = vmatprep.subr.mxu0 %v1166
      %1230 = vmatpush1.msra.mxu0 %v1165
      %1231 = vmatprep.subr.mxu0 %v1168
      %1232 = vmatpush1.msra.mxu0 %v1167
      %1233 = vmatprep.subr.mxu0 %v1170
      %1234 = vmatpush1.msra.mxu0 %v1169
      %1235 = vmatprep.subr.mxu0 %v1172
      %1236 = vmatpush1.msra.mxu0 %v1171
      %1237 = vmatprep.subr.mxu0 %v1174
      %1238 = vmatpush1.msra.mxu0 %v1173
      %1239 = vmatprep.subr.mxu0 %v1176
      %1240 = vmatpush1.msra.mxu0 %v1175
      %1241 = vmatprep.subr.mxu0 %v1178
      %1242 = vmatpush1.msra.mxu0 %v1177
      %1243 = vmatprep.subr.mxu0 %v1180
      %1244 = vmatpush1.msra.mxu0 %v1179
      %1245 = vmatprep.subr.mxu0 %v1182
      %1246 = vmatpush1.msra.mxu0 %v1181
      %1247 = vmatprep.subr.mxu0 %v1184
      %1248 = vmatpush1.msra.mxu0 %v1183
      %1249 = vmatprep.subr.mxu0 %v1186
      %1250 = vmatpush1.msra.mxu0 %v1185
      %1251 = vmatprep.subr.mxu0 %v1188
      %1252 = vmatpush1.msra.mxu0 %v1187
      %1253 = vmatprep.subr.mxu0 %v1190
      %1254 = vmatpush1.msra.mxu0 %v1189
      %1255 = vmatprep.subr.mxu0 %v1192
      %1256 = vmatpush1.msra.mxu0 %v1191
      %1257 = vmatprep.subr.mxu0 %v1194
      %1258 = vmatpush1.msra.mxu0 %v1193
      %1259 = vmatprep.subr.mxu0 %v1196
      %1260 = vmatpush1.msra.mxu0 %v1195
      %1261 = vmatprep.subr.mxu0 %v1198
      %1262 = vmatpush1.msra.mxu0 %v1197
      %1263 = vmatprep.subr.mxu0 %v1200
      %1264 = vmatpush1.msra.mxu0 %v1199
      %1265 = vmatprep.subr.mxu0 %v1202
      %1266 = vmatpush1.msra.mxu0 %v1201
      %1267 = vmatprep.subr.mxu0 %v1204
      %1268 = vmatpush1.msra.mxu0 %v1203
      %1269 = vmatprep.subr.mxu0 %v1206
      %1270 = vmatpush1.msra.mxu0 %v1205
      %1271 = vmatprep.subr.mxu0 %v1208
      %1272 = vmatpush1.msra.mxu0 %v1207
      %1273 = vmatprep.subr.mxu0 %v1210
      %1274 = vmatpush1.msra.mxu0 %v1209
      %1275 = vmatprep.subr.mxu0 %v1212
      %1276 = vmatpush1.msra.mxu0 %v1211
      %1277 = vmatprep.subr.mxu0 %v1214
      %1278 = vmatpush1.msra.mxu0 %v1213
      %1279 = vmatprep.subr.mxu0 %v1216
      %1280 = vmatpush1.msra.mxu0 %v1215
      %1281 = vmatprep.subr.mxu0 %v1218
      %1282 = vmatpush1.msra.mxu0 %v1217
      %1283 = vmatprep.subr.mxu0 %v1220
      %1284 = vmatpush1.msra.mxu0 %v1219
      %1285 = vmatprep.mubr.f32.mxu0 %v1097
      %1286 = vmatmul.mubr.f32.gmra.mrb[0].mxu0 %v1094
      %v1287 = vpop.f32.mrb[0].mxu0
      %v1288 = vadd.f32 0.0, %v1287
      %v1289 = vpop.f32.mrb[0].mxu0
      %v1290 = vadd.f32 0.0, %v1289
      %1291 = vmatprep.mubr.f32.mxu0 %v1103
      %1292 = vmatmul.mubr.f32.gmra.mrb[0].mxu0 %v1100
      %v1293 = vpop.f32.mrb[0].mxu0
      %v1294 = vadd.f32 0.0, %v1293
      %v1295 = vpop.f32.mrb[0].mxu0
      %v1296 = vadd.f32 0.0, %v1295
      %1297 = vmatprep.mubr.f32.mxu0 %v1109
      %1298 = vmatmul.mubr.f32.gmra.mrb[0].mxu0 %v1106
      %v1299 = vpop.f32.mrb[0].mxu0
      %v1300 = vadd.f32 0.0, %v1299
      %v1301 = vpop.f32.mrb[0].mxu0
      %v1302 = vadd.f32 0.0, %v1301
      %1303 = vmatprep.mubr.f32.mxu0 %v1115
      %1304 = vmatmul.mubr.f32.gmra.mrb[0].mxu0 %v1112
      %v1305 = vpop.f32.mrb[0].mxu0
      %v1306 = vadd.f32 0.0, %v1305
      %v1307 = vpop.f32.mrb[0].mxu0
      %v1308 = vadd.f32 0.0, %v1307
      %1309 = vmatprep.mubr.f32.mxu0 %v1121
      %1310 = vmatmul.mubr.f32.gmra.mrb[0].mxu0 %v1118
      %v1311 = vpop.f32.mrb[0].mxu0
      %v1312 = vadd.f32 0.0, %v1311
      %v1313 = vpop.f32.mrb[0].mxu0
      %v1314 = vadd.f32 0.0, %v1313
      %1315 = vmatprep.mubr.f32.mxu0 %v1127
      %1316 = vmatmul.mubr.f32.gmra.mrb[0].mxu0 %v1124
      %v1317 = vpop.f32.mrb[0].mxu0
      %v1318 = vadd.f32 0.0, %v1317
      %v1319 = vpop.f32.mrb[0].mxu0
      %v1320 = vadd.f32 0.0, %v1319
      %1321 = vmatprep.mubr.f32.mxu0 %v1133
      %1322 = vmatmul.mubr.f32.gmra.mrb[0].mxu0 %v1130
      %v1323 = vpop.f32.mrb[0].mxu0
      %v1324 = vadd.f32 0.0, %v1323
      %v1325 = vpop.f32.mrb[0].mxu0
      %v1326 = vadd.f32 0.0, %v1325
      %1327 = vmatprep.mubr.f32.mxu0 %v1139
      %1328 = vmatmul.mubr.f32.gmra.mrb[0].mxu0 %v1136
      %v1329 = vpop.f32.mrb[0].mxu0
      %v1330 = vadd.f32 0.0, %v1329
      %v1331 = vpop.f32.mrb[0].mxu0
      %v1332 = vadd.f32 0.0, %v1331
      %1333 = vdwg.mxu0
      %v1334 = vadd.f32 %v981, %v1288
      %v1335 = vadd.f32 %v983, %v1290
      %v1336 = vadd.f32 %v987, %v1294
      %v1337 = vadd.f32 %v989, %v1296
      %v1338 = vadd.f32 %v993, %v1300
      %v1339 = vadd.f32 %v995, %v1302
      %v1340 = vadd.f32 %v999, %v1306
      %v1341 = vadd.f32 %v1001, %v1308
      %v1342 = vadd.f32 %v1005, %v1312
      %v1343 = vadd.f32 %v1007, %v1314
      %v1344 = vadd.f32 %v1011, %v1318
      %v1345 = vadd.f32 %v1013, %v1320
      %v1346 = vadd.f32 %v1017, %v1324
      %v1347 = vadd.f32 %v1019, %v1326
      %v1348 = vadd.f32 %v1023, %v1330
      %v1349 = vadd.f32 %v1025, %v1332
      %v1350 = vld [vmem:[%s2] sm:$0x3]
      %v1352 = vlaneseq
      %v1353 = vshrl.u32 %v1352, 7
      %v1354 = vsub.s32 0, %v1353
      %v1355 = vrot.slane %v1350, %v1354
      %v1356 = vlaneseq
      %v1357 = vshrl.u32 %v1356, 7
      %v1358 = vsub.s32 1, %v1357
      %v1359 = vrot.slane %v1350, %v1358
      %v1362 = vadd.f32 %v1334, %v1355
      %v1363 = vadd.f32 %v1335, %v1359
      %v1364 = vadd.f32 %v1336, %v1355
      %v1365 = vadd.f32 %v1337, %v1359
      %v1366 = vadd.f32 %v1338, %v1355
      %v1367 = vadd.f32 %v1339, %v1359
      %v1368 = vadd.f32 %v1340, %v1355
      %v1369 = vadd.f32 %v1341, %v1359
      %v1370 = vadd.f32 %v1342, %v1355
      %v1371 = vadd.f32 %v1343, %v1359
      %v1372 = vadd.f32 %v1344, %v1355
      %v1373 = vadd.f32 %v1345, %v1359
      %v1374 = vadd.f32 %v1346, %v1355
      %v1375 = vadd.f32 %v1347, %v1359
      %v1376 = vadd.f32 %v1348, %v1355
      %v1377 = vadd.f32 %v1349, %v1359
      %1378 = vst [vmem:[%s298] sm:$0xff] %v1362
      %1379 = vst [vmem:[%s298 + $0x8] sm:$0xff] %v1363
      %1380 = vst [vmem:[%s298 + $0x10] sm:$0xff] %v1364
      %1381 = vst [vmem:[%s298 + $0x18] sm:$0xff] %v1365
      %1382 = vst [vmem:[%s298 + $0x20] sm:$0xff] %v1366
      %1383 = vst [vmem:[%s298 + $0x28] sm:$0xff] %v1367
      %1384 = vst [vmem:[%s298 + $0x30] sm:$0xff] %v1368
      %1385 = vst [vmem:[%s298 + $0x38] sm:$0xff] %v1369
      %1386 = vst [vmem:[%s298 + $0x40] sm:$0xff] %v1370
      %1387 = vst [vmem:[%s298 + $0x48] sm:$0xff] %v1371
      %1388 = vst [vmem:[%s298 + $0x50] sm:$0xff] %v1372
      %1389 = vst [vmem:[%s298 + $0x58] sm:$0xff] %v1373
      %1390 = vst [vmem:[%s298 + $0x60] sm:$0xff] %v1374
      %1391 = vst [vmem:[%s298 + $0x68] sm:$0xff] %v1375
      %1392 = vst [vmem:[%s298 + $0x70] sm:$0xff] %v1376
      %1393 = vst [vmem:[%s298 + $0x78] sm:$0xff] %v1377
      %v1394 = vadd.f32 %v1362, %v1364
      %v1395 = vadd.f32 %v1394, %v1366
      %v1396 = vadd.f32 %v1395, %v1368
      %v1397 = vadd.f32 %v1396, %v1370
      %v1398 = vadd.f32 %v1397, %v1372
      %v1399 = vadd.f32 %v1398, %v1374
      %v1400 = vadd.f32 %v1399, %v1376
      %v1401 = vrot.slane %v1400, 4
      %v1402 = vadd.f32 %v1400, %v1401
      %v1403 = vrot.slane %v1402, 2
      %v1404 = vadd.f32 %v1402, %v1403
      %v1405 = vrot.slane %v1404, 1
      %v1406 = vadd.f32 %v1404, %v1405
      %v1407 = vadd.f32 %v1363, %v1365
      %v1408 = vadd.f32 %v1407, %v1367
      %v1409 = vadd.f32 %v1408, %v1369
      %v1410 = vadd.f32 %v1409, %v1371
      %v1411 = vadd.f32 %v1410, %v1373
      %v1412 = vadd.f32 %v1411, %v1375
      %v1413 = vadd.f32 %v1412, %v1377
      %v1414 = vrot.slane %v1413, 4
      %v1415 = vadd.f32 %v1413, %v1414
      %v1416 = vrot.slane %v1415, 2
      %v1417 = vadd.f32 %v1415, %v1416
      %v1418 = vrot.slane %v1417, 1
      %v1419 = vadd.f32 %v1417, %v1418
      %v1422 = vcombine.low %v1406, %v1419
      %v1424 = vunpack.c.l.s4 1966171168
      %v1425 = vunpack.c.0.s8 %v1424
      %v1426 = vlaneseq
      %v1427 = vshrl.u32 %v1426, 7
      %v1428 = vsub.s32 %v1425, %v1427
      %v1429 = vrot.slane %v1422, %v1428
      %v1431 = vunpack.c.l.s4 1966171168
      %v1432 = vunpack.c.0.s8 %v1431
      %v1433 = vlaneseq
      %v1434 = vshrl.u32 %v1433, 7
      %v1435 = vsub.s32 %v1432, %v1434
      %v1436 = vrot.slane %v1429, %v1435
      %1438 = vst.msk [vmem:[%s303] sm:$0x3] %vm399, %v1436
      %v1439 = vmul.f32 %v1362, %v1362
      %v1440 = vmul.f32 %v1363, %v1363
      %v1441 = vmul.f32 %v1364, %v1364
      %v1442 = vmul.f32 %v1365, %v1365
      %v1443 = vmul.f32 %v1366, %v1366
      %v1444 = vmul.f32 %v1367, %v1367
      %v1445 = vmul.f32 %v1368, %v1368
      %v1446 = vmul.f32 %v1369, %v1369
      %v1447 = vmul.f32 %v1370, %v1370
      %v1448 = vmul.f32 %v1371, %v1371
      %v1449 = vmul.f32 %v1372, %v1372
      %v1450 = vmul.f32 %v1373, %v1373
      %v1451 = vmul.f32 %v1374, %v1374
      %v1452 = vmul.f32 %v1375, %v1375
      %v1453 = vmul.f32 %v1376, %v1376
      %v1454 = vmul.f32 %v1377, %v1377
      %v1455 = vadd.f32 %v1439, %v1441
      %v1456 = vadd.f32 %v1455, %v1443
      %v1457 = vadd.f32 %v1456, %v1445
      %v1458 = vadd.f32 %v1457, %v1447
      %v1459 = vadd.f32 %v1458, %v1449
      %v1460 = vadd.f32 %v1459, %v1451
      %v1461 = vadd.f32 %v1460, %v1453
      %v1462 = vrot.slane %v1461, 4
      %v1463 = vadd.f32 %v1461, %v1462
      %v1464 = vrot.slane %v1463, 2
      %v1465 = vadd.f32 %v1463, %v1464
      %v1466 = vrot.slane %v1465, 1
      %v1467 = vadd.f32 %v1465, %v1466
      %v1468 = vadd.f32 %v1440, %v1442
      %v1469 = vadd.f32 %v1468, %v1444
      %v1470 = vadd.f32 %v1469, %v1446
      %v1471 = vadd.f32 %v1470, %v1448
      %v1472 = vadd.f32 %v1471, %v1450
      %v1473 = vadd.f32 %v1472, %v1452
      %v1474 = vadd.f32 %v1473, %v1454
      %v1475 = vrot.slane %v1474, 4
      %v1476 = vadd.f32 %v1474, %v1475
      %v1477 = vrot.slane %v1476, 2
      %v1478 = vadd.f32 %v1476, %v1477
      %v1479 = vrot.slane %v1478, 1
      %v1480 = vadd.f32 %v1478, %v1479
      %v1483 = vcombine.low %v1467, %v1480
      %v1485 = vunpack.c.l.s4 1966171168
      %v1486 = vunpack.c.0.s8 %v1485
      %v1487 = vlaneseq
      %v1488 = vshrl.u32 %v1487, 7
      %v1489 = vsub.s32 %v1486, %v1488
      %v1490 = vrot.slane %v1483, %v1489
      %v1492 = vunpack.c.l.s4 1966171168
      %v1493 = vunpack.c.0.s8 %v1492
      %v1494 = vlaneseq
      %v1495 = vshrl.u32 %v1494, 7
      %v1496 = vsub.s32 %v1493, %v1495
      %v1497 = vrot.slane %v1490, %v1496
      %1499 = vst.msk [vmem:[%s307] sm:$0x3] %vm399, %v1497
      %s1500 = smul.u32 8, %s19
      %p1501 = scmp.lt.s32.totalorder %s1500, 15
      %s1502 = scalar_select %p1501, %s1500, 15
      %s1503 = smul.addr %s1502, 2
      %s1504 = smul.addr %s1503, 8
      %s1505 = scalar_lea.vmem %s5, %s1504
      %p1506 = scmp.lt.s32.totalorder %s19, 1
      %s1507 = scalar_select %p1506, %s19, 1
      %s1508 = smul.addr %s1507, 2
      %s1509 = scalar_lea.vmem %s6, %s1508
      %p1510 = scmp.lt.s32.totalorder %s19, 1
      %s1511 = scalar_select %p1510, %s19, 1
      %s1512 = smul.addr %s1511, 2
      %s1513 = scalar_lea.vmem %s7, %s1512
      // Predicated region
      $region41: #{resblock_pallas.4} parent=39 // pred_check
        %p1514 = pneg %p147
      $region42: #{resblock_pallas.4} parent=39 // pred_check_branch
        %1516 = sbr.rel (%p1514) target = $region44
      $region43: #{resblock_pallas.4} parent=39 // pred_region
        %s1517 = smul.u32 8, %s19
      $region44: #{resblock_pallas.4} parent=39 // pred_fallthru
        _
      // Predicated region
      $region45: #{resblock_pallas.4} parent=39 // pred_check
        %p1518 = pneg %p173
      $region46: #{resblock_pallas.4} parent=39 // pred_check_branch
        %1520 = sbr.rel (%p1518) target = $region48
      $region47: #{resblock_pallas.4} parent=39 // pred_region
        _
      $region48: #{resblock_pallas.4} parent=39 // pred_fallthru
        _
      // Predicated region
      $region49: #{resblock_pallas.4} parent=39 // pred_check
        %p1521 = pneg %p199
      $region50: #{resblock_pallas.4} parent=39 // pred_check_branch
        %1523 = sbr.rel (%p1521) target = $region52
      $region51: #{resblock_pallas.4} parent=39 // pred_region
        _
      $region52: #{resblock_pallas.4} parent=39 // pred_fallthru
        _
    $region40: #{resblock_pallas.4} parent=5 // pred_fallthru
      _
    %p1524 = scmp.le.s32.totalorder 2, %s14
    // Predicated region
    $region53: #{resblock_pallas.4} parent=5 // pred_check
      %p1525 = pneg %p1524
    $region54: #{resblock_pallas.4} parent=5 // pred_check_branch
      %1527 = sbr.rel (%p1525) target = $region56
    $region55: #{resblock_pallas.4} parent=5 // pred_region
      %s1528 = ssub.s32 %s14, 2
      // Predicated region
      $region57: #{resblock_pallas.4} parent=55 // pred_check
        %p1529 = pneg %p153
      $region58: #{resblock_pallas.4} parent=55 // pred_check_branch
        %1531 = sbr.rel (%p1529) target = $region60
      $region59: #{resblock_pallas.4} parent=55 // pred_region
        %s1532 = smul.u32 8, %s20
        %p1533 = scmp.lt.s32.totalorder %s1532, 15
        %s1534 = scalar_select %p1533, %s1532, 15
        %s1535 = smul.addr %s1534, 2
        %s1536 = smul.addr %s1535, 8
        %s1537 = scalar_lea.vmem %s5, %s1536
      $region60: #{resblock_pallas.4} parent=55 // pred_fallthru
        _
      // Predicated region
      $region61: #{resblock_pallas.4} parent=55 // pred_check
        %p1538 = pneg %p179
      $region62: #{resblock_pallas.4} parent=55 // pred_check_branch
        %1540 = sbr.rel (%p1538) target = $region64
      $region63: #{resblock_pallas.4} parent=55 // pred_region
        %p1541 = scmp.lt.s32.totalorder %s20, 1
        %s1542 = scalar_select %p1541, %s20, 1
        %s1543 = smul.addr %s1542, 2
        %s1544 = scalar_lea.vmem %s6, %s1543
      $region64: #{resblock_pallas.4} parent=55 // pred_fallthru
        _
      // Predicated region
      $region65: #{resblock_pallas.4} parent=55 // pred_check
        %p1545 = pneg %p205
      $region66: #{resblock_pallas.4} parent=55 // pred_check_branch
        %1547 = sbr.rel (%p1545) target = $region68
      $region67: #{resblock_pallas.4} parent=55 // pred_region
        %p1548 = scmp.lt.s32.totalorder %s20, 1
        %s1549 = scalar_select %p1548, %s20, 1
        %s1550 = smul.addr %s1549, 2
        %s1551 = scalar_lea.vmem %s7, %s1550
      $region68: #{resblock_pallas.4} parent=55 // pred_fallthru
        _
    $region56: #{resblock_pallas.4} parent=5 // pred_fallthru
      _
  $region6: #{resblock_pallas.4} parent=0 // loop_footer
    %s18 = sadd.s32 1, %s14
  $region7: #{resblock_pallas.4} parent=0 // loop_footer_branch
    %13 = sbr.rel target = $region3
  $region8: #{resblock_pallas.4} parent=0 // loop_exit
    _

</llo_original>
